<compile_context>
chip_gen: v7x
topology: tpu7x:2x2x1
jax: 0.10.0
libtpu: 0.0.40
codegen_flags: <defaults>
</compile_context>

<pallas_src>
import functools

import jax
import jax.numpy as jnp
from jax.experimental import pallas as pl
from jax.experimental.pallas import tpu as pltpu


# --------------------------------------------------------------------------
# Fused Pallas kernel: NUM_LAYERS SpatialConv layers + mean-pool + fc
# --------------------------------------------------------------------------
def fused_sman_kernel(
    x_ref, ea_ref,
    gsd_ref, aee_ref, sne_ref, pool_ref, invc_ref,
    w3_ref, we_ref, b1_ref,
    wee_ref, wself_ref, b2_ref,
    bnp_ref, wen_ref, b3_ref,
    wfc_ref, bfc_ref,
    out_ref,
):
    num_layers = w3_ref.shape[0]
    ep = ea_ref.shape[0]
    hid = wee_ref.shape[1]

    # Structural operators: loaded once, resident across all layers.
    gsd = gsd_ref[...]            # [2E, N]   bf16 one-hot (src rows ; dst rows)
    aee = aee_ref[...]            # [E, E]    bf16 edge->edge adjacency
    sne = sne_ref[...]            # [N, N+E]  bf16 scatter_add incidence

    x = x_ref[...]                # [N, F]    f32 node features (zero-padded)
    ea = ea_ref[...]              # [E, F]    f32 edge features (zero-padded)

    for l in range(num_layers):   # unrolled; weight slices are static indices
        xb = x.astype(jnp.bfloat16)
        eab = ea.astype(jnp.bfloat16)

        # Consolidated node-side projections: W3 = [Wsrc | Wdst | Wnode].
        xw3 = jnp.dot(xb, w3_ref[l], preferred_element_type=jnp.float32)  # [N, 3H]
        g = jnp.dot(gsd, xw3.astype(jnp.bfloat16),
                    preferred_element_type=jnp.float32)                   # [2E, 3H]

        # --- NodeToEdgeAggregation -----------------------------------------
        # TODO(synk): submodule undefined in the draft; implemented as
        # relu(x[src] Wsrc + x[dst] Wdst + edge_attr We + b1).
        e1 = jnp.maximum(
            g[:ep, :hid] + g[ep:, hid:2 * hid]
            + jnp.dot(eab, we_ref[l], preferred_element_type=jnp.float32)
            + b1_ref[l],
            0.0,
        )                                                                  # [E, H]

        # --- EdgeToEdgeAggregation -------------------------------------------
        # TODO(synk): submodule (multi-head attention + dropout) undefined;
        # implemented as relu(A_ee e1 Wee + e1 Wself + b2); dropout = eval
        # identity; the draft's shape-inconsistent .mean(dim=1) collapse skipped.
        e1b = e1.astype(jnp.bfloat16)
        msg = jnp.dot(aee, e1b, preferred_element_type=jnp.float32)        # [E, H]
        e2 = jnp.maximum(
            jnp.dot(msg.astype(jnp.bfloat16), wee_ref[l],
                    preferred_element_type=jnp.float32)
            + jnp.dot(e1b, wself_ref[l], preferred_element_type=jnp.float32)
            + b2_ref[l],
            0.0,
        )                                                                  # [E, H]

        # --- EdgeToNodeAggregation on concat([nodes, edges]) ------------------
        # TODO(synk): submodule undefined; implemented as a shared linear + ReLU
        # on the stacked [N+E, H] slab (one fused MXU op instead of two).
        xp = xw3[:, 2 * hid:] + bnp_ref[l]                                 # [N, H]
        ne = jnp.concatenate([xp, e2], axis=0).astype(jnp.bfloat16)        # [N+E, H]
        h = jnp.maximum(
            jnp.dot(ne, wen_ref[l], preferred_element_type=jnp.float32)
            + b3_ref[l],
            0.0,
        )                                                                  # [N+E, H]

        # scatter_add(updated_node_feat, dst, dim_size=num_nodes) as one matmul.
        x = jnp.dot(sne, h.astype(jnp.bfloat16),
                    preferred_element_type=jnp.float32)                    # [N, H]
        ea = e2

    # --- global_mean_pool + fc(hidden, 1); output lane-padded to 128 wide ----
    pooled = jnp.dot(pool_ref[...], x.astype(jnp.bfloat16),
                     preferred_element_type=jnp.float32) * invc_ref[...]   # [B, H]
    out_ref[...] = (
        jnp.dot(pooled.astype(jnp.bfloat16), wfc_ref[...],
                preferred_element_type=jnp.float32)
        + bfc_ref[...]
    )                                                                      # [B, 128]


# --------------------------------------------------------------------------
# Wrapper: one pallas_call, everything whole-array resident in VMEM
# --------------------------------------------------------------------------
def sman_forward(x, edge_attr, structure, params):
    gsd, aee, sne, pool_mat, inv_counts = structure
    bp = pool_mat.shape[0]
    width = params["wfc"].shape[1]
    ins = (
        x, edge_attr, gsd, aee, sne, pool_mat, inv_counts,
        params["w3"], params["we"], params["b1"],
        params["wee"], params["wself"], params["b2"],
        params["bnp"], params["wen"], params["b3"],
        params["wfc"], params["bfc"],
    )
    vmem = functools.partial(pl.BlockSpec, memory_space=pltpu.MemorySpace.VMEM)
    return pl.pallas_call(
        fused_sman_kernel,
        out_shape=jax.ShapeDtypeStruct((bp, width), jnp.float32),
        in_specs=[vmem() for _ in ins],
        out_specs=vmem(),
        compiler_params=pltpu.CompilerParams(vmem_limit_bytes=32 * 1024 * 1024),
    )(*ins)


def init_params(key, num_layers, feat, hidden, out_width):
    ks = jax.random.split(key, 8)

    def w(k, shape):
        return (jax.random.normal(k, shape, jnp.float32) * 0.1).astype(jnp.bfloat16)

    L = num_layers
    # Node-side projections stacked lane-wise: [Wsrc | Wdst | Wnode] -> [L, F, 3H]
    w3 = jnp.concatenate(
        [w(ks[0], (L, feat, hidden)),
         w(ks[1], (L, feat, hidden)),
         w(ks[5], (L, feat, hidden))],
        axis=-1,
    )
    params = {
        "w3":    w3,
        "we":    w(ks[2], (L, feat, hidden)),
        "b1":    jnp.zeros((L, 1, hidden), jnp.float32),
        "wee":   w(ks[3], (L, hidden, hidden)),
        "wself": w(ks[4], (L, hidden, hidden)),
        "b2":    jnp.zeros((L, 1, hidden), jnp.float32),
        "bnp":   jnp.zeros((L, 1, hidden), jnp.float32),
        "wen":   w(ks[6], (L, hidden, hidden)),
        "b3":    jnp.zeros((L, 1, hidden), jnp.float32),
    }
    # fc(hidden, 1): real weights live in column 0, lane-padded to out_width.
    wfc_col = jax.random.normal(ks[7], (hidden, 1), jnp.float32) * 0.1
    wfc = jnp.zeros((hidden, out_width), jnp.float32).at[:, :1].set(wfc_col)
    params["wfc"] = wfc.astype(jnp.bfloat16)
    params["bfc"] = jnp.zeros((1, out_width), jnp.float32)
    return params


# --------------------------------------------------------------------------
# Example / driver
# --------------------------------------------------------------------------
if __name__ == "__main__":
    # Real (logical) sizes
    N = 16            # num nodes (already a multiple of 8)
    E_REAL = 24       # num edges
    NN = 48           # num node_to_node connections
    EE = 32           # num edge_to_edge connections
    NODE_IN = 8       # node_in_channels
    EDGE_IN = 6       # edge_in_channels
    HIDDEN = 128      # hidden_size (spec value; lane-dense)
    NUM_LAYERS = 3
    B_REAL = 2        # graphs in batch

    # Padded sizes (sublane multiples of 8, lane-dense 128 features)
    EP = 32           # edges padded
    BP = 8            # batch rows padded
    F = HIDDEN        # shared lane-dense feature width for all layers

    key = jax.random.PRNGKey(0)
    k_x, k_ea, k_ei, k_ee, k_ns, k_nd, _ = jax.random.split(key, 7)

    # data.x, data.edge_attr, data.edge_index
    x_raw = jax.random.normal(k_x, (N, NODE_IN), jnp.float32)
    ea_raw = jax.random.normal(k_ea, (E_REAL, EDGE_IN), jnp.float32)
    edge_index = jax.random.randint(k_ei, (2, E_REAL), 0, N)
    edge_to_edge_index = jax.random.randint(k_ee, (2, EE), 0, E_REAL)
    # node_to_node_index: src indexes concat [nodes ; edges], dst indexes nodes
    nn_src = jax.random.randint(k_ns, (NN,), 0, N + E_REAL)
    nn_dst = jax.random.randint(k_nd, (NN,), 0, N)
    batch = jnp.concatenate(
        [jnp.zeros((N // 2,), jnp.int32), jnp.ones((N - N // 2,), jnp.int32)]
    )

    # ---- zero-padded, lane-dense activations ---------------------------------
    x_pad = jnp.zeros((N, F), jnp.float32).at[:, :NODE_IN].set(x_raw)
    ea_pad = jnp.zeros((EP, F), jnp.float32).at[:E_REAL, :EDGE_IN].set(ea_raw)

    # ---- dense structural operators (zero-padded rows/cols contribute nothing)
    rows_e = jnp.arange(E_REAL)
    gs = jnp.zeros((EP, N), jnp.float32).at[rows_e, edge_index[0]].set(1.0)
    gd = jnp.zeros((EP, N), jnp.float32).at[rows_e, edge_index[1]].set(1.0)
    gsd = jnp.concatenate([gs, gd], axis=0).astype(jnp.bfloat16)        # [2*EP, N]

    aee = (
        jnp.zeros((EP, EP), jnp.float32)
        .at[edge_to_edge_index[1], edge_to_edge_index[0]].add(1.0)
    ).astype(jnp.bfloat16)                                              # [EP, EP]

    # scatter over concat([nodes ; edges]); node block first so the real src
    # indices map identically into the padded [N + EP] layout.
    sne = (
        jnp.zeros((N, N + EP), jnp.float32).at[nn_dst, nn_src].add(1.0)
    ).astype(jnp.bfloat16)                                              # [N, N+EP]

    pool_raw = jnp.zeros((BP, N), jnp.float32).at[batch, jnp.arange(N)].set(1.0)
    counts = jnp.maximum(pool_raw.sum(axis=1, keepdims=True), 1.0)
    inv_counts = 1.0 / counts                                           # [BP, 1] f32
    pool_mat = pool_raw.astype(jnp.bfloat16)                            # [BP, N]

    # ---- deterministic parameters (uniform [L, 128, ...] stacks) --------------
    params = init_params(jax.random.PRNGKey(42), NUM_LAYERS, F, HIDDEN, F)

    structure = (gsd, aee, sne, pool_mat, inv_counts)
    out_pad = sman_forward(x_pad, ea_pad, structure, params)
    out_pad = jax.block_until_ready(out_pad)

    # Slice the lane-padded slab back to the module's logical output [B, 1].
    out = out_pad[:B_REAL, :1]
    assert out.shape == (B_REAL, 1) and out.dtype == jnp.float32
    assert bool(jnp.all(jnp.isfinite(out)))
    print("KERNEL_OK")
</pallas_src>

<mosaic_0001>
module attributes {stable_mosaic.version = 11 : i64} {
  func.func @fused_sman_kernel(%arg0: memref<16x128xf32, #tpu.memory_space<vmem>>, %arg1: memref<32x128xf32, #tpu.memory_space<vmem>>, %arg2: memref<64x16xbf16, #tpu.memory_space<vmem>>, %arg3: memref<32x32xbf16, #tpu.memory_space<vmem>>, %arg4: memref<16x48xbf16, #tpu.memory_space<vmem>>, %arg5: memref<8x16xbf16, #tpu.memory_space<vmem>>, %arg6: memref<8x1xf32, #tpu.memory_space<vmem>>, %arg7: memref<3x128x384xbf16, #tpu.memory_space<vmem>>, %arg8: memref<3x128x128xbf16, #tpu.memory_space<vmem>>, %arg9: memref<3x1x128xf32, #tpu.memory_space<vmem>>, %arg10: memref<3x128x128xbf16, #tpu.memory_space<vmem>>, %arg11: memref<3x128x128xbf16, #tpu.memory_space<vmem>>, %arg12: memref<3x1x128xf32, #tpu.memory_space<vmem>>, %arg13: memref<3x1x128xf32, #tpu.memory_space<vmem>>, %arg14: memref<3x128x128xbf16, #tpu.memory_space<vmem>>, %arg15: memref<3x1x128xf32, #tpu.memory_space<vmem>>, %arg16: memref<128x128xbf16, #tpu.memory_space<vmem>>, %arg17: memref<1x128xf32, #tpu.memory_space<vmem>>, %arg18: memref<8x128xf32, #tpu.memory_space<vmem>>) attributes {dimension_semantics = [], scalar_prefetch = 0 : i64, scratch_operands = 0 : i64, tpu.core_type = #tpu.core_type<tc>} {
    %c0 = arith.constant 0 : index
    %c0_0 = arith.constant 0 : index
    %0 = vector.load %arg2[%c0, %c0_0] : memref<64x16xbf16, #tpu.memory_space<vmem>>, vector<64x16xbf16>
    %c0_1 = arith.constant 0 : index
    %c0_2 = arith.constant 0 : index
    %1 = vector.load %arg3[%c0_1, %c0_2] : memref<32x32xbf16, #tpu.memory_space<vmem>>, vector<32x32xbf16>
    %c0_3 = arith.constant 0 : index
    %c0_4 = arith.constant 0 : index
    %2 = vector.load %arg4[%c0_3, %c0_4] : memref<16x48xbf16, #tpu.memory_space<vmem>>, vector<16x48xbf16>
    %c0_5 = arith.constant 0 : index
    %c0_6 = arith.constant 0 : index
    %3 = vector.load %arg0[%c0_5, %c0_6] : memref<16x128xf32, #tpu.memory_space<vmem>>, vector<16x128xf32>
    %c0_7 = arith.constant 0 : index
    %c0_8 = arith.constant 0 : index
    %4 = vector.load %arg1[%c0_7, %c0_8] : memref<32x128xf32, #tpu.memory_space<vmem>>, vector<32x128xf32>
    %5 = arith.truncf %3 : vector<16x128xf32> to vector<16x128xbf16>
    %6 = arith.truncf %4 : vector<32x128xf32> to vector<32x128xbf16>
    %c0_9 = arith.constant 0 : index
    %c0_10 = arith.constant 0 : index
    %c0_11 = arith.constant 0 : index
    %7 = vector.load %arg7[%c0_9, %c0_10, %c0_11] : memref<3x128x384xbf16, #tpu.memory_space<vmem>>, vector<1x128x384xbf16>
    %8 = vector.shape_cast %7 : vector<1x128x384xbf16> to vector<128x384xbf16>
    %cst = arith.constant dense<0.000000e+00> : vector<16x384xf32>
    %9 = tpu.matmul %5, %8, %cst {dimension_numbers = #tpu.dot_dimension_numbers<[1], [0], [0], [1], [0, 0, 1, 1], [], []>} : vector<16x128xbf16>, vector<128x384xbf16>, vector<16x384xf32> -> vector<16x384xf32>
    %10 = arith.truncf %9 : vector<16x384xf32> to vector<16x384xbf16>
    %cst_12 = arith.constant dense<0.000000e+00> : vector<64x384xf32>
    %11 = tpu.matmul %0, %10, %cst_12 {dimension_numbers = #tpu.dot_dimension_numbers<[1], [0], [0], [1], [0, 0, 1, 1], [], []>} : vector<64x16xbf16>, vector<16x384xbf16>, vector<64x384xf32> -> vector<64x384xf32>
    %12 = vector.extract_strided_slice %11 {offsets = [0, 0], sizes = [32, 128], strides = [1, 1]} : vector<64x384xf32> to vector<32x128xf32>
    %13 = vector.extract_strided_slice %11 {offsets = [32, 128], sizes = [32, 128], strides = [1, 1]} : vector<64x384xf32> to vector<32x128xf32>
    %14 = arith.addf %12, %13 : vector<32x128xf32>
    %c0_13 = arith.constant 0 : index
    %c0_14 = arith.constant 0 : index
    %c0_15 = arith.constant 0 : index
    %15 = vector.load %arg8[%c0_13, %c0_14, %c0_15] : memref<3x128x128xbf16, #tpu.memory_space<vmem>>, vector<1x128x128xbf16>
    %16 = vector.shape_cast %15 : vector<1x128x128xbf16> to vector<128x128xbf16>
    %cst_16 = arith.constant dense<0.000000e+00> : vector<32x128xf32>
    %17 = tpu.matmul %6, %16, %cst_16 {dimension_numbers = #tpu.dot_dimension_numbers<[1], [0], [0], [1], [0, 0, 1, 1], [], []>} : vector<32x128xbf16>, vector<128x128xbf16>, vector<32x128xf32> -> vector<32x128xf32>
    %18 = arith.addf %14, %17 : vector<32x128xf32>
    %c0_17 = arith.constant 0 : index
    %c0_18 = arith.constant 0 : index
    %c0_19 = arith.constant 0 : index
    %19 = vector.load %arg9[%c0_17, %c0_18, %c0_19] : memref<3x1x128xf32, #tpu.memory_space<vmem>>, vector<1x1x128xf32>
    %20 = vector.shape_cast %19 : vector<1x1x128xf32> to vector<1x128xf32>
    %21 = vector.broadcast %20 : vector<1x128xf32> to vector<32x128xf32>
    %22 = arith.addf %18, %21 : vector<32x128xf32>
    %cst_20 = arith.constant 0.000000e+00 : f32
    %23 = vector.broadcast %cst_20 : f32 to vector<32x128xf32>
    %24 = arith.maximumf %22, %23 : vector<32x128xf32>
    %25 = arith.truncf %24 : vector<32x128xf32> to vector<32x128xbf16>
    %cst_21 = arith.constant dense<0.000000e+00> : vector<32x128xf32>
    %26 = tpu.matmul %1, %25, %cst_21 {dimension_numbers = #tpu.dot_dimension_numbers<[1], [0], [0], [1], [0, 0, 1, 1], [], []>} : vector<32x32xbf16>, vector<32x128xbf16>, vector<32x128xf32> -> vector<32x128xf32>
    %27 = arith.truncf %26 : vector<32x128xf32> to vector<32x128xbf16>
    %c0_22 = arith.constant 0 : index
    %c0_23 = arith.constant 0 : index
    %c0_24 = arith.constant 0 : index
    %28 = vector.load %arg10[%c0_22, %c0_23, %c0_24] : memref<3x128x128xbf16, #tpu.memory_space<vmem>>, vector<1x128x128xbf16>
    %29 = vector.shape_cast %28 : vector<1x128x128xbf16> to vector<128x128xbf16>
    %cst_25 = arith.constant dense<0.000000e+00> : vector<32x128xf32>
    %30 = tpu.matmul %27, %29, %cst_25 {dimension_numbers = #tpu.dot_dimension_numbers<[1], [0], [0], [1], [0, 0, 1, 1], [], []>} : vector<32x128xbf16>, vector<128x128xbf16>, vector<32x128xf32> -> vector<32x128xf32>
    %c0_26 = arith.constant 0 : index
    %c0_27 = arith.constant 0 : index
    %c0_28 = arith.constant 0 : index
    %31 = vector.load %arg11[%c0_26, %c0_27, %c0_28] : memref<3x128x128xbf16, #tpu.memory_space<vmem>>, vector<1x128x128xbf16>
    %32 = vector.shape_cast %31 : vector<1x128x128xbf16> to vector<128x128xbf16>
    %cst_29 = arith.constant dense<0.000000e+00> : vector<32x128xf32>
    %33 = tpu.matmul %25, %32, %cst_29 {dimension_numbers = #tpu.dot_dimension_numbers<[1], [0], [0], [1], [0, 0, 1, 1], [], []>} : vector<32x128xbf16>, vector<128x128xbf16>, vector<32x128xf32> -> vector<32x128xf32>
    %34 = arith.addf %30, %33 : vector<32x128xf32>
    %c0_30 = arith.constant 0 : index
    %c0_31 = arith.constant 0 : index
    %c0_32 = arith.constant 0 : index
    %35 = vector.load %arg12[%c0_30, %c0_31, %c0_32] : memref<3x1x128xf32, #tpu.memory_space<vmem>>, vector<1x1x128xf32>
    %36 = vector.shape_cast %35 : vector<1x1x128xf32> to vector<1x128xf32>
    %37 = vector.broadcast %36 : vector<1x128xf32> to vector<32x128xf32>
    %38 = arith.addf %34, %37 : vector<32x128xf32>
    %cst_33 = arith.constant 0.000000e+00 : f32
    %39 = vector.broadcast %cst_33 : f32 to vector<32x128xf32>
    %40 = arith.maximumf %38, %39 : vector<32x128xf32>
    %41 = vector.extract_strided_slice %9 {offsets = [0, 256], sizes = [16, 128], strides = [1, 1]} : vector<16x384xf32> to vector<16x128xf32>
    %c0_34 = arith.constant 0 : index
    %c0_35 = arith.constant 0 : index
    %c0_36 = arith.constant 0 : index
    %42 = vector.load %arg13[%c0_34, %c0_35, %c0_36] : memref<3x1x128xf32, #tpu.memory_space<vmem>>, vector<1x1x128xf32>
    %43 = vector.shape_cast %42 : vector<1x1x128xf32> to vector<1x128xf32>
    %44 = vector.broadcast %43 : vector<1x128xf32> to vector<16x128xf32>
    %45 = arith.addf %41, %44 : vector<16x128xf32>
    %46 = tpu.concatenate %45, %40 in 0 : vector<16x128xf32>, vector<32x128xf32> -> vector<48x128xf32>
    %47 = arith.truncf %46 : vector<48x128xf32> to vector<48x128xbf16>
    %c0_37 = arith.constant 0 : index
    %c0_38 = arith.constant 0 : index
    %c0_39 = arith.constant 0 : index
    %48 = vector.load %arg14[%c0_37, %c0_38, %c0_39] : memref<3x128x128xbf16, #tpu.memory_space<vmem>>, vector<1x128x128xbf16>
    %49 = vector.shape_cast %48 : vector<1x128x128xbf16> to vector<128x128xbf16>
    %cst_40 = arith.constant dense<0.000000e+00> : vector<48x128xf32>
    %50 = tpu.matmul %47, %49, %cst_40 {dimension_numbers = #tpu.dot_dimension_numbers<[1], [0], [0], [1], [0, 0, 1, 1], [], []>} : vector<48x128xbf16>, vector<128x128xbf16>, vector<48x128xf32> -> vector<48x128xf32>
    %c0_41 = arith.constant 0 : index
    %c0_42 = arith.constant 0 : index
    %c0_43 = arith.constant 0 : index
    %51 = vector.load %arg15[%c0_41, %c0_42, %c0_43] : memref<3x1x128xf32, #tpu.memory_space<vmem>>, vector<1x1x128xf32>
    %52 = vector.shape_cast %51 : vector<1x1x128xf32> to vector<1x128xf32>
    %53 = vector.broadcast %52 : vector<1x128xf32> to vector<48x128xf32>
    %54 = arith.addf %50, %53 : vector<48x128xf32>
    %cst_44 = arith.constant 0.000000e+00 : f32
    %55 = vector.broadcast %cst_44 : f32 to vector<48x128xf32>
    %56 = arith.maximumf %54, %55 : vector<48x128xf32>
    %57 = arith.truncf %56 : vector<48x128xf32> to vector<48x128xbf16>
    %cst_45 = arith.constant dense<0.000000e+00> : vector<16x128xf32>
    %58 = tpu.matmul %2, %57, %cst_45 {dimension_numbers = #tpu.dot_dimension_numbers<[1], [0], [0], [1], [0, 0, 1, 1], [], []>} : vector<16x48xbf16>, vector<48x128xbf16>, vector<16x128xf32> -> vector<16x128xf32>
    %59 = arith.truncf %58 : vector<16x128xf32> to vector<16x128xbf16>
    %60 = arith.truncf %40 : vector<32x128xf32> to vector<32x128xbf16>
    %c1 = arith.constant 1 : index
    %c0_46 = arith.constant 0 : index
    %c0_47 = arith.constant 0 : index
    %61 = vector.load %arg7[%c1, %c0_46, %c0_47] : memref<3x128x384xbf16, #tpu.memory_space<vmem>>, vector<1x128x384xbf16>
    %62 = vector.shape_cast %61 : vector<1x128x384xbf16> to vector<128x384xbf16>
    %cst_48 = arith.constant dense<0.000000e+00> : vector<16x384xf32>
    %63 = tpu.matmul %59, %62, %cst_48 {dimension_numbers = #tpu.dot_dimension_numbers<[1], [0], [0], [1], [0, 0, 1, 1], [], []>} : vector<16x128xbf16>, vector<128x384xbf16>, vector<16x384xf32> -> vector<16x384xf32>
    %64 = arith.truncf %63 : vector<16x384xf32> to vector<16x384xbf16>
    %cst_49 = arith.constant dense<0.000000e+00> : vector<64x384xf32>
    %65 = tpu.matmul %0, %64, %cst_49 {dimension_numbers = #tpu.dot_dimension_numbers<[1], [0], [0], [1], [0, 0, 1, 1], [], []>} : vector<64x16xbf16>, vector<16x384xbf16>, vector<64x384xf32> -> vector<64x384xf32>
    %66 = vector.extract_strided_slice %65 {offsets = [0, 0], sizes = [32, 128], strides = [1, 1]} : vector<64x384xf32> to vector<32x128xf32>
    %67 = vector.extract_strided_slice %65 {offsets = [32, 128], sizes = [32, 128], strides = [1, 1]} : vector<64x384xf32> to vector<32x128xf32>
    %68 = arith.addf %66, %67 : vector<32x128xf32>
    %c1_50 = arith.constant 1 : index
    %c0_51 = arith.constant 0 : index
    %c0_52 = arith.constant 0 : index
    %69 = vector.load %arg8[%c1_50, %c0_51, %c0_52] : memref<3x128x128xbf16, #tpu.memory_space<vmem>>, vector<1x128x128xbf16>
    %70 = vector.shape_cast %69 : vector<1x128x128xbf16> to vector<128x128xbf16>
    %cst_53 = arith.constant dense<0.000000e+00> : vector<32x128xf32>
    %71 = tpu.matmul %60, %70, %cst_53 {dimension_numbers = #tpu.dot_dimension_numbers<[1], [0], [0], [1], [0, 0, 1, 1], [], []>} : vector<32x128xbf16>, vector<128x128xbf16>, vector<32x128xf32> -> vector<32x128xf32>
    %72 = arith.addf %68, %71 : vector<32x128xf32>
    %c1_54 = arith.constant 1 : index
    %c0_55 = arith.constant 0 : index
    %c0_56 = arith.constant 0 : index
    %73 = vector.load %arg9[%c1_54, %c0_55, %c0_56] : memref<3x1x128xf32, #tpu.memory_space<vmem>>, vector<1x1x128xf32>
    %74 = vector.shape_cast %73 : vector<1x1x128xf32> to vector<1x128xf32>
    %75 = vector.broadcast %74 : vector<1x128xf32> to vector<32x128xf32>
    %76 = arith.addf %72, %75 : vector<32x128xf32>
    %cst_57 = arith.constant 0.000000e+00 : f32
    %77 = vector.broadcast %cst_57 : f32 to vector<32x128xf32>
    %78 = arith.maximumf %76, %77 : vector<32x128xf32>
    %79 = arith.truncf %78 : vector<32x128xf32> to vector<32x128xbf16>
    %cst_58 = arith.constant dense<0.000000e+00> : vector<32x128xf32>
    %80 = tpu.matmul %1, %79, %cst_58 {dimension_numbers = #tpu.dot_dimension_numbers<[1], [0], [0], [1], [0, 0, 1, 1], [], []>} : vector<32x32xbf16>, vector<32x128xbf16>, vector<32x128xf32> -> vector<32x128xf32>
    %81 = arith.truncf %80 : vector<32x128xf32> to vector<32x128xbf16>
    %c1_59 = arith.constant 1 : index
    %c0_60 = arith.constant 0 : index
    %c0_61 = arith.constant 0 : index
    %82 = vector.load %arg10[%c1_59, %c0_60, %c0_61] : memref<3x128x128xbf16, #tpu.memory_space<vmem>>, vector<1x128x128xbf16>
    %83 = vector.shape_cast %82 : vector<1x128x128xbf16> to vector<128x128xbf16>
    %cst_62 = arith.constant dense<0.000000e+00> : vector<32x128xf32>
    %84 = tpu.matmul %81, %83, %cst_62 {dimension_numbers = #tpu.dot_dimension_numbers<[1], [0], [0], [1], [0, 0, 1, 1], [], []>} : vector<32x128xbf16>, vector<128x128xbf16>, vector<32x128xf32> -> vector<32x128xf32>
    %c1_63 = arith.constant 1 : index
    %c0_64 = arith.constant 0 : index
    %c0_65 = arith.constant 0 : index
    %85 = vector.load %arg11[%c1_63, %c0_64, %c0_65] : memref<3x128x128xbf16, #tpu.memory_space<vmem>>, vector<1x128x128xbf16>
    %86 = vector.shape_cast %85 : vector<1x128x128xbf16> to vector<128x128xbf16>
    %cst_66 = arith.constant dense<0.000000e+00> : vector<32x128xf32>
    %87 = tpu.matmul %79, %86, %cst_66 {dimension_numbers = #tpu.dot_dimension_numbers<[1], [0], [0], [1], [0, 0, 1, 1], [], []>} : vector<32x128xbf16>, vector<128x128xbf16>, vector<32x128xf32> -> vector<32x128xf32>
    %88 = arith.addf %84, %87 : vector<32x128xf32>
    %c1_67 = arith.constant 1 : index
    %c0_68 = arith.constant 0 : index
    %c0_69 = arith.constant 0 : index
    %89 = vector.load %arg12[%c1_67, %c0_68, %c0_69] : memref<3x1x128xf32, #tpu.memory_space<vmem>>, vector<1x1x128xf32>
    %90 = vector.shape_cast %89 : vector<1x1x128xf32> to vector<1x128xf32>
    %91 = vector.broadcast %90 : vector<1x128xf32> to vector<32x128xf32>
    %92 = arith.addf %88, %91 : vector<32x128xf32>
    %cst_70 = arith.constant 0.000000e+00 : f32
    %93 = vector.broadcast %cst_70 : f32 to vector<32x128xf32>
    %94 = arith.maximumf %92, %93 : vector<32x128xf32>
    %95 = vector.extract_strided_slice %63 {offsets = [0, 256], sizes = [16, 128], strides = [1, 1]} : vector<16x384xf32> to vector<16x128xf32>
    %c1_71 = arith.constant 1 : index
    %c0_72 = arith.constant 0 : index
    %c0_73 = arith.constant 0 : index
    %96 = vector.load %arg13[%c1_71, %c0_72, %c0_73] : memref<3x1x128xf32, #tpu.memory_space<vmem>>, vector<1x1x128xf32>
    %97 = vector.shape_cast %96 : vector<1x1x128xf32> to vector<1x128xf32>
    %98 = vector.broadcast %97 : vector<1x128xf32> to vector<16x128xf32>
    %99 = arith.addf %95, %98 : vector<16x128xf32>
    %100 = tpu.concatenate %99, %94 in 0 : vector<16x128xf32>, vector<32x128xf32> -> vector<48x128xf32>
    %101 = arith.truncf %100 : vector<48x128xf32> to vector<48x128xbf16>
    %c1_74 = arith.constant 1 : index
    %c0_75 = arith.constant 0 : index
    %c0_76 = arith.constant 0 : index
    %102 = vector.load %arg14[%c1_74, %c0_75, %c0_76] : memref<3x128x128xbf16, #tpu.memory_space<vmem>>, vector<1x128x128xbf16>
    %103 = vector.shape_cast %102 : vector<1x128x128xbf16> to vector<128x128xbf16>
    %cst_77 = arith.constant dense<0.000000e+00> : vector<48x128xf32>
    %104 = tpu.matmul %101, %103, %cst_77 {dimension_numbers = #tpu.dot_dimension_numbers<[1], [0], [0], [1], [0, 0, 1, 1], [], []>} : vector<48x128xbf16>, vector<128x128xbf16>, vector<48x128xf32> -> vector<48x128xf32>
    %c1_78 = arith.constant 1 : index
    %c0_79 = arith.constant 0 : index
    %c0_80 = arith.constant 0 : index
    %105 = vector.load %arg15[%c1_78, %c0_79, %c0_80] : memref<3x1x128xf32, #tpu.memory_space<vmem>>, vector<1x1x128xf32>
    %106 = vector.shape_cast %105 : vector<1x1x128xf32> to vector<1x128xf32>
    %107 = vector.broadcast %106 : vector<1x128xf32> to vector<48x128xf32>
    %108 = arith.addf %104, %107 : vector<48x128xf32>
    %cst_81 = arith.constant 0.000000e+00 : f32
    %109 = vector.broadcast %cst_81 : f32 to vector<48x128xf32>
    %110 = arith.maximumf %108, %109 : vector<48x128xf32>
    %111 = arith.truncf %110 : vector<48x128xf32> to vector<48x128xbf16>
    %cst_82 = arith.constant dense<0.000000e+00> : vector<16x128xf32>
    %112 = tpu.matmul %2, %111, %cst_82 {dimension_numbers = #tpu.dot_dimension_numbers<[1], [0], [0], [1], [0, 0, 1, 1], [], []>} : vector<16x48xbf16>, vector<48x128xbf16>, vector<16x128xf32> -> vector<16x128xf32>
    %113 = arith.truncf %112 : vector<16x128xf32> to vector<16x128xbf16>
    %114 = arith.truncf %94 : vector<32x128xf32> to vector<32x128xbf16>
    %c2 = arith.constant 2 : index
    %c0_83 = arith.constant 0 : index
    %c0_84 = arith.constant 0 : index
    %115 = vector.load %arg7[%c2, %c0_83, %c0_84] : memref<3x128x384xbf16, #tpu.memory_space<vmem>>, vector<1x128x384xbf16>
    %116 = vector.shape_cast %115 : vector<1x128x384xbf16> to vector<128x384xbf16>
    %cst_85 = arith.constant dense<0.000000e+00> : vector<16x384xf32>
    %117 = tpu.matmul %113, %116, %cst_85 {dimension_numbers = #tpu.dot_dimension_numbers<[1], [0], [0], [1], [0, 0, 1, 1], [], []>} : vector<16x128xbf16>, vector<128x384xbf16>, vector<16x384xf32> -> vector<16x384xf32>
    %118 = arith.truncf %117 : vector<16x384xf32> to vector<16x384xbf16>
    %cst_86 = arith.constant dense<0.000000e+00> : vector<64x384xf32>
    %119 = tpu.matmul %0, %118, %cst_86 {dimension_numbers = #tpu.dot_dimension_numbers<[1], [0], [0], [1], [0, 0, 1, 1], [], []>} : vector<64x16xbf16>, vector<16x384xbf16>, vector<64x384xf32> -> vector<64x384xf32>
    %120 = vector.extract_strided_slice %119 {offsets = [0, 0], sizes = [32, 128], strides = [1, 1]} : vector<64x384xf32> to vector<32x128xf32>
    %121 = vector.extract_strided_slice %119 {offsets = [32, 128], sizes = [32, 128], strides = [1, 1]} : vector<64x384xf32> to vector<32x128xf32>
    %122 = arith.addf %120, %121 : vector<32x128xf32>
    %c2_87 = arith.constant 2 : index
    %c0_88 = arith.constant 0 : index
    %c0_89 = arith.constant 0 : index
    %123 = vector.load %arg8[%c2_87, %c0_88, %c0_89] : memref<3x128x128xbf16, #tpu.memory_space<vmem>>, vector<1x128x128xbf16>
    %124 = vector.shape_cast %123 : vector<1x128x128xbf16> to vector<128x128xbf16>
    %cst_90 = arith.constant dense<0.000000e+00> : vector<32x128xf32>
    %125 = tpu.matmul %114, %124, %cst_90 {dimension_numbers = #tpu.dot_dimension_numbers<[1], [0], [0], [1], [0, 0, 1, 1], [], []>} : vector<32x128xbf16>, vector<128x128xbf16>, vector<32x128xf32> -> vector<32x128xf32>
    %126 = arith.addf %122, %125 : vector<32x128xf32>
    %c2_91 = arith.constant 2 : index
    %c0_92 = arith.constant 0 : index
    %c0_93 = arith.constant 0 : index
    %127 = vector.load %arg9[%c2_91, %c0_92, %c0_93] : memref<3x1x128xf32, #tpu.memory_space<vmem>>, vector<1x1x128xf32>
    %128 = vector.shape_cast %127 : vector<1x1x128xf32> to vector<1x128xf32>
    %129 = vector.broadcast %128 : vector<1x128xf32> to vector<32x128xf32>
    %130 = arith.addf %126, %129 : vector<32x128xf32>
    %cst_94 = arith.constant 0.000000e+00 : f32
    %131 = vector.broadcast %cst_94 : f32 to vector<32x128xf32>
    %132 = arith.maximumf %130, %131 : vector<32x128xf32>
    %133 = arith.truncf %132 : vector<32x128xf32> to vector<32x128xbf16>
    %cst_95 = arith.constant dense<0.000000e+00> : vector<32x128xf32>
    %134 = tpu.matmul %1, %133, %cst_95 {dimension_numbers = #tpu.dot_dimension_numbers<[1], [0], [0], [1], [0, 0, 1, 1], [], []>} : vector<32x32xbf16>, vector<32x128xbf16>, vector<32x128xf32> -> vector<32x128xf32>
    %135 = arith.truncf %134 : vector<32x128xf32> to vector<32x128xbf16>
    %c2_96 = arith.constant 2 : index
    %c0_97 = arith.constant 0 : index
    %c0_98 = arith.constant 0 : index
    %136 = vector.load %arg10[%c2_96, %c0_97, %c0_98] : memref<3x128x128xbf16, #tpu.memory_space<vmem>>, vector<1x128x128xbf16>
    %137 = vector.shape_cast %136 : vector<1x128x128xbf16> to vector<128x128xbf16>
    %cst_99 = arith.constant dense<0.000000e+00> : vector<32x128xf32>
    %138 = tpu.matmul %135, %137, %cst_99 {dimension_numbers = #tpu.dot_dimension_numbers<[1], [0], [0], [1], [0, 0, 1, 1], [], []>} : vector<32x128xbf16>, vector<128x128xbf16>, vector<32x128xf32> -> vector<32x128xf32>
    %c2_100 = arith.constant 2 : index
    %c0_101 = arith.constant 0 : index
    %c0_102 = arith.constant 0 : index
    %139 = vector.load %arg11[%c2_100, %c0_101, %c0_102] : memref<3x128x128xbf16, #tpu.memory_space<vmem>>, vector<1x128x128xbf16>
    %140 = vector.shape_cast %139 : vector<1x128x128xbf16> to vector<128x128xbf16>
    %cst_103 = arith.constant dense<0.000000e+00> : vector<32x128xf32>
    %141 = tpu.matmul %133, %140, %cst_103 {dimension_numbers = #tpu.dot_dimension_numbers<[1], [0], [0], [1], [0, 0, 1, 1], [], []>} : vector<32x128xbf16>, vector<128x128xbf16>, vector<32x128xf32> -> vector<32x128xf32>
    %142 = arith.addf %138, %141 : vector<32x128xf32>
    %c2_104 = arith.constant 2 : index
    %c0_105 = arith.constant 0 : index
    %c0_106 = arith.constant 0 : index
    %143 = vector.load %arg12[%c2_104, %c0_105, %c0_106] : memref<3x1x128xf32, #tpu.memory_space<vmem>>, vector<1x1x128xf32>
    %144 = vector.shape_cast %143 : vector<1x1x128xf32> to vector<1x128xf32>
    %145 = vector.broadcast %144 : vector<1x128xf32> to vector<32x128xf32>
    %146 = arith.addf %142, %145 : vector<32x128xf32>
    %cst_107 = arith.constant 0.000000e+00 : f32
    %147 = vector.broadcast %cst_107 : f32 to vector<32x128xf32>
    %148 = arith.maximumf %146, %147 : vector<32x128xf32>
    %149 = vector.extract_strided_slice %117 {offsets = [0, 256], sizes = [16, 128], strides = [1, 1]} : vector<16x384xf32> to vector<16x128xf32>
    %c2_108 = arith.constant 2 : index
    %c0_109 = arith.constant 0 : index
    %c0_110 = arith.constant 0 : index
    %150 = vector.load %arg13[%c2_108, %c0_109, %c0_110] : memref<3x1x128xf32, #tpu.memory_space<vmem>>, vector<1x1x128xf32>
    %151 = vector.shape_cast %150 : vector<1x1x128xf32> to vector<1x128xf32>
    %152 = vector.broadcast %151 : vector<1x128xf32> to vector<16x128xf32>
    %153 = arith.addf %149, %152 : vector<16x128xf32>
    %154 = tpu.concatenate %153, %148 in 0 : vector<16x128xf32>, vector<32x128xf32> -> vector<48x128xf32>
    %155 = arith.truncf %154 : vector<48x128xf32> to vector<48x128xbf16>
    %c2_111 = arith.constant 2 : index
    %c0_112 = arith.constant 0 : index
    %c0_113 = arith.constant 0 : index
    %156 = vector.load %arg14[%c2_111, %c0_112, %c0_113] : memref<3x128x128xbf16, #tpu.memory_space<vmem>>, vector<1x128x128xbf16>
    %157 = vector.shape_cast %156 : vector<1x128x128xbf16> to vector<128x128xbf16>
    %cst_114 = arith.constant dense<0.000000e+00> : vector<48x128xf32>
    %158 = tpu.matmul %155, %157, %cst_114 {dimension_numbers = #tpu.dot_dimension_numbers<[1], [0], [0], [1], [0, 0, 1, 1], [], []>} : vector<48x128xbf16>, vector<128x128xbf16>, vector<48x128xf32> -> vector<48x128xf32>
    %c2_115 = arith.constant 2 : index
    %c0_116 = arith.constant 0 : index
    %c0_117 = arith.constant 0 : index
    %159 = vector.load %arg15[%c2_115, %c0_116, %c0_117] : memref<3x1x128xf32, #tpu.memory_space<vmem>>, vector<1x1x128xf32>
    %160 = vector.shape_cast %159 : vector<1x1x128xf32> to vector<1x128xf32>
    %161 = vector.broadcast %160 : vector<1x128xf32> to vector<48x128xf32>
    %162 = arith.addf %158, %161 : vector<48x128xf32>
    %cst_118 = arith.constant 0.000000e+00 : f32
    %163 = vector.broadcast %cst_118 : f32 to vector<48x128xf32>
    %164 = arith.maximumf %162, %163 : vector<48x128xf32>
    %165 = arith.truncf %164 : vector<48x128xf32> to vector<48x128xbf16>
    %cst_119 = arith.constant dense<0.000000e+00> : vector<16x128xf32>
    %166 = tpu.matmul %2, %165, %cst_119 {dimension_numbers = #tpu.dot_dimension_numbers<[1], [0], [0], [1], [0, 0, 1, 1], [], []>} : vector<16x48xbf16>, vector<48x128xbf16>, vector<16x128xf32> -> vector<16x128xf32>
    %c0_120 = arith.constant 0 : index
    %c0_121 = arith.constant 0 : index
    %167 = vector.load %arg5[%c0_120, %c0_121] : memref<8x16xbf16, #tpu.memory_space<vmem>>, vector<8x16xbf16>
    %168 = arith.truncf %166 : vector<16x128xf32> to vector<16x128xbf16>
    %cst_122 = arith.constant dense<0.000000e+00> : vector<8x128xf32>
    %169 = tpu.matmul %167, %168, %cst_122 {dimension_numbers = #tpu.dot_dimension_numbers<[1], [0], [0], [1], [0, 0, 1, 1], [], []>} : vector<8x16xbf16>, vector<16x128xbf16>, vector<8x128xf32> -> vector<8x128xf32>
    %c0_123 = arith.constant 0 : index
    %c0_124 = arith.constant 0 : index
    %170 = vector.load %arg6[%c0_123, %c0_124] : memref<8x1xf32, #tpu.memory_space<vmem>>, vector<8x1xf32>
    %171 = vector.broadcast %170 : vector<8x1xf32> to vector<8x128xf32>
    %172 = arith.mulf %169, %171 : vector<8x128xf32>
    %173 = arith.truncf %172 : vector<8x128xf32> to vector<8x128xbf16>
    %c0_125 = arith.constant 0 : index
    %c0_126 = arith.constant 0 : index
    %174 = vector.load %arg16[%c0_125, %c0_126] : memref<128x128xbf16, #tpu.memory_space<vmem>>, vector<128x128xbf16>
    %cst_127 = arith.constant dense<0.000000e+00> : vector<8x128xf32>
    %175 = tpu.matmul %173, %174, %cst_127 {dimension_numbers = #tpu.dot_dimension_numbers<[1], [0], [0], [1], [0, 0, 1, 1], [], []>} : vector<8x128xbf16>, vector<128x128xbf16>, vector<8x128xf32> -> vector<8x128xf32>
    %c0_128 = arith.constant 0 : index
    %c0_129 = arith.constant 0 : index
    %176 = vector.load %arg17[%c0_128, %c0_129] : memref<1x128xf32, #tpu.memory_space<vmem>>, vector<1x128xf32>
    %177 = vector.broadcast %176 : vector<1x128xf32> to vector<8x128xf32>
    %178 = arith.addf %175, %177 : vector<8x128xf32>
    %c0_130 = arith.constant 0 : index
    %c0_131 = arith.constant 0 : index
    %179 = vector.load %arg18[%c0_130, %c0_131] : memref<8x128xf32, #tpu.memory_space<vmem>>, vector<8x128xf32>
    tpu.vector_store %arg18[%c0_130, %c0_131], %178 {strides = array<i32>} : memref<8x128xf32, #tpu.memory_space<vmem>>, vector<8x128xf32>,
    return
  }
}

</mosaic_0001>

<llo_original>
// kernel: tpu_custom_call.1
$region0: #{tpu_custom_call.1}
  #allocation0 [shape = 'u32[]', space=smem, size = 0x4, offset = 0x4, fixed_abs, tag = 'smem constant byte address 0x4 - core index']
  #allocation1 [shape = 'u32[144,128]{1,0:T(1,128)}', space=vmem, size = 0x12000, scoped, tag = 'internal scratch']
  %s0 = inlined_call_operand.hbm [shape: f32[16,128], index: 0, kind: input, shape index: {}]
  %s1 = inlined_call_operand.vmem [shape: f32[32,128], index: 1, kind: input, shape index: {}]
  %s2 = inlined_call_operand.vmem [shape: bf16[64,16], index: 2, kind: input, shape index: {}]
  %s3 = inlined_call_operand.hbm [shape: bf16[32,32], index: 3, kind: input, shape index: {}]
  %s4 = inlined_call_operand.vmem [shape: bf16[16,48], index: 4, kind: input, shape index: {}]
  %s5 = inlined_call_operand.vmem [shape: bf16[8,16], index: 5, kind: input, shape index: {}]
  %s6 = inlined_call_operand.vmem [shape: f32[8,1], index: 6, kind: input, shape index: {}]
  %s7 = inlined_call_operand.hbm [shape: bf16[3,128,384], index: 7, kind: input, shape index: {}]
  %s8 = inlined_call_operand.hbm [shape: bf16[3,128,128], index: 8, kind: input, shape index: {}]
  %s9 = inlined_call_operand.hbm [shape: f32[3,1,128], index: 9, kind: input, shape index: {}]
  %s10 = inlined_call_operand.hbm [shape: bf16[3,128,128], index: 10, kind: input, shape index: {}]
  %s11 = inlined_call_operand.hbm [shape: bf16[3,128,128], index: 11, kind: input, shape index: {}]
  %s12 = inlined_call_operand.hbm [shape: f32[3,1,128], index: 12, kind: input, shape index: {}]
  %s13 = inlined_call_operand.hbm [shape: f32[3,1,128], index: 13, kind: input, shape index: {}]
  %s14 = inlined_call_operand.hbm [shape: bf16[3,128,128], index: 14, kind: input, shape index: {}]
  %s15 = inlined_call_operand.hbm [shape: f32[3,1,128], index: 15, kind: input, shape index: {}]
  %s16 = inlined_call_operand.vmem [shape: bf16[128,128], index: 16, kind: input, shape index: {}]
  %s17 = inlined_call_operand.vmem [shape: f32[1,128], index: 17, kind: input, shape index: {}]
  %s18 = inlined_call_operand.hbm [shape: f32[8,128], index: 18, kind: output, shape index: {}]
  %s19 = sld [smem:[#allocation0]]
  $region126: #{tpu_custom_call.1} parent=0
    _
  %s21 = ssub.s32 1, %s19
  %s22 = scalar_select 0, %s21, %s19
  $region1: #{tpu_custom_call.1} parent=0
    #allocation2 [shape = 'u8[8192]{0}', space=vmem, size = 0x2000, scoped, tag = 'input window, operand 0, single buffered']
    #allocation3 [shape = 's32[1]{0}', space=sflag, size = 0x4, scoped, tag = 'scoped memory for tpu_custom_call.1']
    #allocation4 [shape = 's32[1]{0}', space=sflag, size = 0x4, scoped, tag = 'scoped memory for tpu_custom_call.1']
    #allocation5 [shape = 'u8[8192]{0}', space=vmem, size = 0x2000, scoped, tag = 'input window, operand 3, single buffered']
    #allocation6 [shape = 's32[1]{0}', space=sflag, size = 0x4, scoped, tag = 'scoped memory for tpu_custom_call.1']
    #allocation7 [shape = 'u8[294912]{0}', space=vmem, size = 0x48000, scoped, tag = 'input window, operand 7, single buffered']
    #allocation8 [shape = 'u8[98304]{0}', space=vmem, size = 0x18000, scoped, tag = 'input window, operand 8, single buffered']
    #allocation9 [shape = 's32[1]{0}', space=sflag, size = 0x4, scoped, tag = 'scoped memory for tpu_custom_call.1']
    #allocation10 [shape = 'u8[1536]{0}', space=vmem, size = 0x800, scoped, tag = 'input window, operand 9, single buffered']
    #allocation11 [shape = 'u8[98304]{0}', space=vmem, size = 0x18000, scoped, tag = 'input window, operand 10, single buffered']
    #allocation12 [shape = 's32[1]{0}', space=sflag, size = 0x4, scoped, tag = 'scoped memory for tpu_custom_call.1']
    #allocation13 [shape = 'u8[98304]{0}', space=vmem, size = 0x18000, scoped, tag = 'input window, operand 11, single buffered']
    #allocation14 [shape = 'u8[1536]{0}', space=vmem, size = 0x800, scoped, tag = 'input window, operand 12, single buffered']
    #allocation15 [shape = 's32[1]{0}', space=sflag, size = 0x4, scoped, tag = 'scoped memory for tpu_custom_call.1']
    #allocation16 [shape = 'u8[1536]{0}', space=vmem, size = 0x800, scoped, tag = 'input window, operand 13, single buffered']
    #allocation17 [shape = 'u8[98304]{0}', space=vmem, size = 0x18000, scoped, tag = 'input window, operand 14, single buffered']
    #allocation18 [shape = 's32[1]{0}', space=sflag, size = 0x4, scoped, tag = 'scoped memory for tpu_custom_call.1']
    #allocation19 [shape = 'u8[1536]{0}', space=vmem, size = 0x800, scoped, tag = 'input window, operand 15, single buffered']
    #allocation20 [shape = 'u8[4096]{0}', space=vmem, size = 0x1000, scoped, tag = 'output window, operand 0, single buffered']
    %23 = vsyncpa [#allocation3], 0
    %24 = vsyncpa [#allocation6], 0
    %25 = vsyncpa [#allocation9], 0
    %26 = vsyncpa [#allocation12], 0
    %27 = vsyncpa [#allocation15], 0
    %28 = vsyncpa [#allocation18], 0
    %29 = vsyncpa [#allocation4], 0
    // Predicated region
    $region2: #{tpu_custom_call.1} parent=1 // pred_check
      _
    $region3: #{tpu_custom_call.1} parent=1 // pred_check_branch
      %31 = sbr.rel (0) target = $region5
    $region4: #{tpu_custom_call.1} parent=1 // pred_region
      %s33 = ssub.s32 256, 256
      %34 = vsyncadd [#allocation3], %s33
      %s35 = sshll.u32 [#allocation2], 4
      %s36 = int_to_ptr.vmem [resolvable:$true] %s35
      %41 = dma.hbm_to_vmem [thread:$0]  %s0, 256, %s36, [#allocation3], 128, 128, 8
    $region5: #{tpu_custom_call.1} parent=1 // pred_fallthru
      _
    // Predicated region
    $region6: #{tpu_custom_call.1} parent=1 // pred_check
      _
    $region7: #{tpu_custom_call.1} parent=1 // pred_check_branch
      %43 = sbr.rel (0) target = $region9
    $region8: #{tpu_custom_call.1} parent=1 // pred_region
      _
    $region9: #{tpu_custom_call.1} parent=1 // pred_fallthru
      _
    // Predicated region
    $region10: #{tpu_custom_call.1} parent=1 // pred_check
      _
    $region11: #{tpu_custom_call.1} parent=1 // pred_check_branch
      %45 = sbr.rel (0) target = $region13
    $region12: #{tpu_custom_call.1} parent=1 // pred_region
      _
    $region13: #{tpu_custom_call.1} parent=1 // pred_fallthru
      _
    // Predicated region
    $region14: #{tpu_custom_call.1} parent=1 // pred_check
      _
    $region15: #{tpu_custom_call.1} parent=1 // pred_check_branch
      %47 = sbr.rel (0) target = $region17
    $region16: #{tpu_custom_call.1} parent=1 // pred_region
      %s49 = ssub.s32 256, 256
      %50 = vsyncadd [#allocation6], %s49
      %s51 = sshll.u32 [#allocation5], 4
      %s52 = int_to_ptr.vmem [resolvable:$true] %s51
      %57 = dma.hbm_to_vmem [thread:$0]  %s3, 256, %s52, [#allocation6], 64, 64, 4
    $region17: #{tpu_custom_call.1} parent=1 // pred_fallthru
      _
    // Predicated region
    $region18: #{tpu_custom_call.1} parent=1 // pred_check
      _
    $region19: #{tpu_custom_call.1} parent=1 // pred_check_branch
      %59 = sbr.rel (0) target = $region21
    $region20: #{tpu_custom_call.1} parent=1 // pred_region
      _
    $region21: #{tpu_custom_call.1} parent=1 // pred_fallthru
      _
    // Predicated region
    $region22: #{tpu_custom_call.1} parent=1 // pred_check
      _
    $region23: #{tpu_custom_call.1} parent=1 // pred_check_branch
      %61 = sbr.rel (0) target = $region25
    $region24: #{tpu_custom_call.1} parent=1 // pred_region
      _
    $region25: #{tpu_custom_call.1} parent=1 // pred_fallthru
      _
    // Predicated region
    $region26: #{tpu_custom_call.1} parent=1 // pred_check
      _
    $region27: #{tpu_custom_call.1} parent=1 // pred_check_branch
      %63 = sbr.rel (0) target = $region29
    $region28: #{tpu_custom_call.1} parent=1 // pred_region
      _
    $region29: #{tpu_custom_call.1} parent=1 // pred_fallthru
      _
    // Predicated region
    $region30: #{tpu_custom_call.1} parent=1 // pred_check
      _
    $region31: #{tpu_custom_call.1} parent=1 // pred_check_branch
      %65 = sbr.rel (0) target = $region33
    $region32: #{tpu_custom_call.1} parent=1 // pred_region
      %s67 = ssub.s32 9216, 9216
      %68 = vsyncadd [#allocation6], %s67
      %s69 = sshll.u32 [#allocation7], 4
      %s70 = int_to_ptr.vmem [resolvable:$true] %s69
      %75 = dma.hbm_to_vmem [thread:$0]  %s7, 9216, %s70, [#allocation6], 192, 192, 12
    $region33: #{tpu_custom_call.1} parent=1 // pred_fallthru
      _
    // Predicated region
    $region34: #{tpu_custom_call.1} parent=1 // pred_check
      _
    $region35: #{tpu_custom_call.1} parent=1 // pred_check_branch
      %77 = sbr.rel (0) target = $region37
    $region36: #{tpu_custom_call.1} parent=1 // pred_region
      %s79 = ssub.s32 3072, 3072
      %80 = vsyncadd [#allocation9], %s79
      %s81 = sshll.u32 [#allocation8], 4
      %s82 = int_to_ptr.vmem [resolvable:$true] %s81
      %87 = dma.hbm_to_vmem [thread:$0]  %s8, 3072, %s82, [#allocation9], 64, 64, 4
    $region37: #{tpu_custom_call.1} parent=1 // pred_fallthru
      _
    // Predicated region
    $region38: #{tpu_custom_call.1} parent=1 // pred_check
      _
    $region39: #{tpu_custom_call.1} parent=1 // pred_check_branch
      %89 = sbr.rel (0) target = $region41
    $region40: #{tpu_custom_call.1} parent=1 // pred_region
      %s91 = ssub.s32 48, 48
      %92 = vsyncadd [#allocation9], %s91
      %s93 = sshll.u32 [#allocation10], 4
      %s94 = int_to_ptr.vmem [resolvable:$true] %s93
      %99 = dma.hbm_to_vmem [thread:$0]  %s9, 48, %s94, [#allocation9], 16, 16, 1
    $region41: #{tpu_custom_call.1} parent=1 // pred_fallthru
      _
    // Predicated region
    $region42: #{tpu_custom_call.1} parent=1 // pred_check
      _
    $region43: #{tpu_custom_call.1} parent=1 // pred_check_branch
      %101 = sbr.rel (0) target = $region45
    $region44: #{tpu_custom_call.1} parent=1 // pred_region
      %s103 = ssub.s32 3072, 3072
      %104 = vsyncadd [#allocation12], %s103
      %s105 = sshll.u32 [#allocation11], 4
      %s106 = int_to_ptr.vmem [resolvable:$true] %s105
      %111 = dma.hbm_to_vmem [thread:$0]  %s10, 3072, %s106, [#allocation12], 64, 64, 4
    $region45: #{tpu_custom_call.1} parent=1 // pred_fallthru
      _
    // Predicated region
    $region46: #{tpu_custom_call.1} parent=1 // pred_check
      _
    $region47: #{tpu_custom_call.1} parent=1 // pred_check_branch
      %113 = sbr.rel (0) target = $region49
    $region48: #{tpu_custom_call.1} parent=1 // pred_region
      %s115 = ssub.s32 3072, 3072
      %116 = vsyncadd [#allocation12], %s115
      %s117 = sshll.u32 [#allocation13], 4
      %s118 = int_to_ptr.vmem [resolvable:$true] %s117
      %123 = dma.hbm_to_vmem [thread:$0]  %s11, 3072, %s118, [#allocation12], 64, 64, 4
    $region49: #{tpu_custom_call.1} parent=1 // pred_fallthru
      _
    // Predicated region
    $region50: #{tpu_custom_call.1} parent=1 // pred_check
      _
    $region51: #{tpu_custom_call.1} parent=1 // pred_check_branch
      %125 = sbr.rel (0) target = $region53
    $region52: #{tpu_custom_call.1} parent=1 // pred_region
      %s127 = ssub.s32 48, 48
      %128 = vsyncadd [#allocation15], %s127
      %s129 = sshll.u32 [#allocation14], 4
      %s130 = int_to_ptr.vmem [resolvable:$true] %s129
      %135 = dma.hbm_to_vmem [thread:$0]  %s12, 48, %s130, [#allocation15], 16, 16, 1
    $region53: #{tpu_custom_call.1} parent=1 // pred_fallthru
      _
    // Predicated region
    $region54: #{tpu_custom_call.1} parent=1 // pred_check
      _
    $region55: #{tpu_custom_call.1} parent=1 // pred_check_branch
      %137 = sbr.rel (0) target = $region57
    $region56: #{tpu_custom_call.1} parent=1 // pred_region
      %s139 = ssub.s32 48, 48
      %140 = vsyncadd [#allocation15], %s139
      %s141 = sshll.u32 [#allocation16], 4
      %s142 = int_to_ptr.vmem [resolvable:$true] %s141
      %147 = dma.hbm_to_vmem [thread:$0]  %s13, 48, %s142, [#allocation15], 16, 16, 1
    $region57: #{tpu_custom_call.1} parent=1 // pred_fallthru
      _
    // Predicated region
    $region58: #{tpu_custom_call.1} parent=1 // pred_check
      _
    $region59: #{tpu_custom_call.1} parent=1 // pred_check_branch
      %149 = sbr.rel (0) target = $region61
    $region60: #{tpu_custom_call.1} parent=1 // pred_region
      %s151 = ssub.s32 3072, 3072
      %152 = vsyncadd [#allocation18], %s151
      %s153 = sshll.u32 [#allocation17], 4
      %s154 = int_to_ptr.vmem [resolvable:$true] %s153
      %159 = dma.hbm_to_vmem [thread:$0]  %s14, 3072, %s154, [#allocation18], 64, 64, 4
    $region61: #{tpu_custom_call.1} parent=1 // pred_fallthru
      _
    // Predicated region
    $region62: #{tpu_custom_call.1} parent=1 // pred_check
      _
    $region63: #{tpu_custom_call.1} parent=1 // pred_check_branch
      %161 = sbr.rel (0) target = $region65
    $region64: #{tpu_custom_call.1} parent=1 // pred_region
      %s163 = ssub.s32 48, 48
      %164 = vsyncadd [#allocation18], %s163
      %s165 = sshll.u32 [#allocation19], 4
      %s166 = int_to_ptr.vmem [resolvable:$true] %s165
      %171 = dma.hbm_to_vmem [thread:$0]  %s15, 48, %s166, [#allocation18], 16, 16, 1
    $region65: #{tpu_custom_call.1} parent=1 // pred_fallthru
      _
    // Predicated region
    $region66: #{tpu_custom_call.1} parent=1 // pred_check
      _
    $region67: #{tpu_custom_call.1} parent=1 // pred_check_branch
      %173 = sbr.rel (0) target = $region69
    $region68: #{tpu_custom_call.1} parent=1 // pred_region
      _
    $region69: #{tpu_custom_call.1} parent=1 // pred_fallthru
      _
    // Predicated region
    $region70: #{tpu_custom_call.1} parent=1 // pred_check
      _
    $region71: #{tpu_custom_call.1} parent=1 // pred_check_branch
      %175 = sbr.rel (0) target = $region73
    $region72: #{tpu_custom_call.1} parent=1 // pred_region
      _
    $region73: #{tpu_custom_call.1} parent=1 // pred_fallthru
      _
    // Predicated region
    $region74: #{tpu_custom_call.1} parent=1 // pred_check
      _
    $region75: #{tpu_custom_call.1} parent=1 // pred_check_branch
      %177 = sbr.rel (0) target = $region77
    $region76: #{tpu_custom_call.1} parent=1 // pred_region
      %178 = dma.done [#allocation3], 256
    $region77: #{tpu_custom_call.1} parent=1 // pred_fallthru
      _
    // Predicated region
    $region78: #{tpu_custom_call.1} parent=1 // pred_check
      _
    $region79: #{tpu_custom_call.1} parent=1 // pred_check_branch
      %180 = sbr.rel (0) target = $region81
    $region80: #{tpu_custom_call.1} parent=1 // pred_region
      %181 = dma.done [#allocation6], 256
    $region81: #{tpu_custom_call.1} parent=1 // pred_fallthru
      _
    // Predicated region
    $region82: #{tpu_custom_call.1} parent=1 // pred_check
      _
    $region83: #{tpu_custom_call.1} parent=1 // pred_check_branch
      %183 = sbr.rel (0) target = $region85
    $region84: #{tpu_custom_call.1} parent=1 // pred_region
      %184 = dma.done [#allocation6], 9216
    $region85: #{tpu_custom_call.1} parent=1 // pred_fallthru
      _
    // Predicated region
    $region86: #{tpu_custom_call.1} parent=1 // pred_check
      _
    $region87: #{tpu_custom_call.1} parent=1 // pred_check_branch
      %186 = sbr.rel (0) target = $region89
    $region88: #{tpu_custom_call.1} parent=1 // pred_region
      %187 = dma.done [#allocation9], 3072
    $region89: #{tpu_custom_call.1} parent=1 // pred_fallthru
      _
    // Predicated region
    $region90: #{tpu_custom_call.1} parent=1 // pred_check
      _
    $region91: #{tpu_custom_call.1} parent=1 // pred_check_branch
      %189 = sbr.rel (0) target = $region93
    $region92: #{tpu_custom_call.1} parent=1 // pred_region
      %190 = dma.done [#allocation9], 48
    $region93: #{tpu_custom_call.1} parent=1 // pred_fallthru
      _
    // Predicated region
    $region94: #{tpu_custom_call.1} parent=1 // pred_check
      _
    $region95: #{tpu_custom_call.1} parent=1 // pred_check_branch
      %192 = sbr.rel (0) target = $region97
    $region96: #{tpu_custom_call.1} parent=1 // pred_region
      %193 = dma.done [#allocation12], 3072
    $region97: #{tpu_custom_call.1} parent=1 // pred_fallthru
      _
    // Predicated region
    $region98: #{tpu_custom_call.1} parent=1 // pred_check
      _
    $region99: #{tpu_custom_call.1} parent=1 // pred_check_branch
      %195 = sbr.rel (0) target = $region101
    $region100: #{tpu_custom_call.1} parent=1 // pred_region
      %196 = dma.done [#allocation12], 3072
    $region101: #{tpu_custom_call.1} parent=1 // pred_fallthru
      _
    // Predicated region
    $region102: #{tpu_custom_call.1} parent=1 // pred_check
      _
    $region103: #{tpu_custom_call.1} parent=1 // pred_check_branch
      %198 = sbr.rel (0) target = $region105
    $region104: #{tpu_custom_call.1} parent=1 // pred_region
      %199 = dma.done [#allocation15], 48
    $region105: #{tpu_custom_call.1} parent=1 // pred_fallthru
      _
    // Predicated region
    $region106: #{tpu_custom_call.1} parent=1 // pred_check
      _
    $region107: #{tpu_custom_call.1} parent=1 // pred_check_branch
      %201 = sbr.rel (0) target = $region109
    $region108: #{tpu_custom_call.1} parent=1 // pred_region
      %202 = dma.done [#allocation15], 48
    $region109: #{tpu_custom_call.1} parent=1 // pred_fallthru
      _
    // Predicated region
    $region110: #{tpu_custom_call.1} parent=1 // pred_check
      _
    $region111: #{tpu_custom_call.1} parent=1 // pred_check_branch
      %204 = sbr.rel (0) target = $region113
    $region112: #{tpu_custom_call.1} parent=1 // pred_region
      %205 = dma.done [#allocation18], 3072
    $region113: #{tpu_custom_call.1} parent=1 // pred_fallthru
      _
    // Predicated region
    $region114: #{tpu_custom_call.1} parent=1 // pred_check
      _
    $region115: #{tpu_custom_call.1} parent=1 // pred_check_branch
      %207 = sbr.rel (0) target = $region117
    $region116: #{tpu_custom_call.1} parent=1 // pred_region
      %208 = dma.done [#allocation18], 48
    $region117: #{tpu_custom_call.1} parent=1 // pred_fallthru
      _
    %v210 = vld [vmem:[%s2] sm:$0xf]
    %v211 = vld [vmem:[%s2 + $0x4] sm:$0xf]
    %v212 = vld [vmem:[%s2 + $0x8] sm:$0xf]
    %v213 = vld [vmem:[%s2 + $0xc] sm:$0xf]
    %v214 = vld [vmem:[%s2 + $0x10] sm:$0xf]
    %v215 = vld [vmem:[%s2 + $0x14] sm:$0xf]
    %v216 = vld [vmem:[%s2 + $0x18] sm:$0xf]
    %v217 = vld [vmem:[%s2 + $0x1c] sm:$0xf]
    %v218 = vld [vmem:[#allocation5] sm:$0xf]
    %v219 = vld [vmem:[#allocation5 + $0x4] sm:$0xf]
    %v220 = vld [vmem:[#allocation5 + $0x8] sm:$0xf]
    %v221 = vld [vmem:[#allocation5 + $0xc] sm:$0xf]
    %v222 = vld [vmem:[%s4] sm:$0xf]
    %v223 = vld [vmem:[%s4 + $0x4] sm:$0xf]
    %v224 = vld [vmem:[#allocation2] sm:$0xff]
    %v225 = vld [vmem:[#allocation2 + $0x8] sm:$0xff]
    %v226 = vld [vmem:[%s1] sm:$0xff]
    %v227 = vld [vmem:[%s1 + $0x8] sm:$0xff]
    %v228 = vld [vmem:[%s1 + $0x10] sm:$0xff]
    %v229 = vld [vmem:[%s1 + $0x18] sm:$0xff]
    %v230 = vpack.c.bf16 %v225, %v224
    %v231 = vpack.c.bf16 %v227, %v226
    %v232 = vpack.c.bf16 %v229, %v228
    %v233 = vld [vmem:[#allocation7] sm:$0xff]
    %v234 = vld [vmem:[#allocation7 + $0x8] sm:$0xf]
    %v235 = vld [vmem:[#allocation7 + $0xc] sm:$0xff]
    %v236 = vld [vmem:[#allocation7 + $0x14] sm:$0xf]
    %v237 = vld [vmem:[#allocation7 + $0x18] sm:$0xff]
    %v238 = vld [vmem:[#allocation7 + $0x20] sm:$0xf]
    %v239 = vld [vmem:[#allocation7 + $0x24] sm:$0xff]
    %v240 = vld [vmem:[#allocation7 + $0x2c] sm:$0xf]
    %v241 = vld [vmem:[#allocation7 + $0x30] sm:$0xff]
    %v242 = vld [vmem:[#allocation7 + $0x38] sm:$0xf]
    %v243 = vld [vmem:[#allocation7 + $0x3c] sm:$0xff]
    %v244 = vld [vmem:[#allocation7 + $0x44] sm:$0xf]
    %v245 = vld [vmem:[#allocation7 + $0x48] sm:$0xff]
    %v246 = vld [vmem:[#allocation7 + $0x50] sm:$0xf]
    %v247 = vld [vmem:[#allocation7 + $0x54] sm:$0xff]
    %v248 = vld [vmem:[#allocation7 + $0x5c] sm:$0xf]
    %v249 = vld [vmem:[#allocation7 + $0x60] sm:$0xff]
    %v250 = vld [vmem:[#allocation7 + $0x68] sm:$0xf]
    %v251 = vld [vmem:[#allocation7 + $0x6c] sm:$0xff]
    %v252 = vld [vmem:[#allocation7 + $0x74] sm:$0xf]
    %v253 = vld [vmem:[#allocation7 + $0x78] sm:$0xff]
    %v254 = vld [vmem:[#allocation7 + $0x80] sm:$0xf]
    %v255 = vld [vmem:[#allocation7 + $0x84] sm:$0xff]
    %v256 = vld [vmem:[#allocation7 + $0x8c] sm:$0xf]
    %v257 = vld [vmem:[#allocation7 + $0x90] sm:$0xff]
    %v258 = vld [vmem:[#allocation7 + $0x98] sm:$0xf]
    %v259 = vld [vmem:[#allocation7 + $0x9c] sm:$0xff]
    %v260 = vld [vmem:[#allocation7 + $0xa4] sm:$0xf]
    %v261 = vld [vmem:[#allocation7 + $0xa8] sm:$0xff]
    %v262 = vld [vmem:[#allocation7 + $0xb0] sm:$0xf]
    %v263 = vld [vmem:[#allocation7 + $0xb4] sm:$0xff]
    %v264 = vld [vmem:[#allocation7 + $0xbc] sm:$0xf]
    %v297 = vunpack.c.l.b16 %v233
    %v298 = vunpack.c.h.b16 %v233
    %v299 = vunpack.c.l.b16 %v234
    %v300 = vunpack.c.l.b16 %v235
    %v301 = vunpack.c.h.b16 %v235
    %v302 = vunpack.c.l.b16 %v236
    %v303 = vunpack.c.l.b16 %v237
    %v304 = vunpack.c.h.b16 %v237
    %v305 = vunpack.c.l.b16 %v238
    %v306 = vunpack.c.l.b16 %v239
    %v307 = vunpack.c.h.b16 %v239
    %v308 = vunpack.c.l.b16 %v240
    %v309 = vunpack.c.l.b16 %v241
    %v310 = vunpack.c.h.b16 %v241
    %v311 = vunpack.c.l.b16 %v242
    %v312 = vunpack.c.l.b16 %v243
    %v313 = vunpack.c.h.b16 %v243
    %v314 = vunpack.c.l.b16 %v244
    %v315 = vunpack.c.l.b16 %v245
    %v316 = vunpack.c.h.b16 %v245
    %v317 = vunpack.c.l.b16 %v246
    %v318 = vunpack.c.l.b16 %v247
    %v319 = vunpack.c.h.b16 %v247
    %v320 = vunpack.c.l.b16 %v248
    %v321 = vunpack.c.l.b16 %v249
    %v322 = vunpack.c.h.b16 %v249
    %v323 = vunpack.c.l.b16 %v250
    %v324 = vunpack.c.l.b16 %v251
    %v325 = vunpack.c.h.b16 %v251
    %v326 = vunpack.c.l.b16 %v252
    %v327 = vunpack.c.l.b16 %v253
    %v328 = vunpack.c.h.b16 %v253
    %v329 = vunpack.c.l.b16 %v254
    %v330 = vunpack.c.l.b16 %v255
    %v331 = vunpack.c.h.b16 %v255
    %v332 = vunpack.c.l.b16 %v256
    %v333 = vunpack.c.l.b16 %v257
    %v334 = vunpack.c.h.b16 %v257
    %v335 = vunpack.c.l.b16 %v258
    %v336 = vunpack.c.l.b16 %v259
    %v337 = vunpack.c.h.b16 %v259
    %v338 = vunpack.c.l.b16 %v260
    %v339 = vunpack.c.l.b16 %v261
    %v340 = vunpack.c.h.b16 %v261
    %v341 = vunpack.c.l.b16 %v262
    %v342 = vunpack.c.l.b16 %v263
    %v343 = vunpack.c.h.b16 %v263
    %v344 = vunpack.c.l.b16 %v264
    %v345 = vpack.c.b16 %v300, %v297
    %v346 = vpack.c.b16 %v301, %v298
    %v347 = vpack.c.b16 %v302, %v299
    %v348 = vpack.c.b16 %v306, %v303
    %v349 = vpack.c.b16 %v307, %v304
    %v350 = vpack.c.b16 %v308, %v305
    %v351 = vpack.c.b16 %v312, %v309
    %v352 = vpack.c.b16 %v313, %v310
    %v353 = vpack.c.b16 %v314, %v311
    %v354 = vpack.c.b16 %v318, %v315
    %v355 = vpack.c.b16 %v319, %v316
    %v356 = vpack.c.b16 %v320, %v317
    %v357 = vpack.c.b16 %v324, %v321
    %v358 = vpack.c.b16 %v325, %v322
    %v359 = vpack.c.b16 %v326, %v323
    %v360 = vpack.c.b16 %v330, %v327
    %v361 = vpack.c.b16 %v331, %v328
    %v362 = vpack.c.b16 %v332, %v329
    %v363 = vpack.c.b16 %v336, %v333
    %v364 = vpack.c.b16 %v337, %v334
    %v365 = vpack.c.b16 %v338, %v335
    %v366 = vpack.c.b16 %v342, %v339
    %v367 = vpack.c.b16 %v343, %v340
    %v368 = vpack.c.b16 %v344, %v341
    %393 = vmatprep.subr.bf16.mxu0 %v346
    %394 = vmatpush1.bf16.msra.mxu0 %v345
    %395 = vmatprep.subr.bf16.mxu0 %v349
    %396 = vmatpush1.bf16.msra.mxu0 %v348
    %397 = vmatprep.subr.bf16.mxu0 %v352
    %398 = vmatpush1.bf16.msra.mxu0 %v351
    %399 = vmatprep.subr.bf16.mxu0 %v355
    %400 = vmatpush1.bf16.msra.mxu0 %v354
    %401 = vmatprep.subr.bf16.mxu0 %v358
    %402 = vmatpush1.bf16.msra.mxu0 %v357
    %403 = vmatprep.subr.bf16.mxu0 %v361
    %404 = vmatpush1.bf16.msra.mxu0 %v360
    %405 = vmatprep.subr.bf16.mxu0 %v364
    %406 = vmatpush1.bf16.msra.mxu0 %v363
    %407 = vmatprep.subr.bf16.mxu0 %v367
    %408 = vmatpush1.bf16.msra.mxu0 %v366
    %409 = vmatprep.subr.bf16.mxu0 0
    %410 = vmatpush1.bf16.msra.mxu0 0
    %411 = vmatprep.subr.bf16.mxu0 0
    %412 = vmatpush1.bf16.msra.mxu0 0
    %413 = vmatprep.subr.bf16.mxu0 0
    %414 = vmatpush1.bf16.msra.mxu0 0
    %415 = vmatprep.subr.bf16.mxu0 0
    %416 = vmatpush1.bf16.msra.mxu0 0
    %417 = vmatprep.subr.bf16.mxu0 0
    %418 = vmatpush1.bf16.msra.mxu0 0
    %419 = vmatprep.subr.bf16.mxu0 0
    %420 = vmatpush1.bf16.msra.mxu0 0
    %421 = vmatprep.subr.bf16.mxu0 0
    %422 = vmatpush1.bf16.msra.mxu0 0
    %423 = vmatprep.subr.bf16.mxu0 0
    %424 = vmatpush1.bf16.msra.mxu0 0
    %425 = vmatprep.mubr.bf16.mxu0 0
    %426 = vmatmul.mubr.bf16.gmra.mrb[0].mxu0 %v230
    %v427 = vpop.f32.mrb[0].mxu0
    %v428 = vadd.f32 0.0, %v427
    %v429 = vpop.f32.mrb[0].mxu0
    %v430 = vadd.f32 0.0, %v429
    %v431 = vpop.f32.mrb[0].mxu0
    %v432 = vadd.f32 0.0, %v431
    %v433 = vpop.f32.mrb[0].mxu0
    %v434 = vadd.f32 0.0, %v433
    %435 = vdwg.mxu0
    %436 = vmatprep.subr.bf16.mxu0 0
    %437 = vmatpush1.bf16.msra.mxu0 %v347
    %438 = vmatprep.subr.bf16.mxu0 0
    %439 = vmatpush1.bf16.msra.mxu0 %v350
    %440 = vmatprep.subr.bf16.mxu0 0
    %441 = vmatpush1.bf16.msra.mxu0 %v353
    %442 = vmatprep.subr.bf16.mxu0 0
    %443 = vmatpush1.bf16.msra.mxu0 %v356
    %444 = vmatprep.subr.bf16.mxu0 0
    %445 = vmatpush1.bf16.msra.mxu0 %v359
    %446 = vmatprep.subr.bf16.mxu0 0
    %447 = vmatpush1.bf16.msra.mxu0 %v362
    %448 = vmatprep.subr.bf16.mxu0 0
    %449 = vmatpush1.bf16.msra.mxu0 %v365
    %450 = vmatprep.subr.bf16.mxu0 0
    %451 = vmatpush1.bf16.msra.mxu0 %v368
    %452 = vmatprep.subr.bf16.mxu0 0
    %453 = vmatpush1.bf16.msra.mxu0 0
    %454 = vmatprep.subr.bf16.mxu0 0
    %455 = vmatpush1.bf16.msra.mxu0 0
    %456 = vmatprep.subr.bf16.mxu0 0
    %457 = vmatpush1.bf16.msra.mxu0 0
    %458 = vmatprep.subr.bf16.mxu0 0
    %459 = vmatpush1.bf16.msra.mxu0 0
    %460 = vmatprep.subr.bf16.mxu0 0
    %461 = vmatpush1.bf16.msra.mxu0 0
    %462 = vmatprep.subr.bf16.mxu0 0
    %463 = vmatpush1.bf16.msra.mxu0 0
    %464 = vmatprep.subr.bf16.mxu0 0
    %465 = vmatpush1.bf16.msra.mxu0 0
    %466 = vmatprep.subr.bf16.mxu0 0
    %467 = vmatpush1.bf16.msra.mxu0 0
    %468 = vmatprep.mubr.bf16.mxu0 0
    %469 = vmatmul.mubr.bf16.gmra.mrb[0].mxu0 %v230
    %v470 = vpop.f32.mrb[0].mxu0
    %v471 = vadd.f32 0.0, %v470
    %v472 = vpop.f32.mrb[0].mxu0
    %v473 = vpop.f32.mrb[0].mxu0
    %v474 = vadd.f32 0.0, %v473
    %v475 = vpop.f32.mrb[0].mxu0
    %476 = vdwg.mxu0
    %v477 = vpack.c.bf16 %v432, %v428
    %v478 = vpack.c.bf16 %v434, %v430
    %v487 = vunpack.c.l.b16 %v210
    %v488 = vunpack.c.l.b16 %v211
    %v489 = vunpack.c.l.b16 %v212
    %v490 = vunpack.c.l.b16 %v213
    %v491 = vunpack.c.l.b16 %v214
    %v492 = vunpack.c.l.b16 %v215
    %v493 = vunpack.c.l.b16 %v216
    %v494 = vunpack.c.l.b16 %v217
    %v495 = vpack.c.b16 %v488, %v487
    %v496 = vpack.c.b16 %v490, %v489
    %v497 = vpack.c.b16 %v492, %v491
    %v498 = vpack.c.b16 %v494, %v493
    %vm499 = vcmask 130048
    %v501 = vsel %vm499, %v495, 0
    %v504 = vsel %vm499, %v496, 0
    %v507 = vsel %vm499, %v497, 0
    %v510 = vsel %vm499, %v498, 0
    %512 = vmatprep.subr.bf16.mxu0 %v478
    %513 = vmatpush1.bf16.msra.mxu0 %v477
    %514 = vmatprep.subr.bf16.mxu0 0
    %515 = vmatpush1.bf16.msra.mxu0 0
    %516 = vmatprep.subr.bf16.mxu0 0
    %517 = vmatpush1.bf16.msra.mxu0 0
    %518 = vmatprep.subr.bf16.mxu0 0
    %519 = vmatpush1.bf16.msra.mxu0 0
    %520 = vmatprep.subr.bf16.mxu0 0
    %521 = vmatpush1.bf16.msra.mxu0 0
    %522 = vmatprep.subr.bf16.mxu0 0
    %523 = vmatpush1.bf16.msra.mxu0 0
    %524 = vmatprep.subr.bf16.mxu0 0
    %525 = vmatpush1.bf16.msra.mxu0 0
    %526 = vmatprep.subr.bf16.mxu0 0
    %527 = vmatpush1.bf16.msra.mxu0 0
    %528 = vmatprep.subr.bf16.mxu0 0
    %529 = vmatpush1.bf16.msra.mxu0 0
    %530 = vmatprep.subr.bf16.mxu0 0
    %531 = vmatpush1.bf16.msra.mxu0 0
    %532 = vmatprep.subr.bf16.mxu0 0
    %533 = vmatpush1.bf16.msra.mxu0 0
    %534 = vmatprep.subr.bf16.mxu0 0
    %535 = vmatpush1.bf16.msra.mxu0 0
    %536 = vmatprep.subr.bf16.mxu0 0
    %537 = vmatpush1.bf16.msra.mxu0 0
    %538 = vmatprep.subr.bf16.mxu0 0
    %539 = vmatpush1.bf16.msra.mxu0 0
    %540 = vmatprep.subr.bf16.mxu0 0
    %541 = vmatpush1.bf16.msra.mxu0 0
    %542 = vmatprep.subr.bf16.mxu0 0
    %543 = vmatpush1.bf16.msra.mxu0 0
    %544 = vmatprep.mubr.bf16.mxu0 0
    %545 = vmatmul.mubr.bf16.gmra.mrb[0].mxu0 %v501
    %v546 = vpop.f32.mrb[0].mxu0
    %v547 = vadd.f32 0.0, %v546
    %v548 = vpop.f32.mrb[0].mxu0
    %v549 = vpop.f32.mrb[0].mxu0
    %v550 = vadd.f32 0.0, %v549
    %v551 = vpop.f32.mrb[0].mxu0
    %552 = vmatprep.mubr.bf16.mxu0 0
    %553 = vmatmul.mubr.bf16.gmra.mrb[0].mxu0 %v504
    %v554 = vpop.f32.mrb[0].mxu0
    %v555 = vadd.f32 0.0, %v554
    %v556 = vpop.f32.mrb[0].mxu0
    %v557 = vpop.f32.mrb[0].mxu0
    %v558 = vadd.f32 0.0, %v557
    %v559 = vpop.f32.mrb[0].mxu0
    %560 = vmatprep.mubr.bf16.mxu0 0
    %561 = vmatmul.mubr.bf16.gmra.mrb[0].mxu0 %v507
    %v562 = vpop.f32.mrb[0].mxu0
    %v563 = vpop.f32.mrb[0].mxu0
    %v564 = vadd.f32 0.0, %v563
    %v565 = vpop.f32.mrb[0].mxu0
    %v566 = vpop.f32.mrb[0].mxu0
    %v567 = vadd.f32 0.0, %v566
    %568 = vmatprep.mubr.bf16.mxu0 0
    %569 = vmatmul.mubr.bf16.gmra.mrb[0].mxu0 %v510
    %v570 = vpop.f32.mrb[0].mxu0
    %v571 = vpop.f32.mrb[0].mxu0
    %v572 = vadd.f32 0.0, %v571
    %v573 = vpop.f32.mrb[0].mxu0
    %v574 = vpop.f32.mrb[0].mxu0
    %v575 = vadd.f32 0.0, %v574
    %576 = vdwg.mxu0
    %v577 = vadd.f32 %v547, %v564
    %v578 = vadd.f32 %v550, %v567
    %v579 = vadd.f32 %v555, %v572
    %v580 = vadd.f32 %v558, %v575
    %v581 = vld [vmem:[#allocation8] sm:$0xf]
    %v582 = vld [vmem:[#allocation8 + $0x4] sm:$0xf]
    %v583 = vld [vmem:[#allocation8 + $0x8] sm:$0xf]
    %v584 = vld [vmem:[#allocation8 + $0xc] sm:$0xf]
    %v585 = vld [vmem:[#allocation8 + $0x10] sm:$0xf]
    %v586 = vld [vmem:[#allocation8 + $0x14] sm:$0xf]
    %v587 = vld [vmem:[#allocation8 + $0x18] sm:$0xf]
    %v588 = vld [vmem:[#allocation8 + $0x1c] sm:$0xf]
    %v589 = vld [vmem:[#allocation8 + $0x20] sm:$0xf]
    %v590 = vld [vmem:[#allocation8 + $0x24] sm:$0xf]
    %v591 = vld [vmem:[#allocation8 + $0x28] sm:$0xf]
    %v592 = vld [vmem:[#allocation8 + $0x2c] sm:$0xf]
    %v593 = vld [vmem:[#allocation8 + $0x30] sm:$0xf]
    %v594 = vld [vmem:[#allocation8 + $0x34] sm:$0xf]
    %v595 = vld [vmem:[#allocation8 + $0x38] sm:$0xf]
    %v596 = vld [vmem:[#allocation8 + $0x3c] sm:$0xf]
    %v613 = vunpack.c.l.b16 %v581
    %v614 = vunpack.c.l.b16 %v582
    %v615 = vunpack.c.l.b16 %v583
    %v616 = vunpack.c.l.b16 %v584
    %v617 = vunpack.c.l.b16 %v585
    %v618 = vunpack.c.l.b16 %v586
    %v619 = vunpack.c.l.b16 %v587
    %v620 = vunpack.c.l.b16 %v588
    %v621 = vunpack.c.l.b16 %v589
    %v622 = vunpack.c.l.b16 %v590
    %v623 = vunpack.c.l.b16 %v591
    %v624 = vunpack.c.l.b16 %v592
    %v625 = vunpack.c.l.b16 %v593
    %v626 = vunpack.c.l.b16 %v594
    %v627 = vunpack.c.l.b16 %v595
    %v628 = vunpack.c.l.b16 %v596
    %v629 = vpack.c.b16 %v614, %v613
    %v630 = vpack.c.b16 %v616, %v615
    %v631 = vpack.c.b16 %v618, %v617
    %v632 = vpack.c.b16 %v620, %v619
    %v633 = vpack.c.b16 %v622, %v621
    %v634 = vpack.c.b16 %v624, %v623
    %v635 = vpack.c.b16 %v626, %v625
    %v636 = vpack.c.b16 %v628, %v627
    %645 = vmatprep.subr.bf16.mxu0 0
    %646 = vmatpush1.bf16.msra.mxu0 %v629
    %647 = vmatprep.subr.bf16.mxu0 0
    %648 = vmatpush1.bf16.msra.mxu0 %v630
    %649 = vmatprep.subr.bf16.mxu0 0
    %650 = vmatpush1.bf16.msra.mxu0 %v631
    %651 = vmatprep.subr.bf16.mxu0 0
    %652 = vmatpush1.bf16.msra.mxu0 %v632
    %653 = vmatprep.subr.bf16.mxu0 0
    %654 = vmatpush1.bf16.msra.mxu0 %v633
    %655 = vmatprep.subr.bf16.mxu0 0
    %656 = vmatpush1.bf16.msra.mxu0 %v634
    %657 = vmatprep.subr.bf16.mxu0 0
    %658 = vmatpush1.bf16.msra.mxu0 %v635
    %659 = vmatprep.subr.bf16.mxu0 0
    %660 = vmatpush1.bf16.msra.mxu0 %v636
    %661 = vmatprep.subr.bf16.mxu0 0
    %662 = vmatpush1.bf16.msra.mxu0 0
    %663 = vmatprep.subr.bf16.mxu0 0
    %664 = vmatpush1.bf16.msra.mxu0 0
    %665 = vmatprep.subr.bf16.mxu0 0
    %666 = vmatpush1.bf16.msra.mxu0 0
    %667 = vmatprep.subr.bf16.mxu0 0
    %668 = vmatpush1.bf16.msra.mxu0 0
    %669 = vmatprep.subr.bf16.mxu0 0
    %670 = vmatpush1.bf16.msra.mxu0 0
    %671 = vmatprep.subr.bf16.mxu0 0
    %672 = vmatpush1.bf16.msra.mxu0 0
    %673 = vmatprep.subr.bf16.mxu0 0
    %674 = vmatpush1.bf16.msra.mxu0 0
    %675 = vmatprep.subr.bf16.mxu0 0
    %676 = vmatpush1.bf16.msra.mxu0 0
    %677 = vmatprep.mubr.bf16.mxu0 0
    %678 = vmatmul.mubr.bf16.gmra.mrb[0].mxu0 %v231
    %v679 = vpop.f32.mrb[0].mxu0
    %v680 = vadd.f32 0.0, %v679
    %v681 = vpop.f32.mrb[0].mxu0
    %v682 = vpop.f32.mrb[0].mxu0
    %v683 = vadd.f32 0.0, %v682
    %v684 = vpop.f32.mrb[0].mxu0
    %685 = vmatprep.mubr.bf16.mxu0 0
    %686 = vmatmul.mubr.bf16.gmra.mrb[0].mxu0 %v232
    %v687 = vpop.f32.mrb[0].mxu0
    %v688 = vadd.f32 0.0, %v687
    %v689 = vpop.f32.mrb[0].mxu0
    %v690 = vpop.f32.mrb[0].mxu0
    %v691 = vadd.f32 0.0, %v690
    %v692 = vpop.f32.mrb[0].mxu0
    %693 = vdwg.mxu0
    %v694 = vadd.f32 %v577, %v680
    %v695 = vadd.f32 %v578, %v683
    %v696 = vadd.f32 %v579, %v688
    %v697 = vadd.f32 %v580, %v691
    %v698 = vld [vmem:[#allocation10] sm:$0x1]
    %v700 = vlaneseq
    %v701 = vshrl.u32 %v700, 7
    %v702 = vsub.s32 0, %v701
    %v703 = vrot.slane %v698, %v702
    %v705 = vadd.f32 %v694, %v703
    %v706 = vadd.f32 %v695, %v703
    %v707 = vadd.f32 %v696, %v703
    %v708 = vadd.f32 %v697, %v703
    %v709 = vmax.f32 %v705, 0.0
    %v710 = vmax.f32 %v706, 0.0
    %v711 = vmax.f32 %v707, 0.0
    %v712 = vmax.f32 %v708, 0.0
    %v713 = vpack.c.bf16 %v710, %v709
    %v714 = vpack.c.bf16 %v712, %v711
    %v719 = vunpack.c.l.b16 %v218
    %v720 = vunpack.c.l.b16 %v219
    %v721 = vunpack.c.l.b16 %v220
    %v722 = vunpack.c.l.b16 %v221
    %v723 = vpack.c.b16 %v720, %v719
    %v724 = vpack.c.b16 %v722, %v721
    %vm725 = vcmask 261120
    %v727 = vsel %vm725, %v723, 0
    %v730 = vsel %vm725, %v724, 0
    %732 = vmatprep.subr.bf16.mxu0 0
    %733 = vmatpush1.bf16.msra.mxu0 %v713
    %734 = vmatprep.subr.bf16.mxu0 0
    %735 = vmatpush1.bf16.msra.mxu0 %v714
    %736 = vmatprep.subr.bf16.mxu0 0
    %737 = vmatpush1.bf16.msra.mxu0 0
    %738 = vmatprep.subr.bf16.mxu0 0
    %739 = vmatpush1.bf16.msra.mxu0 0
    %740 = vmatprep.subr.bf16.mxu0 0
    %741 = vmatpush1.bf16.msra.mxu0 0
    %742 = vmatprep.subr.bf16.mxu0 0
    %743 = vmatpush1.bf16.msra.mxu0 0
    %744 = vmatprep.subr.bf16.mxu0 0
    %745 = vmatpush1.bf16.msra.mxu0 0
    %746 = vmatprep.subr.bf16.mxu0 0
    %747 = vmatpush1.bf16.msra.mxu0 0
    %748 = vmatprep.subr.bf16.mxu0 0
    %749 = vmatpush1.bf16.msra.mxu0 0
    %750 = vmatprep.subr.bf16.mxu0 0
    %751 = vmatpush1.bf16.msra.mxu0 0
    %752 = vmatprep.subr.bf16.mxu0 0
    %753 = vmatpush1.bf16.msra.mxu0 0
    %754 = vmatprep.subr.bf16.mxu0 0
    %755 = vmatpush1.bf16.msra.mxu0 0
    %756 = vmatprep.subr.bf16.mxu0 0
    %757 = vmatpush1.bf16.msra.mxu0 0
    %758 = vmatprep.subr.bf16.mxu0 0
    %759 = vmatpush1.bf16.msra.mxu0 0
    %760 = vmatprep.subr.bf16.mxu0 0
    %761 = vmatpush1.bf16.msra.mxu0 0
    %762 = vmatprep.subr.bf16.mxu0 0
    %763 = vmatpush1.bf16.msra.mxu0 0
    %764 = vmatprep.mubr.bf16.mxu0 0
    %765 = vmatmul.mubr.bf16.gmra.mrb[0].mxu0 %v727
    %v766 = vpop.f32.mrb[0].mxu0
    %v767 = vadd.f32 0.0, %v766
    %v768 = vpop.f32.mrb[0].mxu0
    %v769 = vpop.f32.mrb[0].mxu0
    %v770 = vadd.f32 0.0, %v769
    %v771 = vpop.f32.mrb[0].mxu0
    %772 = vmatprep.mubr.bf16.mxu0 0
    %773 = vmatmul.mubr.bf16.gmra.mrb[0].mxu0 %v730
    %v774 = vpop.f32.mrb[0].mxu0
    %v775 = vadd.f32 0.0, %v774
    %v776 = vpop.f32.mrb[0].mxu0
    %v777 = vpop.f32.mrb[0].mxu0
    %v778 = vadd.f32 0.0, %v777
    %v779 = vpop.f32.mrb[0].mxu0
    %780 = vdwg.mxu0
    %v781 = vpack.c.bf16 %v770, %v767
    %v782 = vpack.c.bf16 %v778, %v775
    %v783 = vld [vmem:[#allocation11] sm:$0xf]
    %v784 = vld [vmem:[#allocation11 + $0x4] sm:$0xf]
    %v785 = vld [vmem:[#allocation11 + $0x8] sm:$0xf]
    %v786 = vld [vmem:[#allocation11 + $0xc] sm:$0xf]
    %v787 = vld [vmem:[#allocation11 + $0x10] sm:$0xf]
    %v788 = vld [vmem:[#allocation11 + $0x14] sm:$0xf]
    %v789 = vld [vmem:[#allocation11 + $0x18] sm:$0xf]
    %v790 = vld [vmem:[#allocation11 + $0x1c] sm:$0xf]
    %v791 = vld [vmem:[#allocation11 + $0x20] sm:$0xf]
    %v792 = vld [vmem:[#allocation11 + $0x24] sm:$0xf]
    %v793 = vld [vmem:[#allocation11 + $0x28] sm:$0xf]
    %v794 = vld [vmem:[#allocation11 + $0x2c] sm:$0xf]
    %v795 = vld [vmem:[#allocation11 + $0x30] sm:$0xf]
    %v796 = vld [vmem:[#allocation11 + $0x34] sm:$0xf]
    %v797 = vld [vmem:[#allocation11 + $0x38] sm:$0xf]
    %v798 = vld [vmem:[#allocation11 + $0x3c] sm:$0xf]
    %v799 = vld [vmem:[#allocation13] sm:$0xf]
    %v800 = vld [vmem:[#allocation13 + $0x4] sm:$0xf]
    %v801 = vld [vmem:[#allocation13 + $0x8] sm:$0xf]
    %v802 = vld [vmem:[#allocation13 + $0xc] sm:$0xf]
    %v803 = vld [vmem:[#allocation13 + $0x10] sm:$0xf]
    %v804 = vld [vmem:[#allocation13 + $0x14] sm:$0xf]
    %v805 = vld [vmem:[#allocation13 + $0x18] sm:$0xf]
    %v806 = vld [vmem:[#allocation13 + $0x1c] sm:$0xf]
    %v807 = vld [vmem:[#allocation13 + $0x20] sm:$0xf]
    %v808 = vld [vmem:[#allocation13 + $0x24] sm:$0xf]
    %v809 = vld [vmem:[#allocation13 + $0x28] sm:$0xf]
    %v810 = vld [vmem:[#allocation13 + $0x2c] sm:$0xf]
    %v811 = vld [vmem:[#allocation13 + $0x30] sm:$0xf]
    %v812 = vld [vmem:[#allocation13 + $0x34] sm:$0xf]
    %v813 = vld [vmem:[#allocation13 + $0x38] sm:$0xf]
    %v814 = vld [vmem:[#allocation13 + $0x3c] sm:$0xf]
    %v831 = vunpack.c.l.b16 %v799
    %v832 = vunpack.c.l.b16 %v800
    %v833 = vunpack.c.l.b16 %v801
    %v834 = vunpack.c.l.b16 %v802
    %v835 = vunpack.c.l.b16 %v803
    %v836 = vunpack.c.l.b16 %v804
    %v837 = vunpack.c.l.b16 %v805
    %v838 = vunpack.c.l.b16 %v806
    %v839 = vunpack.c.l.b16 %v807
    %v840 = vunpack.c.l.b16 %v808
    %v841 = vunpack.c.l.b16 %v809
    %v842 = vunpack.c.l.b16 %v810
    %v843 = vunpack.c.l.b16 %v811
    %v844 = vunpack.c.l.b16 %v812
    %v845 = vunpack.c.l.b16 %v813
    %v846 = vunpack.c.l.b16 %v814
    %v847 = vpack.c.b16 %v832, %v831
    %v848 = vpack.c.b16 %v834, %v833
    %v849 = vpack.c.b16 %v836, %v835
    %v850 = vpack.c.b16 %v838, %v837
    %v851 = vpack.c.b16 %v840, %v839
    %v852 = vpack.c.b16 %v842, %v841
    %v853 = vpack.c.b16 %v844, %v843
    %v854 = vpack.c.b16 %v846, %v845
    %863 = vmatprep.subr.bf16.mxu0 0
    %864 = vmatpush1.bf16.msra.mxu0 %v847
    %865 = vmatprep.subr.bf16.mxu0 0
    %866 = vmatpush1.bf16.msra.mxu0 %v848
    %867 = vmatprep.subr.bf16.mxu0 0
    %868 = vmatpush1.bf16.msra.mxu0 %v849
    %869 = vmatprep.subr.bf16.mxu0 0
    %870 = vmatpush1.bf16.msra.mxu0 %v850
    %871 = vmatprep.subr.bf16.mxu0 0
    %872 = vmatpush1.bf16.msra.mxu0 %v851
    %873 = vmatprep.subr.bf16.mxu0 0
    %874 = vmatpush1.bf16.msra.mxu0 %v852
    %875 = vmatprep.subr.bf16.mxu0 0
    %876 = vmatpush1.bf16.msra.mxu0 %v853
    %877 = vmatprep.subr.bf16.mxu0 0
    %878 = vmatpush1.bf16.msra.mxu0 %v854
    %879 = vmatprep.subr.bf16.mxu0 0
    %880 = vmatpush1.bf16.msra.mxu0 0
    %881 = vmatprep.subr.bf16.mxu0 0
    %882 = vmatpush1.bf16.msra.mxu0 0
    %883 = vmatprep.subr.bf16.mxu0 0
    %884 = vmatpush1.bf16.msra.mxu0 0
    %885 = vmatprep.subr.bf16.mxu0 0
    %886 = vmatpush1.bf16.msra.mxu0 0
    %887 = vmatprep.subr.bf16.mxu0 0
    %888 = vmatpush1.bf16.msra.mxu0 0
    %889 = vmatprep.subr.bf16.mxu0 0
    %890 = vmatpush1.bf16.msra.mxu0 0
    %891 = vmatprep.subr.bf16.mxu0 0
    %892 = vmatpush1.bf16.msra.mxu0 0
    %893 = vmatprep.subr.bf16.mxu0 0
    %894 = vmatpush1.bf16.msra.mxu0 0
    %895 = vmatprep.mubr.bf16.mxu0 0
    %896 = vmatmul.mubr.bf16.gmra.mrb[0].mxu0 %v713
    %v897 = vpop.f32.mrb[0].mxu0
    %v898 = vadd.f32 0.0, %v897
    %v899 = vpop.f32.mrb[0].mxu0
    %v900 = vpop.f32.mrb[0].mxu0
    %v901 = vadd.f32 0.0, %v900
    %v902 = vpop.f32.mrb[0].mxu0
    %903 = vmatprep.mubr.bf16.mxu0 0
    %904 = vmatmul.mubr.bf16.gmra.mrb[0].mxu0 %v714
    %v905 = vpop.f32.mrb[0].mxu0
    %v906 = vadd.f32 0.0, %v905
    %v907 = vpop.f32.mrb[0].mxu0
    %v908 = vpop.f32.mrb[0].mxu0
    %v909 = vadd.f32 0.0, %v908
    %v910 = vpop.f32.mrb[0].mxu0
    %911 = vdwg.mxu0
    %v928 = vunpack.c.l.b16 %v783
    %v929 = vunpack.c.l.b16 %v784
    %v930 = vunpack.c.l.b16 %v785
    %v931 = vunpack.c.l.b16 %v786
    %v932 = vunpack.c.l.b16 %v787
    %v933 = vunpack.c.l.b16 %v788
    %v934 = vunpack.c.l.b16 %v789
    %v935 = vunpack.c.l.b16 %v790
    %v936 = vunpack.c.l.b16 %v791
    %v937 = vunpack.c.l.b16 %v792
    %v938 = vunpack.c.l.b16 %v793
    %v939 = vunpack.c.l.b16 %v794
    %v940 = vunpack.c.l.b16 %v795
    %v941 = vunpack.c.l.b16 %v796
    %v942 = vunpack.c.l.b16 %v797
    %v943 = vunpack.c.l.b16 %v798
    %v944 = vpack.c.b16 %v929, %v928
    %v945 = vpack.c.b16 %v931, %v930
    %v946 = vpack.c.b16 %v933, %v932
    %v947 = vpack.c.b16 %v935, %v934
    %v948 = vpack.c.b16 %v937, %v936
    %v949 = vpack.c.b16 %v939, %v938
    %v950 = vpack.c.b16 %v941, %v940
    %v951 = vpack.c.b16 %v943, %v942
    %960 = vmatprep.subr.bf16.mxu0 0
    %961 = vmatpush1.bf16.msra.mxu0 %v944
    %962 = vmatprep.subr.bf16.mxu0 0
    %963 = vmatpush1.bf16.msra.mxu0 %v945
    %964 = vmatprep.subr.bf16.mxu0 0
    %965 = vmatpush1.bf16.msra.mxu0 %v946
    %966 = vmatprep.subr.bf16.mxu0 0
    %967 = vmatpush1.bf16.msra.mxu0 %v947
    %968 = vmatprep.subr.bf16.mxu0 0
    %969 = vmatpush1.bf16.msra.mxu0 %v948
    %970 = vmatprep.subr.bf16.mxu0 0
    %971 = vmatpush1.bf16.msra.mxu0 %v949
    %972 = vmatprep.subr.bf16.mxu0 0
    %973 = vmatpush1.bf16.msra.mxu0 %v950
    %974 = vmatprep.subr.bf16.mxu0 0
    %975 = vmatpush1.bf16.msra.mxu0 %v951
    %976 = vmatprep.subr.bf16.mxu0 0
    %977 = vmatpush1.bf16.msra.mxu0 0
    %978 = vmatprep.subr.bf16.mxu0 0
    %979 = vmatpush1.bf16.msra.mxu0 0
    %980 = vmatprep.subr.bf16.mxu0 0
    %981 = vmatpush1.bf16.msra.mxu0 0
    %982 = vmatprep.subr.bf16.mxu0 0
    %983 = vmatpush1.bf16.msra.mxu0 0
    %984 = vmatprep.subr.bf16.mxu0 0
    %985 = vmatpush1.bf16.msra.mxu0 0
    %986 = vmatprep.subr.bf16.mxu0 0
    %987 = vmatpush1.bf16.msra.mxu0 0
    %988 = vmatprep.subr.bf16.mxu0 0
    %989 = vmatpush1.bf16.msra.mxu0 0
    %990 = vmatprep.subr.bf16.mxu0 0
    %991 = vmatpush1.bf16.msra.mxu0 0
    %992 = vmatprep.mubr.bf16.mxu0 0
    %993 = vmatmul.mubr.bf16.gmra.mrb[0].mxu0 %v781
    %v994 = vpop.f32.mrb[0].mxu0
    %v995 = vadd.f32 %v898, %v994
    %v996 = vpop.f32.mrb[0].mxu0
    %v997 = vpop.f32.mrb[0].mxu0
    %v998 = vadd.f32 %v901, %v997
    %v999 = vpop.f32.mrb[0].mxu0
    %1000 = vmatprep.mubr.bf16.mxu0 0
    %1001 = vmatmul.mubr.bf16.gmra.mrb[0].mxu0 %v782
    %v1002 = vpop.f32.mrb[0].mxu0
    %v1003 = vadd.f32 %v906, %v1002
    %v1004 = vpop.f32.mrb[0].mxu0
    %v1005 = vpop.f32.mrb[0].mxu0
    %v1006 = vadd.f32 %v909, %v1005
    %v1007 = vpop.f32.mrb[0].mxu0
    %1008 = vdwg.mxu0
    %v1009 = vld [vmem:[#allocation14] sm:$0x1]
    %v1011 = vlaneseq
    %v1012 = vshrl.u32 %v1011, 7
    %v1013 = vsub.s32 0, %v1012
    %v1014 = vrot.slane %v1009, %v1013
    %v1016 = vadd.f32 %v995, %v1014
    %v1017 = vadd.f32 %v998, %v1014
    %v1018 = vadd.f32 %v1003, %v1014
    %v1019 = vadd.f32 %v1006, %v1014
    %v1020 = vmax.f32 %v1016, 0.0
    %v1021 = vmax.f32 %v1017, 0.0
    %v1022 = vmax.f32 %v1018, 0.0
    %v1023 = vmax.f32 %v1019, 0.0
    %v1024 = vld [vmem:[#allocation16] sm:$0x1]
    %v1026 = vlaneseq
    %v1027 = vshrl.u32 %v1026, 7
    %v1028 = vsub.s32 0, %v1027
    %v1029 = vrot.slane %v1024, %v1028
    %v1031 = vadd.f32 %v471, %v1029
    %v1032 = vadd.f32 %v474, %v1029
    %v1033 = vpack.c.bf16 %v1032, %v1031
    %v1034 = vpack.c.bf16 %v1021, %v1020
    %v1035 = vpack.c.bf16 %v1023, %v1022
    %v1036 = vld [vmem:[#allocation17] sm:$0xf]
    %v1037 = vld [vmem:[#allocation17 + $0x4] sm:$0xf]
    %v1038 = vld [vmem:[#allocation17 + $0x8] sm:$0xf]
    %v1039 = vld [vmem:[#allocation17 + $0xc] sm:$0xf]
    %v1040 = vld [vmem:[#allocation17 + $0x10] sm:$0xf]
    %v1041 = vld [vmem:[#allocation17 + $0x14] sm:$0xf]
    %v1042 = vld [vmem:[#allocation17 + $0x18] sm:$0xf]
    %v1043 = vld [vmem:[#allocation17 + $0x1c] sm:$0xf]
    %v1044 = vld [vmem:[#allocation17 + $0x20] sm:$0xf]
    %v1045 = vld [vmem:[#allocation17 + $0x24] sm:$0xf]
    %v1046 = vld [vmem:[#allocation17 + $0x28] sm:$0xf]
    %v1047 = vld [vmem:[#allocation17 + $0x2c] sm:$0xf]
    %v1048 = vld [vmem:[#allocation17 + $0x30] sm:$0xf]
    %v1049 = vld [vmem:[#allocation17 + $0x34] sm:$0xf]
    %v1050 = vld [vmem:[#allocation17 + $0x38] sm:$0xf]
    %v1051 = vld [vmem:[#allocation17 + $0x3c] sm:$0xf]
    %v1052 = vld [vmem:[#allocation19] sm:$0x1]
    %v1054 = vlaneseq
    %v1055 = vshrl.u32 %v1054, 7
    %v1056 = vsub.s32 0, %v1055
    %v1057 = vrot.slane %v1052, %v1056
    %v1075 = vunpack.c.l.b16 %v1036
    %v1076 = vunpack.c.l.b16 %v1037
    %v1077 = vunpack.c.l.b16 %v1038
    %v1078 = vunpack.c.l.b16 %v1039
    %v1079 = vunpack.c.l.b16 %v1040
    %v1080 = vunpack.c.l.b16 %v1041
    %v1081 = vunpack.c.l.b16 %v1042
    %v1082 = vunpack.c.l.b16 %v1043
    %v1083 = vunpack.c.l.b16 %v1044
    %v1084 = vunpack.c.l.b16 %v1045
    %v1085 = vunpack.c.l.b16 %v1046
    %v1086 = vunpack.c.l.b16 %v1047
    %v1087 = vunpack.c.l.b16 %v1048
    %v1088 = vunpack.c.l.b16 %v1049
    %v1089 = vunpack.c.l.b16 %v1050
    %v1090 = vunpack.c.l.b16 %v1051
    %v1091 = vpack.c.b16 %v1076, %v1075
    %v1092 = vpack.c.b16 %v1078, %v1077
    %v1093 = vpack.c.b16 %v1080, %v1079
    %v1094 = vpack.c.b16 %v1082, %v1081
    %v1095 = vpack.c.b16 %v1084, %v1083
    %v1096 = vpack.c.b16 %v1086, %v1085
    %v1097 = vpack.c.b16 %v1088, %v1087
    %v1098 = vpack.c.b16 %v1090, %v1089
    %1107 = vmatprep.subr.bf16.mxu0 0
    %1108 = vmatpush1.bf16.msra.mxu0 %v1091
    %1109 = vmatprep.subr.bf16.mxu0 0
    %1110 = vmatpush1.bf16.msra.mxu0 %v1092
    %1111 = vmatprep.subr.bf16.mxu0 0
    %1112 = vmatpush1.bf16.msra.mxu0 %v1093
    %1113 = vmatprep.subr.bf16.mxu0 0
    %1114 = vmatpush1.bf16.msra.mxu0 %v1094
    %1115 = vmatprep.subr.bf16.mxu0 0
    %1116 = vmatpush1.bf16.msra.mxu0 %v1095
    %1117 = vmatprep.subr.bf16.mxu0 0
    %1118 = vmatpush1.bf16.msra.mxu0 %v1096
    %1119 = vmatprep.subr.bf16.mxu0 0
    %1120 = vmatpush1.bf16.msra.mxu0 %v1097
    %1121 = vmatprep.subr.bf16.mxu0 0
    %1122 = vmatpush1.bf16.msra.mxu0 %v1098
    %1123 = vmatprep.subr.bf16.mxu0 0
    %1124 = vmatpush1.bf16.msra.mxu0 0
    %1125 = vmatprep.subr.bf16.mxu0 0
    %1126 = vmatpush1.bf16.msra.mxu0 0
    %1127 = vmatprep.subr.bf16.mxu0 0
    %1128 = vmatpush1.bf16.msra.mxu0 0
    %1129 = vmatprep.subr.bf16.mxu0 0
    %1130 = vmatpush1.bf16.msra.mxu0 0
    %1131 = vmatprep.subr.bf16.mxu0 0
    %1132 = vmatpush1.bf16.msra.mxu0 0
    %1133 = vmatprep.subr.bf16.mxu0 0
    %1134 = vmatpush1.bf16.msra.mxu0 0
    %1135 = vmatprep.subr.bf16.mxu0 0
    %1136 = vmatpush1.bf16.msra.mxu0 0
    %1137 = vmatprep.subr.bf16.mxu0 0
    %1138 = vmatpush1.bf16.msra.mxu0 0
    %1139 = vmatprep.mubr.bf16.mxu0 0
    %1140 = vmatmul.mubr.bf16.gmra.mrb[0].mxu0 %v1033
    %v1141 = vpop.f32.mrb[0].mxu0
    %v1142 = vadd.f32 %v1057, %v1141
    %v1143 = vpop.f32.mrb[0].mxu0
    %v1144 = vpop.f32.mrb[0].mxu0
    %v1145 = vadd.f32 %v1057, %v1144
    %v1146 = vpop.f32.mrb[0].mxu0
    %1147 = vmatprep.mubr.bf16.mxu0 0
    %1148 = vmatmul.mubr.bf16.gmra.mrb[0].mxu0 %v1034
    %v1149 = vpop.f32.mrb[0].mxu0
    %v1150 = vadd.f32 %v1057, %v1149
    %v1151 = vpop.f32.mrb[0].mxu0
    %v1152 = vpop.f32.mrb[0].mxu0
    %v1153 = vadd.f32 %v1057, %v1152
    %v1154 = vpop.f32.mrb[0].mxu0
    %1155 = vmatprep.mubr.bf16.mxu0 0
    %1156 = vmatmul.mubr.bf16.gmra.mrb[0].mxu0 %v1035
    %v1157 = vpop.f32.mrb[0].mxu0
    %v1158 = vadd.f32 %v1057, %v1157
    %v1159 = vpop.f32.mrb[0].mxu0
    %v1160 = vpop.f32.mrb[0].mxu0
    %v1161 = vadd.f32 %v1057, %v1160
    %v1162 = vpop.f32.mrb[0].mxu0
    %1163 = vdwg.mxu0
    %v1164 = vmax.f32 %v1142, 0.0
    %v1165 = vmax.f32 %v1145, 0.0
    %v1166 = vmax.f32 %v1150, 0.0
    %v1167 = vmax.f32 %v1153, 0.0
    %v1168 = vmax.f32 %v1158, 0.0
    %v1169 = vmax.f32 %v1161, 0.0
    %v1170 = vpack.c.bf16 %v1165, %v1164
    %v1171 = vpack.c.bf16 %v1167, %v1166
    %v1172 = vpack.c.bf16 %v1169, %v1168
    %v1175 = vunpack.c.l.b16 %v222
    %v1176 = vunpack.c.l.b16 %v223
    %v1177 = vpack.c.b16 %v1176, %v1175
    %vm1178 = vcmask 392192
    %v1180 = vsel %vm1178, %v1177, 0
    %1182 = vmatprep.subr.bf16.mxu0 0
    %1183 = vmatpush1.bf16.msra.mxu0 %v1170
    %1184 = vmatprep.subr.bf16.mxu0 0
    %1185 = vmatpush1.bf16.msra.mxu0 %v1171
    %1186 = vmatprep.subr.bf16.mxu0 0
    %1187 = vmatpush1.bf16.msra.mxu0 %v1172
    %1188 = vmatprep.subr.bf16.mxu0 0
    %1189 = vmatpush1.bf16.msra.mxu0 0
    %1190 = vmatprep.subr.bf16.mxu0 0
    %1191 = vmatpush1.bf16.msra.mxu0 0
    %1192 = vmatprep.subr.bf16.mxu0 0
    %1193 = vmatpush1.bf16.msra.mxu0 0
    %1194 = vmatprep.subr.bf16.mxu0 0
    %1195 = vmatpush1.bf16.msra.mxu0 0
    %1196 = vmatprep.subr.bf16.mxu0 0
    %1197 = vmatpush1.bf16.msra.mxu0 0
    %1198 = vmatprep.subr.bf16.mxu0 0
    %1199 = vmatpush1.bf16.msra.mxu0 0
    %1200 = vmatprep.subr.bf16.mxu0 0
    %1201 = vmatpush1.bf16.msra.mxu0 0
    %1202 = vmatprep.subr.bf16.mxu0 0
    %1203 = vmatpush1.bf16.msra.mxu0 0
    %1204 = vmatprep.subr.bf16.mxu0 0
    %1205 = vmatpush1.bf16.msra.mxu0 0
    %1206 = vmatprep.subr.bf16.mxu0 0
    %1207 = vmatpush1.bf16.msra.mxu0 0
    %1208 = vmatprep.subr.bf16.mxu0 0
    %1209 = vmatpush1.bf16.msra.mxu0 0
    %1210 = vmatprep.subr.bf16.mxu0 0
    %1211 = vmatpush1.bf16.msra.mxu0 0
    %1212 = vmatprep.subr.bf16.mxu0 0
    %1213 = vmatpush1.bf16.msra.mxu0 0
    %1214 = vmatprep.mubr.bf16.mxu0 0
    %1215 = vmatmul.mubr.bf16.gmra.mrb[0].mxu0 %v1180
    %v1216 = vpop.f32.mrb[0].mxu0
    %v1217 = vadd.f32 0.0, %v1216
    %v1218 = vpop.f32.mrb[0].mxu0
    %v1219 = vpop.f32.mrb[0].mxu0
    %v1220 = vadd.f32 0.0, %v1219
    %v1221 = vpop.f32.mrb[0].mxu0
    %1222 = vdwg.mxu0
    %v1223 = vpack.c.bf16 %v1220, %v1217
    %s1224 = scalar_lea.vmem [#allocation7], 192
    %v1225 = vld [vmem:[%s1224] sm:$0xff]
    %v1226 = vld [vmem:[%s1224 + $0x8] sm:$0xf]
    %v1227 = vld [vmem:[%s1224 + $0xc] sm:$0xff]
    %v1228 = vld [vmem:[%s1224 + $0x14] sm:$0xf]
    %v1229 = vld [vmem:[%s1224 + $0x18] sm:$0xff]
    %v1230 = vld [vmem:[%s1224 + $0x20] sm:$0xf]
    %v1231 = vld [vmem:[%s1224 + $0x24] sm:$0xff]
    %v1232 = vld [vmem:[%s1224 + $0x2c] sm:$0xf]
    %v1233 = vld [vmem:[%s1224 + $0x30] sm:$0xff]
    %v1234 = vld [vmem:[%s1224 + $0x38] sm:$0xf]
    %v1235 = vld [vmem:[%s1224 + $0x3c] sm:$0xff]
    %v1236 = vld [vmem:[%s1224 + $0x44] sm:$0xf]
    %v1237 = vld [vmem:[%s1224 + $0x48] sm:$0xff]
    %v1238 = vld [vmem:[%s1224 + $0x50] sm:$0xf]
    %v1239 = vld [vmem:[%s1224 + $0x54] sm:$0xff]
    %v1240 = vld [vmem:[%s1224 + $0x5c] sm:$0xf]
    %v1241 = vld [vmem:[%s1224 + $0x60] sm:$0xff]
    %v1242 = vld [vmem:[%s1224 + $0x68] sm:$0xf]
    %v1243 = vld [vmem:[%s1224 + $0x6c] sm:$0xff]
    %v1244 = vld [vmem:[%s1224 + $0x74] sm:$0xf]
    %v1245 = vld [vmem:[%s1224 + $0x78] sm:$0xff]
    %v1246 = vld [vmem:[%s1224 + $0x80] sm:$0xf]
    %v1247 = vld [vmem:[%s1224 + $0x84] sm:$0xff]
    %v1248 = vld [vmem:[%s1224 + $0x8c] sm:$0xf]
    %v1249 = vld [vmem:[%s1224 + $0x90] sm:$0xff]
    %v1250 = vld [vmem:[%s1224 + $0x98] sm:$0xf]
    %v1251 = vld [vmem:[%s1224 + $0x9c] sm:$0xff]
    %v1252 = vld [vmem:[%s1224 + $0xa4] sm:$0xf]
    %v1253 = vld [vmem:[%s1224 + $0xa8] sm:$0xff]
    %v1254 = vld [vmem:[%s1224 + $0xb0] sm:$0xf]
    %v1255 = vld [vmem:[%s1224 + $0xb4] sm:$0xff]
    %v1256 = vld [vmem:[%s1224 + $0xbc] sm:$0xf]
    %v1289 = vunpack.c.l.b16 %v1225
    %v1290 = vunpack.c.h.b16 %v1225
    %v1291 = vunpack.c.l.b16 %v1226
    %v1292 = vunpack.c.l.b16 %v1227
    %v1293 = vunpack.c.h.b16 %v1227
    %v1294 = vunpack.c.l.b16 %v1228
    %v1295 = vunpack.c.l.b16 %v1229
    %v1296 = vunpack.c.h.b16 %v1229
    %v1297 = vunpack.c.l.b16 %v1230
    %v1298 = vunpack.c.l.b16 %v1231
    %v1299 = vunpack.c.h.b16 %v1231
    %v1300 = vunpack.c.l.b16 %v1232
    %v1301 = vunpack.c.l.b16 %v1233
    %v1302 = vunpack.c.h.b16 %v1233
    %v1303 = vunpack.c.l.b16 %v1234
    %v1304 = vunpack.c.l.b16 %v1235
    %v1305 = vunpack.c.h.b16 %v1235
    %v1306 = vunpack.c.l.b16 %v1236
    %v1307 = vunpack.c.l.b16 %v1237
    %v1308 = vunpack.c.h.b16 %v1237
    %v1309 = vunpack.c.l.b16 %v1238
    %v1310 = vunpack.c.l.b16 %v1239
    %v1311 = vunpack.c.h.b16 %v1239
    %v1312 = vunpack.c.l.b16 %v1240
    %v1313 = vunpack.c.l.b16 %v1241
    %v1314 = vunpack.c.h.b16 %v1241
    %v1315 = vunpack.c.l.b16 %v1242
    %v1316 = vunpack.c.l.b16 %v1243
    %v1317 = vunpack.c.h.b16 %v1243
    %v1318 = vunpack.c.l.b16 %v1244
    %v1319 = vunpack.c.l.b16 %v1245
    %v1320 = vunpack.c.h.b16 %v1245
    %v1321 = vunpack.c.l.b16 %v1246
    %v1322 = vunpack.c.l.b16 %v1247
    %v1323 = vunpack.c.h.b16 %v1247
    %v1324 = vunpack.c.l.b16 %v1248
    %v1325 = vunpack.c.l.b16 %v1249
    %v1326 = vunpack.c.h.b16 %v1249
    %v1327 = vunpack.c.l.b16 %v1250
    %v1328 = vunpack.c.l.b16 %v1251
    %v1329 = vunpack.c.h.b16 %v1251
    %v1330 = vunpack.c.l.b16 %v1252
    %v1331 = vunpack.c.l.b16 %v1253
    %v1332 = vunpack.c.h.b16 %v1253
    %v1333 = vunpack.c.l.b16 %v1254
    %v1334 = vunpack.c.l.b16 %v1255
    %v1335 = vunpack.c.h.b16 %v1255
    %v1336 = vunpack.c.l.b16 %v1256
    %v1337 = vpack.c.b16 %v1292, %v1289
    %v1338 = vpack.c.b16 %v1293, %v1290
    %v1339 = vpack.c.b16 %v1294, %v1291
    %v1340 = vpack.c.b16 %v1298, %v1295
    %v1341 = vpack.c.b16 %v1299, %v1296
    %v1342 = vpack.c.b16 %v1300, %v1297
    %v1343 = vpack.c.b16 %v1304, %v1301
    %v1344 = vpack.c.b16 %v1305, %v1302
    %v1345 = vpack.c.b16 %v1306, %v1303
    %v1346 = vpack.c.b16 %v1310, %v1307
    %v1347 = vpack.c.b16 %v1311, %v1308
    %v1348 = vpack.c.b16 %v1312, %v1309
    %v1349 = vpack.c.b16 %v1316, %v1313
    %v1350 = vpack.c.b16 %v1317, %v1314
    %v1351 = vpack.c.b16 %v1318, %v1315
    %v1352 = vpack.c.b16 %v1322, %v1319
    %v1353 = vpack.c.b16 %v1323, %v1320
    %v1354 = vpack.c.b16 %v1324, %v1321
    %v1355 = vpack.c.b16 %v1328, %v1325
    %v1356 = vpack.c.b16 %v1329, %v1326
    %v1357 = vpack.c.b16 %v1330, %v1327
    %v1358 = vpack.c.b16 %v1334, %v1331
    %v1359 = vpack.c.b16 %v1335, %v1332
    %v1360 = vpack.c.b16 %v1336, %v1333
    %1385 = vmatprep.subr.bf16.mxu0 %v1338
    %1386 = vmatpush1.bf16.msra.mxu0 %v1337
    %1387 = vmatprep.subr.bf16.mxu0 %v1341
    %1388 = vmatpush1.bf16.msra.mxu0 %v1340
    %1389 = vmatprep.subr.bf16.mxu0 %v1344
    %1390 = vmatpush1.bf16.msra.mxu0 %v1343
    %1391 = vmatprep.subr.bf16.mxu0 %v1347
    %1392 = vmatpush1.bf16.msra.mxu0 %v1346
    %1393 = vmatprep.subr.bf16.mxu0 %v1350
    %1394 = vmatpush1.bf16.msra.mxu0 %v1349
    %1395 = vmatprep.subr.bf16.mxu0 %v1353
    %1396 = vmatpush1.bf16.msra.mxu0 %v1352
    %1397 = vmatprep.subr.bf16.mxu0 %v1356
    %1398 = vmatpush1.bf16.msra.mxu0 %v1355
    %1399 = vmatprep.subr.bf16.mxu0 %v1359
    %1400 = vmatpush1.bf16.msra.mxu0 %v1358
    %1401 = vmatprep.subr.bf16.mxu0 0
    %1402 = vmatpush1.bf16.msra.mxu0 0
    %1403 = vmatprep.subr.bf16.mxu0 0
    %1404 = vmatpush1.bf16.msra.mxu0 0
    %1405 = vmatprep.subr.bf16.mxu0 0
    %1406 = vmatpush1.bf16.msra.mxu0 0
    %1407 = vmatprep.subr.bf16.mxu0 0
    %1408 = vmatpush1.bf16.msra.mxu0 0
    %1409 = vmatprep.subr.bf16.mxu0 0
    %1410 = vmatpush1.bf16.msra.mxu0 0
    %1411 = vmatprep.subr.bf16.mxu0 0
    %1412 = vmatpush1.bf16.msra.mxu0 0
    %1413 = vmatprep.subr.bf16.mxu0 0
    %1414 = vmatpush1.bf16.msra.mxu0 0
    %1415 = vmatprep.subr.bf16.mxu0 0
    %1416 = vmatpush1.bf16.msra.mxu0 0
    %1417 = vmatprep.mubr.bf16.mxu0 0
    %1418 = vmatmul.mubr.bf16.gmra.mrb[0].mxu0 %v1223
    %v1419 = vpop.f32.mrb[0].mxu0
    %v1420 = vadd.f32 0.0, %v1419
    %v1421 = vpop.f32.mrb[0].mxu0
    %v1422 = vadd.f32 0.0, %v1421
    %v1423 = vpop.f32.mrb[0].mxu0
    %v1424 = vadd.f32 0.0, %v1423
    %v1425 = vpop.f32.mrb[0].mxu0
    %v1426 = vadd.f32 0.0, %v1425
    %1427 = vdwg.mxu0
    %1428 = vmatprep.subr.bf16.mxu0 0
    %1429 = vmatpush1.bf16.msra.mxu0 %v1339
    %1430 = vmatprep.subr.bf16.mxu0 0
    %1431 = vmatpush1.bf16.msra.mxu0 %v1342
    %1432 = vmatprep.subr.bf16.mxu0 0
    %1433 = vmatpush1.bf16.msra.mxu0 %v1345
    %1434 = vmatprep.subr.bf16.mxu0 0
    %1435 = vmatpush1.bf16.msra.mxu0 %v1348
    %1436 = vmatprep.subr.bf16.mxu0 0
    %1437 = vmatpush1.bf16.msra.mxu0 %v1351
    %1438 = vmatprep.subr.bf16.mxu0 0
    %1439 = vmatpush1.bf16.msra.mxu0 %v1354
    %1440 = vmatprep.subr.bf16.mxu0 0
    %1441 = vmatpush1.bf16.msra.mxu0 %v1357
    %1442 = vmatprep.subr.bf16.mxu0 0
    %1443 = vmatpush1.bf16.msra.mxu0 %v1360
    %1444 = vmatprep.subr.bf16.mxu0 0
    %1445 = vmatpush1.bf16.msra.mxu0 0
    %1446 = vmatprep.subr.bf16.mxu0 0
    %1447 = vmatpush1.bf16.msra.mxu0 0
    %1448 = vmatprep.subr.bf16.mxu0 0
    %1449 = vmatpush1.bf16.msra.mxu0 0
    %1450 = vmatprep.subr.bf16.mxu0 0
    %1451 = vmatpush1.bf16.msra.mxu0 0
    %1452 = vmatprep.subr.bf16.mxu0 0
    %1453 = vmatpush1.bf16.msra.mxu0 0
    %1454 = vmatprep.subr.bf16.mxu0 0
    %1455 = vmatpush1.bf16.msra.mxu0 0
    %1456 = vmatprep.subr.bf16.mxu0 0
    %1457 = vmatpush1.bf16.msra.mxu0 0
    %1458 = vmatprep.subr.bf16.mxu0 0
    %1459 = vmatpush1.bf16.msra.mxu0 0
    %1460 = vmatprep.mubr.bf16.mxu0 0
    %1461 = vmatmul.mubr.bf16.gmra.mrb[0].mxu0 %v1223
    %v1462 = vpop.f32.mrb[0].mxu0
    %v1463 = vadd.f32 0.0, %v1462
    %v1464 = vpop.f32.mrb[0].mxu0
    %v1465 = vpop.f32.mrb[0].mxu0
    %v1466 = vadd.f32 0.0, %v1465
    %v1467 = vpop.f32.mrb[0].mxu0
    %1468 = vdwg.mxu0
    %v1469 = vpack.c.bf16 %v1424, %v1420
    %v1470 = vpack.c.bf16 %v1426, %v1422
    %1471 = vmatprep.subr.bf16.mxu0 %v1470
    %1472 = vmatpush1.bf16.msra.mxu0 %v1469
    %1473 = vmatprep.subr.bf16.mxu0 0
    %1474 = vmatpush1.bf16.msra.mxu0 0
    %1475 = vmatprep.subr.bf16.mxu0 0
    %1476 = vmatpush1.bf16.msra.mxu0 0
    %1477 = vmatprep.subr.bf16.mxu0 0
    %1478 = vmatpush1.bf16.msra.mxu0 0
    %1479 = vmatprep.subr.bf16.mxu0 0
    %1480 = vmatpush1.bf16.msra.mxu0 0
    %1481 = vmatprep.subr.bf16.mxu0 0
    %1482 = vmatpush1.bf16.msra.mxu0 0
    %1483 = vmatprep.subr.bf16.mxu0 0
    %1484 = vmatpush1.bf16.msra.mxu0 0
    %1485 = vmatprep.subr.bf16.mxu0 0
    %1486 = vmatpush1.bf16.msra.mxu0 0
    %1487 = vmatprep.subr.bf16.mxu0 0
    %1488 = vmatpush1.bf16.msra.mxu0 0
    %1489 = vmatprep.subr.bf16.mxu0 0
    %1490 = vmatpush1.bf16.msra.mxu0 0
    %1491 = vmatprep.subr.bf16.mxu0 0
    %1492 = vmatpush1.bf16.msra.mxu0 0
    %1493 = vmatprep.subr.bf16.mxu0 0
    %1494 = vmatpush1.bf16.msra.mxu0 0
    %1495 = vmatprep.subr.bf16.mxu0 0
    %1496 = vmatpush1.bf16.msra.mxu0 0
    %1497 = vmatprep.subr.bf16.mxu0 0
    %1498 = vmatpush1.bf16.msra.mxu0 0
    %1499 = vmatprep.subr.bf16.mxu0 0
    %1500 = vmatpush1.bf16.msra.mxu0 0
    %1501 = vmatprep.subr.bf16.mxu0 0
    %1502 = vmatpush1.bf16.msra.mxu0 0
    %1503 = vmatprep.mubr.bf16.mxu0 0
    %1504 = vmatmul.mubr.bf16.gmra.mrb[0].mxu0 %v501
    %v1505 = vpop.f32.mrb[0].mxu0
    %v1506 = vadd.f32 0.0, %v1505
    %v1507 = vpop.f32.mrb[0].mxu0
    %v1508 = vpop.f32.mrb[0].mxu0
    %v1509 = vadd.f32 0.0, %v1508
    %v1510 = vpop.f32.mrb[0].mxu0
    %1511 = vmatprep.mubr.bf16.mxu0 0
    %1512 = vmatmul.mubr.bf16.gmra.mrb[0].mxu0 %v504
    %v1513 = vpop.f32.mrb[0].mxu0
    %v1514 = vadd.f32 0.0, %v1513
    %v1515 = vpop.f32.mrb[0].mxu0
    %v1516 = vpop.f32.mrb[0].mxu0
    %v1517 = vadd.f32 0.0, %v1516
    %v1518 = vpop.f32.mrb[0].mxu0
    %1519 = vmatprep.mubr.bf16.mxu0 0
    %1520 = vmatmul.mubr.bf16.gmra.mrb[0].mxu0 %v507
    %v1521 = vpop.f32.mrb[0].mxu0
    %v1522 = vpop.f32.mrb[0].mxu0
    %v1523 = vadd.f32 0.0, %v1522
    %v1524 = vpop.f32.mrb[0].mxu0
    %v1525 = vpop.f32.mrb[0].mxu0
    %v1526 = vadd.f32 0.0, %v1525
    %1527 = vmatprep.mubr.bf16.mxu0 0
    %1528 = vmatmul.mubr.bf16.gmra.mrb[0].mxu0 %v510
    %v1529 = vpop.f32.mrb[0].mxu0
    %v1530 = vpop.f32.mrb[0].mxu0
    %v1531 = vadd.f32 0.0, %v1530
    %v1532 = vpop.f32.mrb[0].mxu0
    %v1533 = vpop.f32.mrb[0].mxu0
    %v1534 = vadd.f32 0.0, %v1533
    %1535 = vdwg.mxu0
    %v1536 = vadd.f32 %v1506, %v1523
    %v1537 = vadd.f32 %v1509, %v1526
    %v1538 = vadd.f32 %v1514, %v1531
    %v1539 = vadd.f32 %v1517, %v1534
    %s1540 = scalar_lea.vmem [#allocation8], 64
    %v1541 = vld [vmem:[%s1540] sm:$0xf]
    %v1542 = vld [vmem:[%s1540 + $0x4] sm:$0xf]
    %v1543 = vld [vmem:[%s1540 + $0x8] sm:$0xf]
    %v1544 = vld [vmem:[%s1540 + $0xc] sm:$0xf]
    %v1545 = vld [vmem:[%s1540 + $0x10] sm:$0xf]
    %v1546 = vld [vmem:[%s1540 + $0x14] sm:$0xf]
    %v1547 = vld [vmem:[%s1540 + $0x18] sm:$0xf]
    %v1548 = vld [vmem:[%s1540 + $0x1c] sm:$0xf]
    %v1549 = vld [vmem:[%s1540 + $0x20] sm:$0xf]
    %v1550 = vld [vmem:[%s1540 + $0x24] sm:$0xf]
    %v1551 = vld [vmem:[%s1540 + $0x28] sm:$0xf]
    %v1552 = vld [vmem:[%s1540 + $0x2c] sm:$0xf]
    %v1553 = vld [vmem:[%s1540 + $0x30] sm:$0xf]
    %v1554 = vld [vmem:[%s1540 + $0x34] sm:$0xf]
    %v1555 = vld [vmem:[%s1540 + $0x38] sm:$0xf]
    %v1556 = vld [vmem:[%s1540 + $0x3c] sm:$0xf]
    %v1573 = vunpack.c.l.b16 %v1541
    %v1574 = vunpack.c.l.b16 %v1542
    %v1575 = vunpack.c.l.b16 %v1543
    %v1576 = vunpack.c.l.b16 %v1544
    %v1577 = vunpack.c.l.b16 %v1545
    %v1578 = vunpack.c.l.b16 %v1546
    %v1579 = vunpack.c.l.b16 %v1547
    %v1580 = vunpack.c.l.b16 %v1548
    %v1581 = vunpack.c.l.b16 %v1549
    %v1582 = vunpack.c.l.b16 %v1550
    %v1583 = vunpack.c.l.b16 %v1551
    %v1584 = vunpack.c.l.b16 %v1552
    %v1585 = vunpack.c.l.b16 %v1553
    %v1586 = vunpack.c.l.b16 %v1554
    %v1587 = vunpack.c.l.b16 %v1555
    %v1588 = vunpack.c.l.b16 %v1556
    %v1589 = vpack.c.b16 %v1574, %v1573
    %v1590 = vpack.c.b16 %v1576, %v1575
    %v1591 = vpack.c.b16 %v1578, %v1577
    %v1592 = vpack.c.b16 %v1580, %v1579
    %v1593 = vpack.c.b16 %v1582, %v1581
    %v1594 = vpack.c.b16 %v1584, %v1583
    %v1595 = vpack.c.b16 %v1586, %v1585
    %v1596 = vpack.c.b16 %v1588, %v1587
    %1605 = vmatprep.subr.bf16.mxu0 0
    %1606 = vmatpush1.bf16.msra.mxu0 %v1589
    %1607 = vmatprep.subr.bf16.mxu0 0
    %1608 = vmatpush1.bf16.msra.mxu0 %v1590
    %1609 = vmatprep.subr.bf16.mxu0 0
    %1610 = vmatpush1.bf16.msra.mxu0 %v1591
    %1611 = vmatprep.subr.bf16.mxu0 0
    %1612 = vmatpush1.bf16.msra.mxu0 %v1592
    %1613 = vmatprep.subr.bf16.mxu0 0
    %1614 = vmatpush1.bf16.msra.mxu0 %v1593
    %1615 = vmatprep.subr.bf16.mxu0 0
    %1616 = vmatpush1.bf16.msra.mxu0 %v1594
    %1617 = vmatprep.subr.bf16.mxu0 0
    %1618 = vmatpush1.bf16.msra.mxu0 %v1595
    %1619 = vmatprep.subr.bf16.mxu0 0
    %1620 = vmatpush1.bf16.msra.mxu0 %v1596
    %1621 = vmatprep.subr.bf16.mxu0 0
    %1622 = vmatpush1.bf16.msra.mxu0 0
    %1623 = vmatprep.subr.bf16.mxu0 0
    %1624 = vmatpush1.bf16.msra.mxu0 0
    %1625 = vmatprep.subr.bf16.mxu0 0
    %1626 = vmatpush1.bf16.msra.mxu0 0
    %1627 = vmatprep.subr.bf16.mxu0 0
    %1628 = vmatpush1.bf16.msra.mxu0 0
    %1629 = vmatprep.subr.bf16.mxu0 0
    %1630 = vmatpush1.bf16.msra.mxu0 0
    %1631 = vmatprep.subr.bf16.mxu0 0
    %1632 = vmatpush1.bf16.msra.mxu0 0
    %1633 = vmatprep.subr.bf16.mxu0 0
    %1634 = vmatpush1.bf16.msra.mxu0 0
    %1635 = vmatprep.subr.bf16.mxu0 0
    %1636 = vmatpush1.bf16.msra.mxu0 0
    %1637 = vmatprep.mubr.bf16.mxu0 0
    %1638 = vmatmul.mubr.bf16.gmra.mrb[0].mxu0 %v1034
    %v1639 = vpop.f32.mrb[0].mxu0
    %v1640 = vadd.f32 0.0, %v1639
    %v1641 = vpop.f32.mrb[0].mxu0
    %v1642 = vpop.f32.mrb[0].mxu0
    %v1643 = vadd.f32 0.0, %v1642
    %v1644 = vpop.f32.mrb[0].mxu0
    %1645 = vmatprep.mubr.bf16.mxu0 0
    %1646 = vmatmul.mubr.bf16.gmra.mrb[0].mxu0 %v1035
    %v1647 = vpop.f32.mrb[0].mxu0
    %v1648 = vadd.f32 0.0, %v1647
    %v1649 = vpop.f32.mrb[0].mxu0
    %v1650 = vpop.f32.mrb[0].mxu0
    %v1651 = vadd.f32 0.0, %v1650
    %v1652 = vpop.f32.mrb[0].mxu0
    %1653 = vdwg.mxu0
    %v1654 = vadd.f32 %v1536, %v1640
    %v1655 = vadd.f32 %v1537, %v1643
    %v1656 = vadd.f32 %v1538, %v1648
    %v1657 = vadd.f32 %v1539, %v1651
    %s1658 = scalar_lea.vmem [#allocation10], 1
    %v1659 = vld [vmem:[%s1658] sm:$0x1]
    %v1661 = vlaneseq
    %v1662 = vshrl.u32 %v1661, 7
    %v1663 = vsub.s32 0, %v1662
    %v1664 = vrot.slane %v1659, %v1663
    %v1666 = vadd.f32 %v1654, %v1664
    %v1667 = vadd.f32 %v1655, %v1664
    %v1668 = vadd.f32 %v1656, %v1664
    %v1669 = vadd.f32 %v1657, %v1664
    %v1670 = vmax.f32 %v1666, 0.0
    %v1671 = vmax.f32 %v1667, 0.0
    %v1672 = vmax.f32 %v1668, 0.0
    %v1673 = vmax.f32 %v1669, 0.0
    %v1674 = vpack.c.bf16 %v1671, %v1670
    %v1675 = vpack.c.bf16 %v1673, %v1672
    %1676 = vmatprep.subr.bf16.mxu0 0
    %1677 = vmatpush1.bf16.msra.mxu0 %v1674
    %1678 = vmatprep.subr.bf16.mxu0 0
    %1679 = vmatpush1.bf16.msra.mxu0 %v1675
    %1680 = vmatprep.subr.bf16.mxu0 0
    %1681 = vmatpush1.bf16.msra.mxu0 0
    %1682 = vmatprep.subr.bf16.mxu0 0
    %1683 = vmatpush1.bf16.msra.mxu0 0
    %1684 = vmatprep.subr.bf16.mxu0 0
    %1685 = vmatpush1.bf16.msra.mxu0 0
    %1686 = vmatprep.subr.bf16.mxu0 0
    %1687 = vmatpush1.bf16.msra.mxu0 0
    %1688 = vmatprep.subr.bf16.mxu0 0
    %1689 = vmatpush1.bf16.msra.mxu0 0
    %1690 = vmatprep.subr.bf16.mxu0 0
    %1691 = vmatpush1.bf16.msra.mxu0 0
    %1692 = vmatprep.subr.bf16.mxu0 0
    %1693 = vmatpush1.bf16.msra.mxu0 0
    %1694 = vmatprep.subr.bf16.mxu0 0
    %1695 = vmatpush1.bf16.msra.mxu0 0
    %1696 = vmatprep.subr.bf16.mxu0 0
    %1697 = vmatpush1.bf16.msra.mxu0 0
    %1698 = vmatprep.subr.bf16.mxu0 0
    %1699 = vmatpush1.bf16.msra.mxu0 0
    %1700 = vmatprep.subr.bf16.mxu0 0
    %1701 = vmatpush1.bf16.msra.mxu0 0
    %1702 = vmatprep.subr.bf16.mxu0 0
    %1703 = vmatpush1.bf16.msra.mxu0 0
    %1704 = vmatprep.subr.bf16.mxu0 0
    %1705 = vmatpush1.bf16.msra.mxu0 0
    %1706 = vmatprep.subr.bf16.mxu0 0
    %1707 = vmatpush1.bf16.msra.mxu0 0
    %1708 = vmatprep.mubr.bf16.mxu0 0
    %1709 = vmatmul.mubr.bf16.gmra.mrb[0].mxu0 %v727
    %v1710 = vpop.f32.mrb[0].mxu0
    %v1711 = vadd.f32 0.0, %v1710
    %v1712 = vpop.f32.mrb[0].mxu0
    %v1713 = vpop.f32.mrb[0].mxu0
    %v1714 = vadd.f32 0.0, %v1713
    %v1715 = vpop.f32.mrb[0].mxu0
    %1716 = vmatprep.mubr.bf16.mxu0 0
    %1717 = vmatmul.mubr.bf16.gmra.mrb[0].mxu0 %v730
    %v1718 = vpop.f32.mrb[0].mxu0
    %v1719 = vadd.f32 0.0, %v1718
    %v1720 = vpop.f32.mrb[0].mxu0
    %v1721 = vpop.f32.mrb[0].mxu0
    %v1722 = vadd.f32 0.0, %v1721
    %v1723 = vpop.f32.mrb[0].mxu0
    %1724 = vdwg.mxu0
    %v1725 = vpack.c.bf16 %v1714, %v1711
    %v1726 = vpack.c.bf16 %v1722, %v1719
    %s1727 = scalar_lea.vmem [#allocation11], 64
    %v1728 = vld [vmem:[%s1727] sm:$0xf]
    %v1729 = vld [vmem:[%s1727 + $0x4] sm:$0xf]
    %v1730 = vld [vmem:[%s1727 + $0x8] sm:$0xf]
    %v1731 = vld [vmem:[%s1727 + $0xc] sm:$0xf]
    %v1732 = vld [vmem:[%s1727 + $0x10] sm:$0xf]
    %v1733 = vld [vmem:[%s1727 + $0x14] sm:$0xf]
    %v1734 = vld [vmem:[%s1727 + $0x18] sm:$0xf]
    %v1735 = vld [vmem:[%s1727 + $0x1c] sm:$0xf]
    %v1736 = vld [vmem:[%s1727 + $0x20] sm:$0xf]
    %v1737 = vld [vmem:[%s1727 + $0x24] sm:$0xf]
    %v1738 = vld [vmem:[%s1727 + $0x28] sm:$0xf]
    %v1739 = vld [vmem:[%s1727 + $0x2c] sm:$0xf]
    %v1740 = vld [vmem:[%s1727 + $0x30] sm:$0xf]
    %v1741 = vld [vmem:[%s1727 + $0x34] sm:$0xf]
    %v1742 = vld [vmem:[%s1727 + $0x38] sm:$0xf]
    %v1743 = vld [vmem:[%s1727 + $0x3c] sm:$0xf]
    %s1744 = scalar_lea.vmem [#allocation13], 64
    %v1745 = vld [vmem:[%s1744] sm:$0xf]
    %v1746 = vld [vmem:[%s1744 + $0x4] sm:$0xf]
    %v1747 = vld [vmem:[%s1744 + $0x8] sm:$0xf]
    %v1748 = vld [vmem:[%s1744 + $0xc] sm:$0xf]
    %v1749 = vld [vmem:[%s1744 + $0x10] sm:$0xf]
    %v1750 = vld [vmem:[%s1744 + $0x14] sm:$0xf]
    %v1751 = vld [vmem:[%s1744 + $0x18] sm:$0xf]
    %v1752 = vld [vmem:[%s1744 + $0x1c] sm:$0xf]
    %v1753 = vld [vmem:[%s1744 + $0x20] sm:$0xf]
    %v1754 = vld [vmem:[%s1744 + $0x24] sm:$0xf]
    %v1755 = vld [vmem:[%s1744 + $0x28] sm:$0xf]
    %v1756 = vld [vmem:[%s1744 + $0x2c] sm:$0xf]
    %v1757 = vld [vmem:[%s1744 + $0x30] sm:$0xf]
    %v1758 = vld [vmem:[%s1744 + $0x34] sm:$0xf]
    %v1759 = vld [vmem:[%s1744 + $0x38] sm:$0xf]
    %v1760 = vld [vmem:[%s1744 + $0x3c] sm:$0xf]
    %v1777 = vunpack.c.l.b16 %v1745
    %v1778 = vunpack.c.l.b16 %v1746
    %v1779 = vunpack.c.l.b16 %v1747
    %v1780 = vunpack.c.l.b16 %v1748
    %v1781 = vunpack.c.l.b16 %v1749
    %v1782 = vunpack.c.l.b16 %v1750
    %v1783 = vunpack.c.l.b16 %v1751
    %v1784 = vunpack.c.l.b16 %v1752
    %v1785 = vunpack.c.l.b16 %v1753
    %v1786 = vunpack.c.l.b16 %v1754
    %v1787 = vunpack.c.l.b16 %v1755
    %v1788 = vunpack.c.l.b16 %v1756
    %v1789 = vunpack.c.l.b16 %v1757
    %v1790 = vunpack.c.l.b16 %v1758
    %v1791 = vunpack.c.l.b16 %v1759
    %v1792 = vunpack.c.l.b16 %v1760
    %v1793 = vpack.c.b16 %v1778, %v1777
    %v1794 = vpack.c.b16 %v1780, %v1779
    %v1795 = vpack.c.b16 %v1782, %v1781
    %v1796 = vpack.c.b16 %v1784, %v1783
    %v1797 = vpack.c.b16 %v1786, %v1785
    %v1798 = vpack.c.b16 %v1788, %v1787
    %v1799 = vpack.c.b16 %v1790, %v1789
    %v1800 = vpack.c.b16 %v1792, %v1791
    %1809 = vmatprep.subr.bf16.mxu0 0
    %1810 = vmatpush1.bf16.msra.mxu0 %v1793
    %1811 = vmatprep.subr.bf16.mxu0 0
    %1812 = vmatpush1.bf16.msra.mxu0 %v1794
    %1813 = vmatprep.subr.bf16.mxu0 0
    %1814 = vmatpush1.bf16.msra.mxu0 %v1795
    %1815 = vmatprep.subr.bf16.mxu0 0
    %1816 = vmatpush1.bf16.msra.mxu0 %v1796
    %1817 = vmatprep.subr.bf16.mxu0 0
    %1818 = vmatpush1.bf16.msra.mxu0 %v1797
    %1819 = vmatprep.subr.bf16.mxu0 0
    %1820 = vmatpush1.bf16.msra.mxu0 %v1798
    %1821 = vmatprep.subr.bf16.mxu0 0
    %1822 = vmatpush1.bf16.msra.mxu0 %v1799
    %1823 = vmatprep.subr.bf16.mxu0 0
    %1824 = vmatpush1.bf16.msra.mxu0 %v1800
    %1825 = vmatprep.subr.bf16.mxu0 0
    %1826 = vmatpush1.bf16.msra.mxu0 0
    %1827 = vmatprep.subr.bf16.mxu0 0
    %1828 = vmatpush1.bf16.msra.mxu0 0
    %1829 = vmatprep.subr.bf16.mxu0 0
    %1830 = vmatpush1.bf16.msra.mxu0 0
    %1831 = vmatprep.subr.bf16.mxu0 0
    %1832 = vmatpush1.bf16.msra.mxu0 0
    %1833 = vmatprep.subr.bf16.mxu0 0
    %1834 = vmatpush1.bf16.msra.mxu0 0
    %1835 = vmatprep.subr.bf16.mxu0 0
    %1836 = vmatpush1.bf16.msra.mxu0 0
    %1837 = vmatprep.subr.bf16.mxu0 0
    %1838 = vmatpush1.bf16.msra.mxu0 0
    %1839 = vmatprep.subr.bf16.mxu0 0
    %1840 = vmatpush1.bf16.msra.mxu0 0
    %1841 = vmatprep.mubr.bf16.mxu0 0
    %1842 = vmatmul.mubr.bf16.gmra.mrb[0].mxu0 %v1674
    %v1843 = vpop.f32.mrb[0].mxu0
    %v1844 = vadd.f32 0.0, %v1843
    %v1845 = vpop.f32.mrb[0].mxu0
    %v1846 = vpop.f32.mrb[0].mxu0
    %v1847 = vadd.f32 0.0, %v1846
    %v1848 = vpop.f32.mrb[0].mxu0
    %1849 = vmatprep.mubr.bf16.mxu0 0
    %1850 = vmatmul.mubr.bf16.gmra.mrb[0].mxu0 %v1675
    %v1851 = vpop.f32.mrb[0].mxu0
    %v1852 = vadd.f32 0.0, %v1851
    %v1853 = vpop.f32.mrb[0].mxu0
    %v1854 = vpop.f32.mrb[0].mxu0
    %v1855 = vadd.f32 0.0, %v1854
    %v1856 = vpop.f32.mrb[0].mxu0
    %1857 = vdwg.mxu0
    %v1874 = vunpack.c.l.b16 %v1728
    %v1875 = vunpack.c.l.b16 %v1729
    %v1876 = vunpack.c.l.b16 %v1730
    %v1877 = vunpack.c.l.b16 %v1731
    %v1878 = vunpack.c.l.b16 %v1732
    %v1879 = vunpack.c.l.b16 %v1733
    %v1880 = vunpack.c.l.b16 %v1734
    %v1881 = vunpack.c.l.b16 %v1735
    %v1882 = vunpack.c.l.b16 %v1736
    %v1883 = vunpack.c.l.b16 %v1737
    %v1884 = vunpack.c.l.b16 %v1738
    %v1885 = vunpack.c.l.b16 %v1739
    %v1886 = vunpack.c.l.b16 %v1740
    %v1887 = vunpack.c.l.b16 %v1741
    %v1888 = vunpack.c.l.b16 %v1742
    %v1889 = vunpack.c.l.b16 %v1743
    %v1890 = vpack.c.b16 %v1875, %v1874
    %v1891 = vpack.c.b16 %v1877, %v1876
    %v1892 = vpack.c.b16 %v1879, %v1878
    %v1893 = vpack.c.b16 %v1881, %v1880
    %v1894 = vpack.c.b16 %v1883, %v1882
    %v1895 = vpack.c.b16 %v1885, %v1884
    %v1896 = vpack.c.b16 %v1887, %v1886
    %v1897 = vpack.c.b16 %v1889, %v1888
    %1906 = vmatprep.subr.bf16.mxu0 0
    %1907 = vmatpush1.bf16.msra.mxu0 %v1890
    %1908 = vmatprep.subr.bf16.mxu0 0
    %1909 = vmatpush1.bf16.msra.mxu0 %v1891
    %1910 = vmatprep.subr.bf16.mxu0 0
    %1911 = vmatpush1.bf16.msra.mxu0 %v1892
    %1912 = vmatprep.subr.bf16.mxu0 0
    %1913 = vmatpush1.bf16.msra.mxu0 %v1893
    %1914 = vmatprep.subr.bf16.mxu0 0
    %1915 = vmatpush1.bf16.msra.mxu0 %v1894
    %1916 = vmatprep.subr.bf16.mxu0 0
    %1917 = vmatpush1.bf16.msra.mxu0 %v1895
    %1918 = vmatprep.subr.bf16.mxu0 0
    %1919 = vmatpush1.bf16.msra.mxu0 %v1896
    %1920 = vmatprep.subr.bf16.mxu0 0
    %1921 = vmatpush1.bf16.msra.mxu0 %v1897
    %1922 = vmatprep.subr.bf16.mxu0 0
    %1923 = vmatpush1.bf16.msra.mxu0 0
    %1924 = vmatprep.subr.bf16.mxu0 0
    %1925 = vmatpush1.bf16.msra.mxu0 0
    %1926 = vmatprep.subr.bf16.mxu0 0
    %1927 = vmatpush1.bf16.msra.mxu0 0
    %1928 = vmatprep.subr.bf16.mxu0 0
    %1929 = vmatpush1.bf16.msra.mxu0 0
    %1930 = vmatprep.subr.bf16.mxu0 0
    %1931 = vmatpush1.bf16.msra.mxu0 0
    %1932 = vmatprep.subr.bf16.mxu0 0
    %1933 = vmatpush1.bf16.msra.mxu0 0
    %1934 = vmatprep.subr.bf16.mxu0 0
    %1935 = vmatpush1.bf16.msra.mxu0 0
    %1936 = vmatprep.subr.bf16.mxu0 0
    %1937 = vmatpush1.bf16.msra.mxu0 0
    %1938 = vmatprep.mubr.bf16.mxu0 0
    %1939 = vmatmul.mubr.bf16.gmra.mrb[0].mxu0 %v1725
    %v1940 = vpop.f32.mrb[0].mxu0
    %v1941 = vadd.f32 %v1844, %v1940
    %v1942 = vpop.f32.mrb[0].mxu0
    %v1943 = vpop.f32.mrb[0].mxu0
    %v1944 = vadd.f32 %v1847, %v1943
    %v1945 = vpop.f32.mrb[0].mxu0
    %1946 = vmatprep.mubr.bf16.mxu0 0
    %1947 = vmatmul.mubr.bf16.gmra.mrb[0].mxu0 %v1726
    %v1948 = vpop.f32.mrb[0].mxu0
    %v1949 = vadd.f32 %v1852, %v1948
    %v1950 = vpop.f32.mrb[0].mxu0
    %v1951 = vpop.f32.mrb[0].mxu0
    %v1952 = vadd.f32 %v1855, %v1951
    %v1953 = vpop.f32.mrb[0].mxu0
    %1954 = vdwg.mxu0
    %s1955 = scalar_lea.vmem [#allocation14], 1
    %v1956 = vld [vmem:[%s1955] sm:$0x1]
    %v1958 = vlaneseq
    %v1959 = vshrl.u32 %v1958, 7
    %v1960 = vsub.s32 0, %v1959
    %v1961 = vrot.slane %v1956, %v1960
    %v1963 = vadd.f32 %v1941, %v1961
    %v1964 = vadd.f32 %v1944, %v1961
    %v1965 = vadd.f32 %v1949, %v1961
    %v1966 = vadd.f32 %v1952, %v1961
    %v1967 = vmax.f32 %v1963, 0.0
    %v1968 = vmax.f32 %v1964, 0.0
    %v1969 = vmax.f32 %v1965, 0.0
    %v1970 = vmax.f32 %v1966, 0.0
    %s1971 = scalar_lea.vmem [#allocation16], 1
    %v1972 = vld [vmem:[%s1971] sm:$0x1]
    %v1974 = vlaneseq
    %v1975 = vshrl.u32 %v1974, 7
    %v1976 = vsub.s32 0, %v1975
    %v1977 = vrot.slane %v1972, %v1976
    %v1979 = vadd.f32 %v1463, %v1977
    %v1980 = vadd.f32 %v1466, %v1977
    %v1981 = vpack.c.bf16 %v1980, %v1979
    %v1982 = vpack.c.bf16 %v1968, %v1967
    %v1983 = vpack.c.bf16 %v1970, %v1969
    %s1984 = scalar_lea.vmem [#allocation17], 64
    %v1985 = vld [vmem:[%s1984] sm:$0xf]
    %v1986 = vld [vmem:[%s1984 + $0x4] sm:$0xf]
    %v1987 = vld [vmem:[%s1984 + $0x8] sm:$0xf]
    %v1988 = vld [vmem:[%s1984 + $0xc] sm:$0xf]
    %v1989 = vld [vmem:[%s1984 + $0x10] sm:$0xf]
    %v1990 = vld [vmem:[%s1984 + $0x14] sm:$0xf]
    %v1991 = vld [vmem:[%s1984 + $0x18] sm:$0xf]
    %v1992 = vld [vmem:[%s1984 + $0x1c] sm:$0xf]
    %v1993 = vld [vmem:[%s1984 + $0x20] sm:$0xf]
    %v1994 = vld [vmem:[%s1984 + $0x24] sm:$0xf]
    %v1995 = vld [vmem:[%s1984 + $0x28] sm:$0xf]
    %v1996 = vld [vmem:[%s1984 + $0x2c] sm:$0xf]
    %v1997 = vld [vmem:[%s1984 + $0x30] sm:$0xf]
    %v1998 = vld [vmem:[%s1984 + $0x34] sm:$0xf]
    %v1999 = vld [vmem:[%s1984 + $0x38] sm:$0xf]
    %v2000 = vld [vmem:[%s1984 + $0x3c] sm:$0xf]
    %s2001 = scalar_lea.vmem [#allocation19], 1
    %v2002 = vld [vmem:[%s2001] sm:$0x1]
    %v2004 = vlaneseq
    %v2005 = vshrl.u32 %v2004, 7
    %v2006 = vsub.s32 0, %v2005
    %v2007 = vrot.slane %v2002, %v2006
    %v2025 = vunpack.c.l.b16 %v1985
    %v2026 = vunpack.c.l.b16 %v1986
    %v2027 = vunpack.c.l.b16 %v1987
    %v2028 = vunpack.c.l.b16 %v1988
    %v2029 = vunpack.c.l.b16 %v1989
    %v2030 = vunpack.c.l.b16 %v1990
    %v2031 = vunpack.c.l.b16 %v1991
    %v2032 = vunpack.c.l.b16 %v1992
    %v2033 = vunpack.c.l.b16 %v1993
    %v2034 = vunpack.c.l.b16 %v1994
    %v2035 = vunpack.c.l.b16 %v1995
    %v2036 = vunpack.c.l.b16 %v1996
    %v2037 = vunpack.c.l.b16 %v1997
    %v2038 = vunpack.c.l.b16 %v1998
    %v2039 = vunpack.c.l.b16 %v1999
    %v2040 = vunpack.c.l.b16 %v2000
    %v2041 = vpack.c.b16 %v2026, %v2025
    %v2042 = vpack.c.b16 %v2028, %v2027
    %v2043 = vpack.c.b16 %v2030, %v2029
    %v2044 = vpack.c.b16 %v2032, %v2031
    %v2045 = vpack.c.b16 %v2034, %v2033
    %v2046 = vpack.c.b16 %v2036, %v2035
    %v2047 = vpack.c.b16 %v2038, %v2037
    %v2048 = vpack.c.b16 %v2040, %v2039
    %2057 = vmatprep.subr.bf16.mxu0 0
    %2058 = vmatpush1.bf16.msra.mxu0 %v2041
    %2059 = vmatprep.subr.bf16.mxu0 0
    %2060 = vmatpush1.bf16.msra.mxu0 %v2042
    %2061 = vmatprep.subr.bf16.mxu0 0
    %2062 = vmatpush1.bf16.msra.mxu0 %v2043
    %2063 = vmatprep.subr.bf16.mxu0 0
    %2064 = vmatpush1.bf16.msra.mxu0 %v2044
    %2065 = vmatprep.subr.bf16.mxu0 0
    %2066 = vmatpush1.bf16.msra.mxu0 %v2045
    %2067 = vmatprep.subr.bf16.mxu0 0
    %2068 = vmatpush1.bf16.msra.mxu0 %v2046
    %2069 = vmatprep.subr.bf16.mxu0 0
    %2070 = vmatpush1.bf16.msra.mxu0 %v2047
    %2071 = vmatprep.subr.bf16.mxu0 0
    %2072 = vmatpush1.bf16.msra.mxu0 %v2048
    %2073 = vmatprep.subr.bf16.mxu0 0
    %2074 = vmatpush1.bf16.msra.mxu0 0
    %2075 = vmatprep.subr.bf16.mxu0 0
    %2076 = vmatpush1.bf16.msra.mxu0 0
    %2077 = vmatprep.subr.bf16.mxu0 0
    %2078 = vmatpush1.bf16.msra.mxu0 0
    %2079 = vmatprep.subr.bf16.mxu0 0
    %2080 = vmatpush1.bf16.msra.mxu0 0
    %2081 = vmatprep.subr.bf16.mxu0 0
    %2082 = vmatpush1.bf16.msra.mxu0 0
    %2083 = vmatprep.subr.bf16.mxu0 0
    %2084 = vmatpush1.bf16.msra.mxu0 0
    %2085 = vmatprep.subr.bf16.mxu0 0
    %2086 = vmatpush1.bf16.msra.mxu0 0
    %2087 = vmatprep.subr.bf16.mxu0 0
    %2088 = vmatpush1.bf16.msra.mxu0 0
    %2089 = vmatprep.mubr.bf16.mxu0 0
    %2090 = vmatmul.mubr.bf16.gmra.mrb[0].mxu0 %v1981
    %v2091 = vpop.f32.mrb[0].mxu0
    %v2092 = vadd.f32 %v2007, %v2091
    %v2093 = vpop.f32.mrb[0].mxu0
    %v2094 = vpop.f32.mrb[0].mxu0
    %v2095 = vadd.f32 %v2007, %v2094
    %v2096 = vpop.f32.mrb[0].mxu0
    %2097 = vmatprep.mubr.bf16.mxu0 0
    %2098 = vmatmul.mubr.bf16.gmra.mrb[0].mxu0 %v1982
    %v2099 = vpop.f32.mrb[0].mxu0
    %v2100 = vadd.f32 %v2007, %v2099
    %v2101 = vpop.f32.mrb[0].mxu0
    %v2102 = vpop.f32.mrb[0].mxu0
    %v2103 = vadd.f32 %v2007, %v2102
    %v2104 = vpop.f32.mrb[0].mxu0
    %2105 = vmatprep.mubr.bf16.mxu0 0
    %2106 = vmatmul.mubr.bf16.gmra.mrb[0].mxu0 %v1983
    %v2107 = vpop.f32.mrb[0].mxu0
    %v2108 = vadd.f32 %v2007, %v2107
    %v2109 = vpop.f32.mrb[0].mxu0
    %v2110 = vpop.f32.mrb[0].mxu0
    %v2111 = vadd.f32 %v2007, %v2110
    %v2112 = vpop.f32.mrb[0].mxu0
    %2113 = vdwg.mxu0
    %v2114 = vmax.f32 %v2092, 0.0
    %v2115 = vmax.f32 %v2095, 0.0
    %v2116 = vmax.f32 %v2100, 0.0
    %v2117 = vmax.f32 %v2103, 0.0
    %v2118 = vmax.f32 %v2108, 0.0
    %v2119 = vmax.f32 %v2111, 0.0
    %v2120 = vpack.c.bf16 %v2115, %v2114
    %v2121 = vpack.c.bf16 %v2117, %v2116
    %v2122 = vpack.c.bf16 %v2119, %v2118
    %2123 = vmatprep.subr.bf16.mxu0 0
    %2124 = vmatpush1.bf16.msra.mxu0 %v2120
    %2125 = vmatprep.subr.bf16.mxu0 0
    %2126 = vmatpush1.bf16.msra.mxu0 %v2121
    %2127 = vmatprep.subr.bf16.mxu0 0
    %2128 = vmatpush1.bf16.msra.mxu0 %v2122
    %2129 = vmatprep.subr.bf16.mxu0 0
    %2130 = vmatpush1.bf16.msra.mxu0 0
    %2131 = vmatprep.subr.bf16.mxu0 0
    %2132 = vmatpush1.bf16.msra.mxu0 0
    %2133 = vmatprep.subr.bf16.mxu0 0
    %2134 = vmatpush1.bf16.msra.mxu0 0
    %2135 = vmatprep.subr.bf16.mxu0 0
    %2136 = vmatpush1.bf16.msra.mxu0 0
    %2137 = vmatprep.subr.bf16.mxu0 0
    %2138 = vmatpush1.bf16.msra.mxu0 0
    %2139 = vmatprep.subr.bf16.mxu0 0
    %2140 = vmatpush1.bf16.msra.mxu0 0
    %2141 = vmatprep.subr.bf16.mxu0 0
    %2142 = vmatpush1.bf16.msra.mxu0 0
    %2143 = vmatprep.subr.bf16.mxu0 0
    %2144 = vmatpush1.bf16.msra.mxu0 0
    %2145 = vmatprep.subr.bf16.mxu0 0
    %2146 = vmatpush1.bf16.msra.mxu0 0
    %2147 = vmatprep.subr.bf16.mxu0 0
    %2148 = vmatpush1.bf16.msra.mxu0 0
    %2149 = vmatprep.subr.bf16.mxu0 0
    %2150 = vmatpush1.bf16.msra.mxu0 0
    %2151 = vmatprep.subr.bf16.mxu0 0
    %2152 = vmatpush1.bf16.msra.mxu0 0
    %2153 = vmatprep.subr.bf16.mxu0 0
    %2154 = vmatpush1.bf16.msra.mxu0 0
    %2155 = vmatprep.mubr.bf16.mxu0 0
    %2156 = vmatmul.mubr.bf16.gmra.mrb[0].mxu0 %v1180
    %v2157 = vpop.f32.mrb[0].mxu0
    %v2158 = vadd.f32 0.0, %v2157
    %v2159 = vpop.f32.mrb[0].mxu0
    %v2160 = vpop.f32.mrb[0].mxu0
    %v2161 = vadd.f32 0.0, %v2160
    %v2162 = vpop.f32.mrb[0].mxu0
    %2163 = vdwg.mxu0
    %v2164 = vpack.c.bf16 %v2161, %v2158
    %s2165 = scalar_lea.vmem [#allocation7], 384
    %v2166 = vld [vmem:[%s2165] sm:$0xff]
    %v2167 = vld [vmem:[%s2165 + $0x8] sm:$0xf]
    %v2168 = vld [vmem:[%s2165 + $0xc] sm:$0xff]
    %v2169 = vld [vmem:[%s2165 + $0x14] sm:$0xf]
    %v2170 = vld [vmem:[%s2165 + $0x18] sm:$0xff]
    %v2171 = vld [vmem:[%s2165 + $0x20] sm:$0xf]
    %v2172 = vld [vmem:[%s2165 + $0x24] sm:$0xff]
    %v2173 = vld [vmem:[%s2165 + $0x2c] sm:$0xf]
    %v2174 = vld [vmem:[%s2165 + $0x30] sm:$0xff]
    %v2175 = vld [vmem:[%s2165 + $0x38] sm:$0xf]
    %v2176 = vld [vmem:[%s2165 + $0x3c] sm:$0xff]
    %v2177 = vld [vmem:[%s2165 + $0x44] sm:$0xf]
    %v2178 = vld [vmem:[%s2165 + $0x48] sm:$0xff]
    %v2179 = vld [vmem:[%s2165 + $0x50] sm:$0xf]
    %v2180 = vld [vmem:[%s2165 + $0x54] sm:$0xff]
    %v2181 = vld [vmem:[%s2165 + $0x5c] sm:$0xf]
    %v2182 = vld [vmem:[%s2165 + $0x60] sm:$0xff]
    %v2183 = vld [vmem:[%s2165 + $0x68] sm:$0xf]
    %v2184 = vld [vmem:[%s2165 + $0x6c] sm:$0xff]
    %v2185 = vld [vmem:[%s2165 + $0x74] sm:$0xf]
    %v2186 = vld [vmem:[%s2165 + $0x78] sm:$0xff]
    %v2187 = vld [vmem:[%s2165 + $0x80] sm:$0xf]
    %v2188 = vld [vmem:[%s2165 + $0x84] sm:$0xff]
    %v2189 = vld [vmem:[%s2165 + $0x8c] sm:$0xf]
    %v2190 = vld [vmem:[%s2165 + $0x90] sm:$0xff]
    %v2191 = vld [vmem:[%s2165 + $0x98] sm:$0xf]
    %v2192 = vld [vmem:[%s2165 + $0x9c] sm:$0xff]
    %v2193 = vld [vmem:[%s2165 + $0xa4] sm:$0xf]
    %v2194 = vld [vmem:[%s2165 + $0xa8] sm:$0xff]
    %v2195 = vld [vmem:[%s2165 + $0xb0] sm:$0xf]
    %v2196 = vld [vmem:[%s2165 + $0xb4] sm:$0xff]
    %v2197 = vld [vmem:[%s2165 + $0xbc] sm:$0xf]
    %v2230 = vunpack.c.l.b16 %v2166
    %v2231 = vunpack.c.h.b16 %v2166
    %v2232 = vunpack.c.l.b16 %v2167
    %v2233 = vunpack.c.l.b16 %v2168
    %v2234 = vunpack.c.h.b16 %v2168
    %v2235 = vunpack.c.l.b16 %v2169
    %v2236 = vunpack.c.l.b16 %v2170
    %v2237 = vunpack.c.h.b16 %v2170
    %v2238 = vunpack.c.l.b16 %v2171
    %v2239 = vunpack.c.l.b16 %v2172
    %v2240 = vunpack.c.h.b16 %v2172
    %v2241 = vunpack.c.l.b16 %v2173
    %v2242 = vunpack.c.l.b16 %v2174
    %v2243 = vunpack.c.h.b16 %v2174
    %v2244 = vunpack.c.l.b16 %v2175
    %v2245 = vunpack.c.l.b16 %v2176
    %v2246 = vunpack.c.h.b16 %v2176
    %v2247 = vunpack.c.l.b16 %v2177
    %v2248 = vunpack.c.l.b16 %v2178
    %v2249 = vunpack.c.h.b16 %v2178
    %v2250 = vunpack.c.l.b16 %v2179
    %v2251 = vunpack.c.l.b16 %v2180
    %v2252 = vunpack.c.h.b16 %v2180
    %v2253 = vunpack.c.l.b16 %v2181
    %v2254 = vunpack.c.l.b16 %v2182
    %v2255 = vunpack.c.h.b16 %v2182
    %v2256 = vunpack.c.l.b16 %v2183
    %v2257 = vunpack.c.l.b16 %v2184
    %v2258 = vunpack.c.h.b16 %v2184
    %v2259 = vunpack.c.l.b16 %v2185
    %v2260 = vunpack.c.l.b16 %v2186
    %v2261 = vunpack.c.h.b16 %v2186
    %v2262 = vunpack.c.l.b16 %v2187
    %v2263 = vunpack.c.l.b16 %v2188
    %v2264 = vunpack.c.h.b16 %v2188
    %v2265 = vunpack.c.l.b16 %v2189
    %v2266 = vunpack.c.l.b16 %v2190
    %v2267 = vunpack.c.h.b16 %v2190
    %v2268 = vunpack.c.l.b16 %v2191
    %v2269 = vunpack.c.l.b16 %v2192
    %v2270 = vunpack.c.h.b16 %v2192
    %v2271 = vunpack.c.l.b16 %v2193
    %v2272 = vunpack.c.l.b16 %v2194
    %v2273 = vunpack.c.h.b16 %v2194
    %v2274 = vunpack.c.l.b16 %v2195
    %v2275 = vunpack.c.l.b16 %v2196
    %v2276 = vunpack.c.h.b16 %v2196
    %v2277 = vunpack.c.l.b16 %v2197
    %v2278 = vpack.c.b16 %v2233, %v2230
    %v2279 = vpack.c.b16 %v2234, %v2231
    %v2280 = vpack.c.b16 %v2235, %v2232
    %v2281 = vpack.c.b16 %v2239, %v2236
    %v2282 = vpack.c.b16 %v2240, %v2237
    %v2283 = vpack.c.b16 %v2241, %v2238
    %v2284 = vpack.c.b16 %v2245, %v2242
    %v2285 = vpack.c.b16 %v2246, %v2243
    %v2286 = vpack.c.b16 %v2247, %v2244
    %v2287 = vpack.c.b16 %v2251, %v2248
    %v2288 = vpack.c.b16 %v2252, %v2249
    %v2289 = vpack.c.b16 %v2253, %v2250
    %v2290 = vpack.c.b16 %v2257, %v2254
    %v2291 = vpack.c.b16 %v2258, %v2255
    %v2292 = vpack.c.b16 %v2259, %v2256
    %v2293 = vpack.c.b16 %v2263, %v2260
    %v2294 = vpack.c.b16 %v2264, %v2261
    %v2295 = vpack.c.b16 %v2265, %v2262
    %v2296 = vpack.c.b16 %v2269, %v2266
    %v2297 = vpack.c.b16 %v2270, %v2267
    %v2298 = vpack.c.b16 %v2271, %v2268
    %v2299 = vpack.c.b16 %v2275, %v2272
    %v2300 = vpack.c.b16 %v2276, %v2273
    %v2301 = vpack.c.b16 %v2277, %v2274
    %2326 = vmatprep.subr.bf16.mxu0 %v2279
    %2327 = vmatpush1.bf16.msra.mxu0 %v2278
    %2328 = vmatprep.subr.bf16.mxu0 %v2282
    %2329 = vmatpush1.bf16.msra.mxu0 %v2281
    %2330 = vmatprep.subr.bf16.mxu0 %v2285
    %2331 = vmatpush1.bf16.msra.mxu0 %v2284
    %2332 = vmatprep.subr.bf16.mxu0 %v2288
    %2333 = vmatpush1.bf16.msra.mxu0 %v2287
    %2334 = vmatprep.subr.bf16.mxu0 %v2291
    %2335 = vmatpush1.bf16.msra.mxu0 %v2290
    %2336 = vmatprep.subr.bf16.mxu0 %v2294
    %2337 = vmatpush1.bf16.msra.mxu0 %v2293
    %2338 = vmatprep.subr.bf16.mxu0 %v2297
    %2339 = vmatpush1.bf16.msra.mxu0 %v2296
    %2340 = vmatprep.subr.bf16.mxu0 %v2300
    %2341 = vmatpush1.bf16.msra.mxu0 %v2299
    %2342 = vmatprep.subr.bf16.mxu0 0
    %2343 = vmatpush1.bf16.msra.mxu0 0
    %2344 = vmatprep.subr.bf16.mxu0 0
    %2345 = vmatpush1.bf16.msra.mxu0 0
    %2346 = vmatprep.subr.bf16.mxu0 0
    %2347 = vmatpush1.bf16.msra.mxu0 0
    %2348 = vmatprep.subr.bf16.mxu0 0
    %2349 = vmatpush1.bf16.msra.mxu0 0
    %2350 = vmatprep.subr.bf16.mxu0 0
    %2351 = vmatpush1.bf16.msra.mxu0 0
    %2352 = vmatprep.subr.bf16.mxu0 0
    %2353 = vmatpush1.bf16.msra.mxu0 0
    %2354 = vmatprep.subr.bf16.mxu0 0
    %2355 = vmatpush1.bf16.msra.mxu0 0
    %2356 = vmatprep.subr.bf16.mxu0 0
    %2357 = vmatpush1.bf16.msra.mxu0 0
    %2358 = vmatprep.mubr.bf16.mxu0 0
    %2359 = vmatmul.mubr.bf16.gmra.mrb[0].mxu0 %v2164
    %v2360 = vpop.f32.mrb[0].mxu0
    %v2361 = vadd.f32 0.0, %v2360
    %v2362 = vpop.f32.mrb[0].mxu0
    %v2363 = vadd.f32 0.0, %v2362
    %v2364 = vpop.f32.mrb[0].mxu0
    %v2365 = vadd.f32 0.0, %v2364
    %v2366 = vpop.f32.mrb[0].mxu0
    %v2367 = vadd.f32 0.0, %v2366
    %2368 = vdwg.mxu0
    %2369 = vmatprep.subr.bf16.mxu0 0
    %2370 = vmatpush1.bf16.msra.mxu0 %v2280
    %2371 = vmatprep.subr.bf16.mxu0 0
    %2372 = vmatpush1.bf16.msra.mxu0 %v2283
    %2373 = vmatprep.subr.bf16.mxu0 0
    %2374 = vmatpush1.bf16.msra.mxu0 %v2286
    %2375 = vmatprep.subr.bf16.mxu0 0
    %2376 = vmatpush1.bf16.msra.mxu0 %v2289
    %2377 = vmatprep.subr.bf16.mxu0 0
    %2378 = vmatpush1.bf16.msra.mxu0 %v2292
    %2379 = vmatprep.subr.bf16.mxu0 0
    %2380 = vmatpush1.bf16.msra.mxu0 %v2295
    %2381 = vmatprep.subr.bf16.mxu0 0
    %2382 = vmatpush1.bf16.msra.mxu0 %v2298
    %2383 = vmatprep.subr.bf16.mxu0 0
    %2384 = vmatpush1.bf16.msra.mxu0 %v2301
    %2385 = vmatprep.subr.bf16.mxu0 0
    %2386 = vmatpush1.bf16.msra.mxu0 0
    %2387 = vmatprep.subr.bf16.mxu0 0
    %2388 = vmatpush1.bf16.msra.mxu0 0
    %2389 = vmatprep.subr.bf16.mxu0 0
    %2390 = vmatpush1.bf16.msra.mxu0 0
    %2391 = vmatprep.subr.bf16.mxu0 0
    %2392 = vmatpush1.bf16.msra.mxu0 0
    %2393 = vmatprep.subr.bf16.mxu0 0
    %2394 = vmatpush1.bf16.msra.mxu0 0
    %2395 = vmatprep.subr.bf16.mxu0 0
    %2396 = vmatpush1.bf16.msra.mxu0 0
    %2397 = vmatprep.subr.bf16.mxu0 0
    %2398 = vmatpush1.bf16.msra.mxu0 0
    %2399 = vmatprep.subr.bf16.mxu0 0
    %2400 = vmatpush1.bf16.msra.mxu0 0
    %2401 = vmatprep.mubr.bf16.mxu0 0
    %2402 = vmatmul.mubr.bf16.gmra.mrb[0].mxu0 %v2164
    %v2403 = vpop.f32.mrb[0].mxu0
    %v2404 = vadd.f32 0.0, %v2403
    %v2405 = vpop.f32.mrb[0].mxu0
    %v2406 = vpop.f32.mrb[0].mxu0
    %v2407 = vadd.f32 0.0, %v2406
    %v2408 = vpop.f32.mrb[0].mxu0
    %2409 = vdwg.mxu0
    %v2410 = vpack.c.bf16 %v2365, %v2361
    %v2411 = vpack.c.bf16 %v2367, %v2363
    %2412 = vmatprep.subr.bf16.mxu0 %v2411
    %2413 = vmatpush1.bf16.msra.mxu0 %v2410
    %2414 = vmatprep.subr.bf16.mxu0 0
    %2415 = vmatpush1.bf16.msra.mxu0 0
    %2416 = vmatprep.subr.bf16.mxu0 0
    %2417 = vmatpush1.bf16.msra.mxu0 0
    %2418 = vmatprep.subr.bf16.mxu0 0
    %2419 = vmatpush1.bf16.msra.mxu0 0
    %2420 = vmatprep.subr.bf16.mxu0 0
    %2421 = vmatpush1.bf16.msra.mxu0 0
    %2422 = vmatprep.subr.bf16.mxu0 0
    %2423 = vmatpush1.bf16.msra.mxu0 0
    %2424 = vmatprep.subr.bf16.mxu0 0
    %2425 = vmatpush1.bf16.msra.mxu0 0
    %2426 = vmatprep.subr.bf16.mxu0 0
    %2427 = vmatpush1.bf16.msra.mxu0 0
    %2428 = vmatprep.subr.bf16.mxu0 0
    %2429 = vmatpush1.bf16.msra.mxu0 0
    %2430 = vmatprep.subr.bf16.mxu0 0
    %2431 = vmatpush1.bf16.msra.mxu0 0
    %2432 = vmatprep.subr.bf16.mxu0 0
    %2433 = vmatpush1.bf16.msra.mxu0 0
    %2434 = vmatprep.subr.bf16.mxu0 0
    %2435 = vmatpush1.bf16.msra.mxu0 0
    %2436 = vmatprep.subr.bf16.mxu0 0
    %2437 = vmatpush1.bf16.msra.mxu0 0
    %2438 = vmatprep.subr.bf16.mxu0 0
    %2439 = vmatpush1.bf16.msra.mxu0 0
    %2440 = vmatprep.subr.bf16.mxu0 0
    %2441 = vmatpush1.bf16.msra.mxu0 0
    %2442 = vmatprep.subr.bf16.mxu0 0
    %2443 = vmatpush1.bf16.msra.mxu0 0
    %2444 = vmatprep.mubr.bf16.mxu0 0
    %2445 = vmatmul.mubr.bf16.gmra.mrb[0].mxu0 %v501
    %v2446 = vpop.f32.mrb[0].mxu0
    %v2447 = vadd.f32 0.0, %v2446
    %v2448 = vpop.f32.mrb[0].mxu0
    %v2449 = vpop.f32.mrb[0].mxu0
    %v2450 = vadd.f32 0.0, %v2449
    %v2451 = vpop.f32.mrb[0].mxu0
    %2452 = vmatprep.mubr.bf16.mxu0 0
    %2453 = vmatmul.mubr.bf16.gmra.mrb[0].mxu0 %v504
    %v2454 = vpop.f32.mrb[0].mxu0
    %v2455 = vadd.f32 0.0, %v2454
    %v2456 = vpop.f32.mrb[0].mxu0
    %v2457 = vpop.f32.mrb[0].mxu0
    %v2458 = vadd.f32 0.0, %v2457
    %v2459 = vpop.f32.mrb[0].mxu0
    %2460 = vmatprep.mubr.bf16.mxu0 0
    %2461 = vmatmul.mubr.bf16.gmra.mrb[0].mxu0 %v507
    %v2462 = vpop.f32.mrb[0].mxu0
    %v2463 = vpop.f32.mrb[0].mxu0
    %v2464 = vadd.f32 0.0, %v2463
    %v2465 = vpop.f32.mrb[0].mxu0
    %v2466 = vpop.f32.mrb[0].mxu0
    %v2467 = vadd.f32 0.0, %v2466
    %2468 = vmatprep.mubr.bf16.mxu0 0
    %2469 = vmatmul.mubr.bf16.gmra.mrb[0].mxu0 %v510
    %v2470 = vpop.f32.mrb[0].mxu0
    %v2471 = vpop.f32.mrb[0].mxu0
    %v2472 = vadd.f32 0.0, %v2471
    %v2473 = vpop.f32.mrb[0].mxu0
    %v2474 = vpop.f32.mrb[0].mxu0
    %v2475 = vadd.f32 0.0, %v2474
    %2476 = vdwg.mxu0
    %v2477 = vadd.f32 %v2447, %v2464
    %v2478 = vadd.f32 %v2450, %v2467
    %v2479 = vadd.f32 %v2455, %v2472
    %v2480 = vadd.f32 %v2458, %v2475
    %s2481 = scalar_lea.vmem [#allocation8], 128
    %v2482 = vld [vmem:[%s2481] sm:$0xf]
    %v2483 = vld [vmem:[%s2481 + $0x4] sm:$0xf]
    %v2484 = vld [vmem:[%s2481 + $0x8] sm:$0xf]
    %v2485 = vld [vmem:[%s2481 + $0xc] sm:$0xf]
    %v2486 = vld [vmem:[%s2481 + $0x10] sm:$0xf]
    %v2487 = vld [vmem:[%s2481 + $0x14] sm:$0xf]
    %v2488 = vld [vmem:[%s2481 + $0x18] sm:$0xf]
    %v2489 = vld [vmem:[%s2481 + $0x1c] sm:$0xf]
    %v2490 = vld [vmem:[%s2481 + $0x20] sm:$0xf]
    %v2491 = vld [vmem:[%s2481 + $0x24] sm:$0xf]
    %v2492 = vld [vmem:[%s2481 + $0x28] sm:$0xf]
    %v2493 = vld [vmem:[%s2481 + $0x2c] sm:$0xf]
    %v2494 = vld [vmem:[%s2481 + $0x30] sm:$0xf]
    %v2495 = vld [vmem:[%s2481 + $0x34] sm:$0xf]
    %v2496 = vld [vmem:[%s2481 + $0x38] sm:$0xf]
    %v2497 = vld [vmem:[%s2481 + $0x3c] sm:$0xf]
    %v2514 = vunpack.c.l.b16 %v2482
    %v2515 = vunpack.c.l.b16 %v2483
    %v2516 = vunpack.c.l.b16 %v2484
    %v2517 = vunpack.c.l.b16 %v2485
    %v2518 = vunpack.c.l.b16 %v2486
    %v2519 = vunpack.c.l.b16 %v2487
    %v2520 = vunpack.c.l.b16 %v2488
    %v2521 = vunpack.c.l.b16 %v2489
    %v2522 = vunpack.c.l.b16 %v2490
    %v2523 = vunpack.c.l.b16 %v2491
    %v2524 = vunpack.c.l.b16 %v2492
    %v2525 = vunpack.c.l.b16 %v2493
    %v2526 = vunpack.c.l.b16 %v2494
    %v2527 = vunpack.c.l.b16 %v2495
    %v2528 = vunpack.c.l.b16 %v2496
    %v2529 = vunpack.c.l.b16 %v2497
    %v2530 = vpack.c.b16 %v2515, %v2514
    %v2531 = vpack.c.b16 %v2517, %v2516
    %v2532 = vpack.c.b16 %v2519, %v2518
    %v2533 = vpack.c.b16 %v2521, %v2520
    %v2534 = vpack.c.b16 %v2523, %v2522
    %v2535 = vpack.c.b16 %v2525, %v2524
    %v2536 = vpack.c.b16 %v2527, %v2526
    %v2537 = vpack.c.b16 %v2529, %v2528
    %2546 = vmatprep.subr.bf16.mxu0 0
    %2547 = vmatpush1.bf16.msra.mxu0 %v2530
    %2548 = vmatprep.subr.bf16.mxu0 0
    %2549 = vmatpush1.bf16.msra.mxu0 %v2531
    %2550 = vmatprep.subr.bf16.mxu0 0
    %2551 = vmatpush1.bf16.msra.mxu0 %v2532
    %2552 = vmatprep.subr.bf16.mxu0 0
    %2553 = vmatpush1.bf16.msra.mxu0 %v2533
    %2554 = vmatprep.subr.bf16.mxu0 0
    %2555 = vmatpush1.bf16.msra.mxu0 %v2534
    %2556 = vmatprep.subr.bf16.mxu0 0
    %2557 = vmatpush1.bf16.msra.mxu0 %v2535
    %2558 = vmatprep.subr.bf16.mxu0 0
    %2559 = vmatpush1.bf16.msra.mxu0 %v2536
    %2560 = vmatprep.subr.bf16.mxu0 0
    %2561 = vmatpush1.bf16.msra.mxu0 %v2537
    %2562 = vmatprep.subr.bf16.mxu0 0
    %2563 = vmatpush1.bf16.msra.mxu0 0
    %2564 = vmatprep.subr.bf16.mxu0 0
    %2565 = vmatpush1.bf16.msra.mxu0 0
    %2566 = vmatprep.subr.bf16.mxu0 0
    %2567 = vmatpush1.bf16.msra.mxu0 0
    %2568 = vmatprep.subr.bf16.mxu0 0
    %2569 = vmatpush1.bf16.msra.mxu0 0
    %2570 = vmatprep.subr.bf16.mxu0 0
    %2571 = vmatpush1.bf16.msra.mxu0 0
    %2572 = vmatprep.subr.bf16.mxu0 0
    %2573 = vmatpush1.bf16.msra.mxu0 0
    %2574 = vmatprep.subr.bf16.mxu0 0
    %2575 = vmatpush1.bf16.msra.mxu0 0
    %2576 = vmatprep.subr.bf16.mxu0 0
    %2577 = vmatpush1.bf16.msra.mxu0 0
    %2578 = vmatprep.mubr.bf16.mxu0 0
    %2579 = vmatmul.mubr.bf16.gmra.mrb[0].mxu0 %v1982
    %v2580 = vpop.f32.mrb[0].mxu0
    %v2581 = vadd.f32 0.0, %v2580
    %v2582 = vpop.f32.mrb[0].mxu0
    %v2583 = vpop.f32.mrb[0].mxu0
    %v2584 = vadd.f32 0.0, %v2583
    %v2585 = vpop.f32.mrb[0].mxu0
    %2586 = vmatprep.mubr.bf16.mxu0 0
    %2587 = vmatmul.mubr.bf16.gmra.mrb[0].mxu0 %v1983
    %v2588 = vpop.f32.mrb[0].mxu0
    %v2589 = vadd.f32 0.0, %v2588
    %v2590 = vpop.f32.mrb[0].mxu0
    %v2591 = vpop.f32.mrb[0].mxu0
    %v2592 = vadd.f32 0.0, %v2591
    %v2593 = vpop.f32.mrb[0].mxu0
    %2594 = vdwg.mxu0
    %v2595 = vadd.f32 %v2477, %v2581
    %v2596 = vadd.f32 %v2478, %v2584
    %v2597 = vadd.f32 %v2479, %v2589
    %v2598 = vadd.f32 %v2480, %v2592
    %s2599 = scalar_lea.vmem [#allocation10], 2
    %v2600 = vld [vmem:[%s2599] sm:$0x1]
    %v2602 = vlaneseq
    %v2603 = vshrl.u32 %v2602, 7
    %v2604 = vsub.s32 0, %v2603
    %v2605 = vrot.slane %v2600, %v2604
    %v2607 = vadd.f32 %v2595, %v2605
    %v2608 = vadd.f32 %v2596, %v2605
    %v2609 = vadd.f32 %v2597, %v2605
    %v2610 = vadd.f32 %v2598, %v2605
    %v2611 = vmax.f32 %v2607, 0.0
    %v2612 = vmax.f32 %v2608, 0.0
    %v2613 = vmax.f32 %v2609, 0.0
    %v2614 = vmax.f32 %v2610, 0.0
    %v2615 = vpack.c.bf16 %v2612, %v2611
    %v2616 = vpack.c.bf16 %v2614, %v2613
    %2617 = vmatprep.subr.bf16.mxu0 0
    %2618 = vmatpush1.bf16.msra.mxu0 %v2615
    %2619 = vmatprep.subr.bf16.mxu0 0
    %2620 = vmatpush1.bf16.msra.mxu0 %v2616
    %2621 = vmatprep.subr.bf16.mxu0 0
    %2622 = vmatpush1.bf16.msra.mxu0 0
    %2623 = vmatprep.subr.bf16.mxu0 0
    %2624 = vmatpush1.bf16.msra.mxu0 0
    %2625 = vmatprep.subr.bf16.mxu0 0
    %2626 = vmatpush1.bf16.msra.mxu0 0
    %2627 = vmatprep.subr.bf16.mxu0 0
    %2628 = vmatpush1.bf16.msra.mxu0 0
    %2629 = vmatprep.subr.bf16.mxu0 0
    %2630 = vmatpush1.bf16.msra.mxu0 0
    %2631 = vmatprep.subr.bf16.mxu0 0
    %2632 = vmatpush1.bf16.msra.mxu0 0
    %2633 = vmatprep.subr.bf16.mxu0 0
    %2634 = vmatpush1.bf16.msra.mxu0 0
    %2635 = vmatprep.subr.bf16.mxu0 0
    %2636 = vmatpush1.bf16.msra.mxu0 0
    %2637 = vmatprep.subr.bf16.mxu0 0
    %2638 = vmatpush1.bf16.msra.mxu0 0
    %2639 = vmatprep.subr.bf16.mxu0 0
    %2640 = vmatpush1.bf16.msra.mxu0 0
    %2641 = vmatprep.subr.bf16.mxu0 0
    %2642 = vmatpush1.bf16.msra.mxu0 0
    %2643 = vmatprep.subr.bf16.mxu0 0
    %2644 = vmatpush1.bf16.msra.mxu0 0
    %2645 = vmatprep.subr.bf16.mxu0 0
    %2646 = vmatpush1.bf16.msra.mxu0 0
    %2647 = vmatprep.subr.bf16.mxu0 0
    %2648 = vmatpush1.bf16.msra.mxu0 0
    %2649 = vmatprep.mubr.bf16.mxu0 0
    %2650 = vmatmul.mubr.bf16.gmra.mrb[0].mxu0 %v727
    %v2651 = vpop.f32.mrb[0].mxu0
    %v2652 = vadd.f32 0.0, %v2651
    %v2653 = vpop.f32.mrb[0].mxu0
    %v2654 = vpop.f32.mrb[0].mxu0
    %v2655 = vadd.f32 0.0, %v2654
    %v2656 = vpop.f32.mrb[0].mxu0
    %2657 = vmatprep.mubr.bf16.mxu0 0
    %2658 = vmatmul.mubr.bf16.gmra.mrb[0].mxu0 %v730
    %v2659 = vpop.f32.mrb[0].mxu0
    %v2660 = vadd.f32 0.0, %v2659
    %v2661 = vpop.f32.mrb[0].mxu0
    %v2662 = vpop.f32.mrb[0].mxu0
    %v2663 = vadd.f32 0.0, %v2662
    %v2664 = vpop.f32.mrb[0].mxu0
    %2665 = vdwg.mxu0
    %v2666 = vpack.c.bf16 %v2655, %v2652
    %v2667 = vpack.c.bf16 %v2663, %v2660
    %s2668 = scalar_lea.vmem [#allocation11], 128
    %v2669 = vld [vmem:[%s2668] sm:$0xf]
    %v2670 = vld [vmem:[%s2668 + $0x4] sm:$0xf]
    %v2671 = vld [vmem:[%s2668 + $0x8] sm:$0xf]
    %v2672 = vld [vmem:[%s2668 + $0xc] sm:$0xf]
    %v2673 = vld [vmem:[%s2668 + $0x10] sm:$0xf]
    %v2674 = vld [vmem:[%s2668 + $0x14] sm:$0xf]
    %v2675 = vld [vmem:[%s2668 + $0x18] sm:$0xf]
    %v2676 = vld [vmem:[%s2668 + $0x1c] sm:$0xf]
    %v2677 = vld [vmem:[%s2668 + $0x20] sm:$0xf]
    %v2678 = vld [vmem:[%s2668 + $0x24] sm:$0xf]
    %v2679 = vld [vmem:[%s2668 + $0x28] sm:$0xf]
    %v2680 = vld [vmem:[%s2668 + $0x2c] sm:$0xf]
    %v2681 = vld [vmem:[%s2668 + $0x30] sm:$0xf]
    %v2682 = vld [vmem:[%s2668 + $0x34] sm:$0xf]
    %v2683 = vld [vmem:[%s2668 + $0x38] sm:$0xf]
    %v2684 = vld [vmem:[%s2668 + $0x3c] sm:$0xf]
    %s2685 = scalar_lea.vmem [#allocation13], 128
    %v2686 = vld [vmem:[%s2685] sm:$0xf]
    %v2687 = vld [vmem:[%s2685 + $0x4] sm:$0xf]
    %v2688 = vld [vmem:[%s2685 + $0x8] sm:$0xf]
    %v2689 = vld [vmem:[%s2685 + $0xc] sm:$0xf]
    %v2690 = vld [vmem:[%s2685 + $0x10] sm:$0xf]
    %v2691 = vld [vmem:[%s2685 + $0x14] sm:$0xf]
    %v2692 = vld [vmem:[%s2685 + $0x18] sm:$0xf]
    %v2693 = vld [vmem:[%s2685 + $0x1c] sm:$0xf]
    %v2694 = vld [vmem:[%s2685 + $0x20] sm:$0xf]
    %v2695 = vld [vmem:[%s2685 + $0x24] sm:$0xf]
    %v2696 = vld [vmem:[%s2685 + $0x28] sm:$0xf]
    %v2697 = vld [vmem:[%s2685 + $0x2c] sm:$0xf]
    %v2698 = vld [vmem:[%s2685 + $0x30] sm:$0xf]
    %v2699 = vld [vmem:[%s2685 + $0x34] sm:$0xf]
    %v2700 = vld [vmem:[%s2685 + $0x38] sm:$0xf]
    %v2701 = vld [vmem:[%s2685 + $0x3c] sm:$0xf]
    %v2718 = vunpack.c.l.b16 %v2686
    %v2719 = vunpack.c.l.b16 %v2687
    %v2720 = vunpack.c.l.b16 %v2688
    %v2721 = vunpack.c.l.b16 %v2689
    %v2722 = vunpack.c.l.b16 %v2690
    %v2723 = vunpack.c.l.b16 %v2691
    %v2724 = vunpack.c.l.b16 %v2692
    %v2725 = vunpack.c.l.b16 %v2693
    %v2726 = vunpack.c.l.b16 %v2694
    %v2727 = vunpack.c.l.b16 %v2695
    %v2728 = vunpack.c.l.b16 %v2696
    %v2729 = vunpack.c.l.b16 %v2697
    %v2730 = vunpack.c.l.b16 %v2698
    %v2731 = vunpack.c.l.b16 %v2699
    %v2732 = vunpack.c.l.b16 %v2700
    %v2733 = vunpack.c.l.b16 %v2701
    %v2734 = vpack.c.b16 %v2719, %v2718
    %v2735 = vpack.c.b16 %v2721, %v2720
    %v2736 = vpack.c.b16 %v2723, %v2722
    %v2737 = vpack.c.b16 %v2725, %v2724
    %v2738 = vpack.c.b16 %v2727, %v2726
    %v2739 = vpack.c.b16 %v2729, %v2728
    %v2740 = vpack.c.b16 %v2731, %v2730
    %v2741 = vpack.c.b16 %v2733, %v2732
    %2750 = vmatprep.subr.bf16.mxu0 0
    %2751 = vmatpush1.bf16.msra.mxu0 %v2734
    %2752 = vmatprep.subr.bf16.mxu0 0
    %2753 = vmatpush1.bf16.msra.mxu0 %v2735
    %2754 = vmatprep.subr.bf16.mxu0 0
    %2755 = vmatpush1.bf16.msra.mxu0 %v2736
    %2756 = vmatprep.subr.bf16.mxu0 0
    %2757 = vmatpush1.bf16.msra.mxu0 %v2737
    %2758 = vmatprep.subr.bf16.mxu0 0
    %2759 = vmatpush1.bf16.msra.mxu0 %v2738
    %2760 = vmatprep.subr.bf16.mxu0 0
    %2761 = vmatpush1.bf16.msra.mxu0 %v2739
    %2762 = vmatprep.subr.bf16.mxu0 0
    %2763 = vmatpush1.bf16.msra.mxu0 %v2740
    %2764 = vmatprep.subr.bf16.mxu0 0
    %2765 = vmatpush1.bf16.msra.mxu0 %v2741
    %2766 = vmatprep.subr.bf16.mxu0 0
    %2767 = vmatpush1.bf16.msra.mxu0 0
    %2768 = vmatprep.subr.bf16.mxu0 0
    %2769 = vmatpush1.bf16.msra.mxu0 0
    %2770 = vmatprep.subr.bf16.mxu0 0
    %2771 = vmatpush1.bf16.msra.mxu0 0
    %2772 = vmatprep.subr.bf16.mxu0 0
    %2773 = vmatpush1.bf16.msra.mxu0 0
    %2774 = vmatprep.subr.bf16.mxu0 0
    %2775 = vmatpush1.bf16.msra.mxu0 0
    %2776 = vmatprep.subr.bf16.mxu0 0
    %2777 = vmatpush1.bf16.msra.mxu0 0
    %2778 = vmatprep.subr.bf16.mxu0 0
    %2779 = vmatpush1.bf16.msra.mxu0 0
    %2780 = vmatprep.subr.bf16.mxu0 0
    %2781 = vmatpush1.bf16.msra.mxu0 0
    %2782 = vmatprep.mubr.bf16.mxu0 0
    %2783 = vmatmul.mubr.bf16.gmra.mrb[0].mxu0 %v2615
    %v2784 = vpop.f32.mrb[0].mxu0
    %v2785 = vadd.f32 0.0, %v2784
    %v2786 = vpop.f32.mrb[0].mxu0
    %v2787 = vpop.f32.mrb[0].mxu0
    %v2788 = vadd.f32 0.0, %v2787
    %v2789 = vpop.f32.mrb[0].mxu0
    %2790 = vmatprep.mubr.bf16.mxu0 0
    %2791 = vmatmul.mubr.bf16.gmra.mrb[0].mxu0 %v2616
    %v2792 = vpop.f32.mrb[0].mxu0
    %v2793 = vadd.f32 0.0, %v2792
    %v2794 = vpop.f32.mrb[0].mxu0
    %v2795 = vpop.f32.mrb[0].mxu0
    %v2796 = vadd.f32 0.0, %v2795
    %v2797 = vpop.f32.mrb[0].mxu0
    %2798 = vdwg.mxu0
    %v2815 = vunpack.c.l.b16 %v2669
    %v2816 = vunpack.c.l.b16 %v2670
    %v2817 = vunpack.c.l.b16 %v2671
    %v2818 = vunpack.c.l.b16 %v2672
    %v2819 = vunpack.c.l.b16 %v2673
    %v2820 = vunpack.c.l.b16 %v2674
    %v2821 = vunpack.c.l.b16 %v2675
    %v2822 = vunpack.c.l.b16 %v2676
    %v2823 = vunpack.c.l.b16 %v2677
    %v2824 = vunpack.c.l.b16 %v2678
    %v2825 = vunpack.c.l.b16 %v2679
    %v2826 = vunpack.c.l.b16 %v2680
    %v2827 = vunpack.c.l.b16 %v2681
    %v2828 = vunpack.c.l.b16 %v2682
    %v2829 = vunpack.c.l.b16 %v2683
    %v2830 = vunpack.c.l.b16 %v2684
    %v2831 = vpack.c.b16 %v2816, %v2815
    %v2832 = vpack.c.b16 %v2818, %v2817
    %v2833 = vpack.c.b16 %v2820, %v2819
    %v2834 = vpack.c.b16 %v2822, %v2821
    %v2835 = vpack.c.b16 %v2824, %v2823
    %v2836 = vpack.c.b16 %v2826, %v2825
    %v2837 = vpack.c.b16 %v2828, %v2827
    %v2838 = vpack.c.b16 %v2830, %v2829
    %2847 = vmatprep.subr.bf16.mxu0 0
    %2848 = vmatpush1.bf16.msra.mxu0 %v2831
    %2849 = vmatprep.subr.bf16.mxu0 0
    %2850 = vmatpush1.bf16.msra.mxu0 %v2832
    %2851 = vmatprep.subr.bf16.mxu0 0
    %2852 = vmatpush1.bf16.msra.mxu0 %v2833
    %2853 = vmatprep.subr.bf16.mxu0 0
    %2854 = vmatpush1.bf16.msra.mxu0 %v2834
    %2855 = vmatprep.subr.bf16.mxu0 0
    %2856 = vmatpush1.bf16.msra.mxu0 %v2835
    %2857 = vmatprep.subr.bf16.mxu0 0
    %2858 = vmatpush1.bf16.msra.mxu0 %v2836
    %2859 = vmatprep.subr.bf16.mxu0 0
    %2860 = vmatpush1.bf16.msra.mxu0 %v2837
    %2861 = vmatprep.subr.bf16.mxu0 0
    %2862 = vmatpush1.bf16.msra.mxu0 %v2838
    %2863 = vmatprep.subr.bf16.mxu0 0
    %2864 = vmatpush1.bf16.msra.mxu0 0
    %2865 = vmatprep.subr.bf16.mxu0 0
    %2866 = vmatpush1.bf16.msra.mxu0 0
    %2867 = vmatprep.subr.bf16.mxu0 0
    %2868 = vmatpush1.bf16.msra.mxu0 0
    %2869 = vmatprep.subr.bf16.mxu0 0
    %2870 = vmatpush1.bf16.msra.mxu0 0
    %2871 = vmatprep.subr.bf16.mxu0 0
    %2872 = vmatpush1.bf16.msra.mxu0 0
    %2873 = vmatprep.subr.bf16.mxu0 0
    %2874 = vmatpush1.bf16.msra.mxu0 0
    %2875 = vmatprep.subr.bf16.mxu0 0
    %2876 = vmatpush1.bf16.msra.mxu0 0
    %2877 = vmatprep.subr.bf16.mxu0 0
    %2878 = vmatpush1.bf16.msra.mxu0 0
    %2879 = vmatprep.mubr.bf16.mxu0 0
    %2880 = vmatmul.mubr.bf16.gmra.mrb[0].mxu0 %v2666
    %v2881 = vpop.f32.mrb[0].mxu0
    %v2882 = vadd.f32 %v2785, %v2881
    %v2883 = vpop.f32.mrb[0].mxu0
    %v2884 = vpop.f32.mrb[0].mxu0
    %v2885 = vadd.f32 %v2788, %v2884
    %v2886 = vpop.f32.mrb[0].mxu0
    %2887 = vmatprep.mubr.bf16.mxu0 0
    %2888 = vmatmul.mubr.bf16.gmra.mrb[0].mxu0 %v2667
    %v2889 = vpop.f32.mrb[0].mxu0
    %v2890 = vadd.f32 %v2793, %v2889
    %v2891 = vpop.f32.mrb[0].mxu0
    %v2892 = vpop.f32.mrb[0].mxu0
    %v2893 = vadd.f32 %v2796, %v2892
    %v2894 = vpop.f32.mrb[0].mxu0
    %2895 = vdwg.mxu0
    %s2896 = scalar_lea.vmem [#allocation14], 2
    %v2897 = vld [vmem:[%s2896] sm:$0x1]
    %v2899 = vlaneseq
    %v2900 = vshrl.u32 %v2899, 7
    %v2901 = vsub.s32 0, %v2900
    %v2902 = vrot.slane %v2897, %v2901
    %v2904 = vadd.f32 %v2882, %v2902
    %v2905 = vadd.f32 %v2885, %v2902
    %v2906 = vadd.f32 %v2890, %v2902
    %v2907 = vadd.f32 %v2893, %v2902
    %v2908 = vmax.f32 %v2904, 0.0
    %v2909 = vmax.f32 %v2905, 0.0
    %v2910 = vmax.f32 %v2906, 0.0
    %v2911 = vmax.f32 %v2907, 0.0
    %s2912 = scalar_lea.vmem [#allocation16], 2
    %v2913 = vld [vmem:[%s2912] sm:$0x1]
    %v2915 = vlaneseq
    %v2916 = vshrl.u32 %v2915, 7
    %v2917 = vsub.s32 0, %v2916
    %v2918 = vrot.slane %v2913, %v2917
    %v2920 = vadd.f32 %v2404, %v2918
    %v2921 = vadd.f32 %v2407, %v2918
    %v2922 = vpack.c.bf16 %v2921, %v2920
    %v2923 = vpack.c.bf16 %v2909, %v2908
    %v2924 = vpack.c.bf16 %v2911, %v2910
    %s2925 = scalar_lea.vmem [#allocation17], 128
    %v2926 = vld [vmem:[%s2925] sm:$0xf]
    %v2927 = vld [vmem:[%s2925 + $0x4] sm:$0xf]
    %v2928 = vld [vmem:[%s2925 + $0x8] sm:$0xf]
    %v2929 = vld [vmem:[%s2925 + $0xc] sm:$0xf]
    %v2930 = vld [vmem:[%s2925 + $0x10] sm:$0xf]
    %v2931 = vld [vmem:[%s2925 + $0x14] sm:$0xf]
    %v2932 = vld [vmem:[%s2925 + $0x18] sm:$0xf]
    %v2933 = vld [vmem:[%s2925 + $0x1c] sm:$0xf]
    %v2934 = vld [vmem:[%s2925 + $0x20] sm:$0xf]
    %v2935 = vld [vmem:[%s2925 + $0x24] sm:$0xf]
    %v2936 = vld [vmem:[%s2925 + $0x28] sm:$0xf]
    %v2937 = vld [vmem:[%s2925 + $0x2c] sm:$0xf]
    %v2938 = vld [vmem:[%s2925 + $0x30] sm:$0xf]
    %v2939 = vld [vmem:[%s2925 + $0x34] sm:$0xf]
    %v2940 = vld [vmem:[%s2925 + $0x38] sm:$0xf]
    %v2941 = vld [vmem:[%s2925 + $0x3c] sm:$0xf]
    %s2942 = scalar_lea.vmem [#allocation19], 2
    %v2943 = vld [vmem:[%s2942] sm:$0x1]
    %v2945 = vlaneseq
    %v2946 = vshrl.u32 %v2945, 7
    %v2947 = vsub.s32 0, %v2946
    %v2948 = vrot.slane %v2943, %v2947
    %v2966 = vunpack.c.l.b16 %v2926
    %v2967 = vunpack.c.l.b16 %v2927
    %v2968 = vunpack.c.l.b16 %v2928
    %v2969 = vunpack.c.l.b16 %v2929
    %v2970 = vunpack.c.l.b16 %v2930
    %v2971 = vunpack.c.l.b16 %v2931
    %v2972 = vunpack.c.l.b16 %v2932
    %v2973 = vunpack.c.l.b16 %v2933
    %v2974 = vunpack.c.l.b16 %v2934
    %v2975 = vunpack.c.l.b16 %v2935
    %v2976 = vunpack.c.l.b16 %v2936
    %v2977 = vunpack.c.l.b16 %v2937
    %v2978 = vunpack.c.l.b16 %v2938
    %v2979 = vunpack.c.l.b16 %v2939
    %v2980 = vunpack.c.l.b16 %v2940
    %v2981 = vunpack.c.l.b16 %v2941
    %v2982 = vpack.c.b16 %v2967, %v2966
    %v2983 = vpack.c.b16 %v2969, %v2968
    %v2984 = vpack.c.b16 %v2971, %v2970
    %v2985 = vpack.c.b16 %v2973, %v2972
    %v2986 = vpack.c.b16 %v2975, %v2974
    %v2987 = vpack.c.b16 %v2977, %v2976
    %v2988 = vpack.c.b16 %v2979, %v2978
    %v2989 = vpack.c.b16 %v2981, %v2980
    %2998 = vmatprep.subr.bf16.mxu0 0
    %2999 = vmatpush1.bf16.msra.mxu0 %v2982
    %3000 = vmatprep.subr.bf16.mxu0 0
    %3001 = vmatpush1.bf16.msra.mxu0 %v2983
    %3002 = vmatprep.subr.bf16.mxu0 0
    %3003 = vmatpush1.bf16.msra.mxu0 %v2984
    %3004 = vmatprep.subr.bf16.mxu0 0
    %3005 = vmatpush1.bf16.msra.mxu0 %v2985
    %3006 = vmatprep.subr.bf16.mxu0 0
    %3007 = vmatpush1.bf16.msra.mxu0 %v2986
    %3008 = vmatprep.subr.bf16.mxu0 0
    %3009 = vmatpush1.bf16.msra.mxu0 %v2987
    %3010 = vmatprep.subr.bf16.mxu0 0
    %3011 = vmatpush1.bf16.msra.mxu0 %v2988
    %3012 = vmatprep.subr.bf16.mxu0 0
    %3013 = vmatpush1.bf16.msra.mxu0 %v2989
    %3014 = vmatprep.subr.bf16.mxu0 0
    %3015 = vmatpush1.bf16.msra.mxu0 0
    %3016 = vmatprep.subr.bf16.mxu0 0
    %3017 = vmatpush1.bf16.msra.mxu0 0
    %3018 = vmatprep.subr.bf16.mxu0 0
    %3019 = vmatpush1.bf16.msra.mxu0 0
    %3020 = vmatprep.subr.bf16.mxu0 0
    %3021 = vmatpush1.bf16.msra.mxu0 0
    %3022 = vmatprep.subr.bf16.mxu0 0
    %3023 = vmatpush1.bf16.msra.mxu0 0
    %3024 = vmatprep.subr.bf16.mxu0 0
    %3025 = vmatpush1.bf16.msra.mxu0 0
    %3026 = vmatprep.subr.bf16.mxu0 0
    %3027 = vmatpush1.bf16.msra.mxu0 0
    %3028 = vmatprep.subr.bf16.mxu0 0
    %3029 = vmatpush1.bf16.msra.mxu0 0
    %3030 = vmatprep.mubr.bf16.mxu0 0
    %3031 = vmatmul.mubr.bf16.gmra.mrb[0].mxu0 %v2922
    %v3032 = vpop.f32.mrb[0].mxu0
    %v3033 = vadd.f32 %v2948, %v3032
    %v3034 = vpop.f32.mrb[0].mxu0
    %v3035 = vpop.f32.mrb[0].mxu0
    %v3036 = vadd.f32 %v2948, %v3035
    %v3037 = vpop.f32.mrb[0].mxu0
    %3038 = vmatprep.mubr.bf16.mxu0 0
    %3039 = vmatmul.mubr.bf16.gmra.mrb[0].mxu0 %v2923
    %v3040 = vpop.f32.mrb[0].mxu0
    %v3041 = vadd.f32 %v2948, %v3040
    %v3042 = vpop.f32.mrb[0].mxu0
    %v3043 = vpop.f32.mrb[0].mxu0
    %v3044 = vadd.f32 %v2948, %v3043
    %v3045 = vpop.f32.mrb[0].mxu0
    %3046 = vmatprep.mubr.bf16.mxu0 0
    %3047 = vmatmul.mubr.bf16.gmra.mrb[0].mxu0 %v2924
    %v3048 = vpop.f32.mrb[0].mxu0
    %v3049 = vadd.f32 %v2948, %v3048
    %v3050 = vpop.f32.mrb[0].mxu0
    %v3051 = vpop.f32.mrb[0].mxu0
    %v3052 = vadd.f32 %v2948, %v3051
    %v3053 = vpop.f32.mrb[0].mxu0
    %3054 = vdwg.mxu0
    %v3055 = vmax.f32 %v3033, 0.0
    %v3056 = vmax.f32 %v3036, 0.0
    %v3057 = vmax.f32 %v3041, 0.0
    %v3058 = vmax.f32 %v3044, 0.0
    %v3059 = vmax.f32 %v3049, 0.0
    %v3060 = vmax.f32 %v3052, 0.0
    %v3061 = vpack.c.bf16 %v3056, %v3055
    %v3062 = vpack.c.bf16 %v3058, %v3057
    %v3063 = vpack.c.bf16 %v3060, %v3059
    %3064 = vmatprep.subr.bf16.mxu0 0
    %3065 = vmatpush1.bf16.msra.mxu0 %v3061
    %3066 = vmatprep.subr.bf16.mxu0 0
    %3067 = vmatpush1.bf16.msra.mxu0 %v3062
    %3068 = vmatprep.subr.bf16.mxu0 0
    %3069 = vmatpush1.bf16.msra.mxu0 %v3063
    %3070 = vmatprep.subr.bf16.mxu0 0
    %3071 = vmatpush1.bf16.msra.mxu0 0
    %3072 = vmatprep.subr.bf16.mxu0 0
    %3073 = vmatpush1.bf16.msra.mxu0 0
    %3074 = vmatprep.subr.bf16.mxu0 0
    %3075 = vmatpush1.bf16.msra.mxu0 0
    %3076 = vmatprep.subr.bf16.mxu0 0
    %3077 = vmatpush1.bf16.msra.mxu0 0
    %3078 = vmatprep.subr.bf16.mxu0 0
    %3079 = vmatpush1.bf16.msra.mxu0 0
    %3080 = vmatprep.subr.bf16.mxu0 0
    %3081 = vmatpush1.bf16.msra.mxu0 0
    %3082 = vmatprep.subr.bf16.mxu0 0
    %3083 = vmatpush1.bf16.msra.mxu0 0
    %3084 = vmatprep.subr.bf16.mxu0 0
    %3085 = vmatpush1.bf16.msra.mxu0 0
    %3086 = vmatprep.subr.bf16.mxu0 0
    %3087 = vmatpush1.bf16.msra.mxu0 0
    %3088 = vmatprep.subr.bf16.mxu0 0
    %3089 = vmatpush1.bf16.msra.mxu0 0
    %3090 = vmatprep.subr.bf16.mxu0 0
    %3091 = vmatpush1.bf16.msra.mxu0 0
    %3092 = vmatprep.subr.bf16.mxu0 0
    %3093 = vmatpush1.bf16.msra.mxu0 0
    %3094 = vmatprep.subr.bf16.mxu0 0
    %3095 = vmatpush1.bf16.msra.mxu0 0
    %3096 = vmatprep.mubr.bf16.mxu0 0
    %3097 = vmatmul.mubr.bf16.gmra.mrb[0].mxu0 %v1180
    %v3098 = vpop.f32.mrb[0].mxu0
    %v3099 = vadd.f32 0.0, %v3098
    %v3100 = vpop.f32.mrb[0].mxu0
    %v3101 = vpop.f32.mrb[0].mxu0
    %v3102 = vadd.f32 0.0, %v3101
    %v3103 = vpop.f32.mrb[0].mxu0
    %3104 = vdwg.mxu0
    %v3105 = vld [vmem:[%s5] sm:$0xf]
    %v3106 = vpack.c.bf16 %v3102, %v3099
    %v3108 = vsel %vm499, %v3105, 0
    %3110 = vmatprep.subr.bf16.mxu0 0
    %3111 = vmatpush1.bf16.msra.mxu0 %v3106
    %3112 = vmatprep.subr.bf16.mxu0 0
    %3113 = vmatpush1.bf16.msra.mxu0 0
    %3114 = vmatprep.subr.bf16.mxu0 0
    %3115 = vmatpush1.bf16.msra.mxu0 0
    %3116 = vmatprep.subr.bf16.mxu0 0
    %3117 = vmatpush1.bf16.msra.mxu0 0
    %3118 = vmatprep.subr.bf16.mxu0 0
    %3119 = vmatpush1.bf16.msra.mxu0 0
    %3120 = vmatprep.subr.bf16.mxu0 0
    %3121 = vmatpush1.bf16.msra.mxu0 0
    %3122 = vmatprep.subr.bf16.mxu0 0
    %3123 = vmatpush1.bf16.msra.mxu0 0
    %3124 = vmatprep.subr.bf16.mxu0 0
    %3125 = vmatpush1.bf16.msra.mxu0 0
    %3126 = vmatprep.subr.bf16.mxu0 0
    %3127 = vmatpush1.bf16.msra.mxu0 0
    %3128 = vmatprep.subr.bf16.mxu0 0
    %3129 = vmatpush1.bf16.msra.mxu0 0
    %3130 = vmatprep.subr.bf16.mxu0 0
    %3131 = vmatpush1.bf16.msra.mxu0 0
    %3132 = vmatprep.subr.bf16.mxu0 0
    %3133 = vmatpush1.bf16.msra.mxu0 0
    %3134 = vmatprep.subr.bf16.mxu0 0
    %3135 = vmatpush1.bf16.msra.mxu0 0
    %3136 = vmatprep.subr.bf16.mxu0 0
    %3137 = vmatpush1.bf16.msra.mxu0 0
    %3138 = vmatprep.subr.bf16.mxu0 0
    %3139 = vmatpush1.bf16.msra.mxu0 0
    %3140 = vmatprep.subr.bf16.mxu0 0
    %3141 = vmatpush1.bf16.msra.mxu0 0
    %3142 = vmatprep.mubr.bf16.mxu0 0
    %3143 = vmatmul.mubr.bf16.gmra.mrb[0].mxu0 %v3108
    %v3144 = vpop.f32.mrb[0].mxu0
    %v3145 = vadd.f32 0.0, %v3144
    %v3146 = vpop.f32.mrb[0].mxu0
    %v3147 = vpop.f32.mrb[0].mxu0
    %v3148 = vpop.f32.mrb[0].mxu0
    %3149 = vdwg.mxu0
    %v3150 = vld [vmem:[%s6] sm:$0xff]
    %3152 = vset.pattern.permute.xlu0 0
    %3153 = vperm.xlu0 %3152, %v3150
    %v3154 = vpop.permute.xlu0 %3153
    %v3156 = vmul.f32 %v3145, %v3154
    %v3157 = vpack.c.bf16 %v3156, %v3156
    %v3158 = vld [vmem:[%s16] sm:$0xf]
    %v3159 = vld [vmem:[%s16 + $0x4] sm:$0xf]
    %v3160 = vld [vmem:[%s16 + $0x8] sm:$0xf]
    %v3161 = vld [vmem:[%s16 + $0xc] sm:$0xf]
    %v3162 = vld [vmem:[%s16 + $0x10] sm:$0xf]
    %v3163 = vld [vmem:[%s16 + $0x14] sm:$0xf]
    %v3164 = vld [vmem:[%s16 + $0x18] sm:$0xf]
    %v3165 = vld [vmem:[%s16 + $0x1c] sm:$0xf]
    %v3166 = vld [vmem:[%s16 + $0x20] sm:$0xf]
    %v3167 = vld [vmem:[%s16 + $0x24] sm:$0xf]
    %v3168 = vld [vmem:[%s16 + $0x28] sm:$0xf]
    %v3169 = vld [vmem:[%s16 + $0x2c] sm:$0xf]
    %v3170 = vld [vmem:[%s16 + $0x30] sm:$0xf]
    %v3171 = vld [vmem:[%s16 + $0x34] sm:$0xf]
    %v3172 = vld [vmem:[%s16 + $0x38] sm:$0xf]
    %v3173 = vld [vmem:[%s16 + $0x3c] sm:$0xf]
    %v3174 = vld [vmem:[%s17] sm:$0x1]
    %v3176 = vlaneseq
    %v3177 = vshrl.u32 %v3176, 7
    %v3178 = vsub.s32 0, %v3177
    %v3179 = vrot.slane %v3174, %v3178
    %v3197 = vunpack.c.l.b16 %v3158
    %v3198 = vunpack.c.l.b16 %v3159
    %v3199 = vunpack.c.l.b16 %v3160
    %v3200 = vunpack.c.l.b16 %v3161
    %v3201 = vunpack.c.l.b16 %v3162
    %v3202 = vunpack.c.l.b16 %v3163
    %v3203 = vunpack.c.l.b16 %v3164
    %v3204 = vunpack.c.l.b16 %v3165
    %v3205 = vunpack.c.l.b16 %v3166
    %v3206 = vunpack.c.l.b16 %v3167
    %v3207 = vunpack.c.l.b16 %v3168
    %v3208 = vunpack.c.l.b16 %v3169
    %v3209 = vunpack.c.l.b16 %v3170
    %v3210 = vunpack.c.l.b16 %v3171
    %v3211 = vunpack.c.l.b16 %v3172
    %v3212 = vunpack.c.l.b16 %v3173
    %v3213 = vpack.c.b16 %v3198, %v3197
    %v3214 = vpack.c.b16 %v3200, %v3199
    %v3215 = vpack.c.b16 %v3202, %v3201
    %v3216 = vpack.c.b16 %v3204, %v3203
    %v3217 = vpack.c.b16 %v3206, %v3205
    %v3218 = vpack.c.b16 %v3208, %v3207
    %v3219 = vpack.c.b16 %v3210, %v3209
    %v3220 = vpack.c.b16 %v3212, %v3211
    %3229 = vmatprep.subr.bf16.mxu0 0
    %3230 = vmatpush1.bf16.msra.mxu0 %v3213
    %3231 = vmatprep.subr.bf16.mxu0 0
    %3232 = vmatpush1.bf16.msra.mxu0 %v3214
    %3233 = vmatprep.subr.bf16.mxu0 0
    %3234 = vmatpush1.bf16.msra.mxu0 %v3215
    %3235 = vmatprep.subr.bf16.mxu0 0
    %3236 = vmatpush1.bf16.msra.mxu0 %v3216
    %3237 = vmatprep.subr.bf16.mxu0 0
    %3238 = vmatpush1.bf16.msra.mxu0 %v3217
    %3239 = vmatprep.subr.bf16.mxu0 0
    %3240 = vmatpush1.bf16.msra.mxu0 %v3218
    %3241 = vmatprep.subr.bf16.mxu0 0
    %3242 = vmatpush1.bf16.msra.mxu0 %v3219
    %3243 = vmatprep.subr.bf16.mxu0 0
    %3244 = vmatpush1.bf16.msra.mxu0 %v3220
    %3245 = vmatprep.subr.bf16.mxu0 0
    %3246 = vmatpush1.bf16.msra.mxu0 0
    %3247 = vmatprep.subr.bf16.mxu0 0
    %3248 = vmatpush1.bf16.msra.mxu0 0
    %3249 = vmatprep.subr.bf16.mxu0 0
    %3250 = vmatpush1.bf16.msra.mxu0 0
    %3251 = vmatprep.subr.bf16.mxu0 0
    %3252 = vmatpush1.bf16.msra.mxu0 0
    %3253 = vmatprep.subr.bf16.mxu0 0
    %3254 = vmatpush1.bf16.msra.mxu0 0
    %3255 = vmatprep.subr.bf16.mxu0 0
    %3256 = vmatpush1.bf16.msra.mxu0 0
    %3257 = vmatprep.subr.bf16.mxu0 0
    %3258 = vmatpush1.bf16.msra.mxu0 0
    %3259 = vmatprep.subr.bf16.mxu0 0
    %3260 = vmatpush1.bf16.msra.mxu0 0
    %3261 = vmatprep.mubr.bf16.mxu0 0
    %3262 = vmatmul.mubr.bf16.gmra.mrb[0].mxu0 %v3157
    %v3263 = vpop.f32.mrb[0].mxu0
    %v3264 = vadd.f32 %v3179, %v3263
    %v3265 = vpop.f32.mrb[0].mxu0
    %v3266 = vpop.f32.mrb[0].mxu0
    %v3267 = vpop.f32.mrb[0].mxu0
    %3268 = vdwg.mxu0
    %3269 = vst [vmem:[#allocation20] sm:$0xff] %v3264
    // Predicated region
    $region118: #{tpu_custom_call.1} parent=1 // pred_check
      _
    $region119: #{tpu_custom_call.1} parent=1 // pred_check_branch
      %3271 = sbr.rel (0) target = $region121
    $region120: #{tpu_custom_call.1} parent=1 // pred_region
      %s3273 = ssub.s32 128, 128
      %3274 = vsyncadd [#allocation4], %s3273
      %s3276 = sshll.u32 [#allocation20], 4
      %s3277 = int_to_ptr.vmem [resolvable:$true] %s3276
      %3279 = dma.vmem_to_hbm [thread:$0]  %s3277, 128, %s18, [#allocation4]
    $region121: #{tpu_custom_call.1} parent=1 // pred_fallthru
      _
    // Predicated region
    $region122: #{tpu_custom_call.1} parent=1 // pred_check
      _
    $region123: #{tpu_custom_call.1} parent=1 // pred_check_branch
      %3281 = sbr.rel (0) target = $region125
    $region124: #{tpu_custom_call.1} parent=1 // pred_region
      %3282 = dma.done [#allocation4], 128
    $region125: #{tpu_custom_call.1} parent=1 // pred_fallthru
      _
    %3283 = vsyncpa [#allocation3], 1
    %3284 = vsyncpa [#allocation6], 1
    %3285 = vsyncpa [#allocation9], 1
    %3286 = vsyncpa [#allocation12], 1
    %3287 = vsyncpa [#allocation15], 1
    %3288 = vsyncpa [#allocation18], 1
    %3289 = vsyncpa [#allocation4], 1

</llo_original>
